<compile_context>
chip_gen: v7x
topology: tpu7x:2x2x1
jax: 0.10.0
libtpu: 0.0.40
codegen_flags: <defaults>
</compile_context>

<pallas_src>
import functools

import jax
import jax.numpy as jnp
from jax import lax
from jax.experimental import pallas as pl
from jax.experimental.pallas import tpu as pltpu


def _round_up(x, m):
    return ((x + m - 1) // m) * m


@functools.lru_cache(maxsize=1)
def _tpu_info():
    """(vmem_capacity_bytes, tensorcores_per_chip) with conservative fallbacks."""
    vmem_cap = 64 * 1024 * 1024          # v7x floor -> safe everywhere
    n_cores = 1
    try:
        info = pltpu.get_tpu_info()
        cap = getattr(info, "vmem_capacity_bytes", None)
        if cap:
            vmem_cap = int(cap)
        for attr in ("num_tensorcores", "tensorcores_per_chip",
                     "num_cores", "cores_per_chip"):
            val = getattr(info, attr, None)
            if val:
                n_cores = int(val)
                break
    except Exception:                     # non-TPU / interpret environments
        pass
    return vmem_cap, n_cores


def _plan_blocks(T, B, Hp, gx_itemsize, out_itemsize, whh_itemsize,
                 max_time_block):
    """Pick (TT, NB, B_blk, vmem_limit) from the real VMEM budget."""
    vmem_cap, n_cores = _tpu_info()
    budget = min(int(0.85 * vmem_cap), 112 * 1024 * 1024)
    budget = max(budget, 32 * 1024 * 1024)

    # Batch split only where it can land on a second TensorCore (v7x) AND each
    # half keeps the per-step matmul M >= 64 rows; halves must be sublane-aligned.
    if n_cores >= 2 and B % 16 == 0 and (B // 2) >= 64:
        NB = 2
    else:
        NB = 1
    B_blk = B // NB

    whh_bytes = Hp * 4 * Hp * whh_itemsize
    fixed = (2 * whh_bytes                      # W_hh (worst case: double-buffered)
             + 2 * 2 * B_blk * Hp * 4           # h0, c0
             + 2 * 2 * B_blk * Hp * 4           # h_n, c_n outputs
             + 2 * B_blk * Hp * 4)              # h/c scratch
    per_tt = 2 * B_blk * (4 * Hp * gx_itemsize + Hp * out_itemsize)  # gx + y blocks
    tt_fit = max(1, (budget - fixed) // per_tt)
    tt = int(max(1, min(max_time_block, T, tt_fit)))
    # Prefer a divisor of T (no tail masking) as long as it stays >= tt/2.
    for cand in range(tt, max(1, tt // 2) - 1, -1):
        if T % cand == 0:
            tt = cand
            break
    return tt, NB, B_blk, budget


# ---------------------------------------------------------------------------
# Pallas kernel: LSTM recurrence over one block of TT timesteps.
# Grid = (batch_blocks, time_blocks); time is the inner, sequential axis.
# ---------------------------------------------------------------------------
def _lstm_recurrence_kernel(gx_ref, h0_ref, c0_ref, whh_ref,
                            y_ref, hn_ref, cn_ref,
                            h_s, c_s,
                            *, hidden_pad, time_block, seq_len, matmul_dtype):
    tb = pl.program_id(1)                 # time-block index (sequential axis)
    Hp = hidden_pad

    # (Re)initialize the carried state at the start of each batch block.
    @pl.when(tb == 0)
    def _():
        h_s[...] = h0_ref[...].astype(jnp.float32)
        c_s[...] = c0_ref[...].astype(jnp.float32)

    # Loop-invariant recurrent weights (bf16, single-buffered when supported).
    w_hh = whh_ref[...]                   # (Hp, 4*Hp)

    t_base = tb * time_block
    mask_tail = (seq_len % time_block) != 0   # static

    def step(s, carry):
        h_prev, c_prev = carry            # f32 (B_blk, Hp)
        # Only per-step matmul: h_prev @ W_hh on the MXU (bf16 operands,
        # f32 accumulation).  gates_x was precomputed outside the recurrence
        # and streamed in bf16.
        gates = gx_ref[s].astype(jnp.float32) + jnp.dot(
            h_prev.astype(matmul_dtype), w_hh,
            preferred_element_type=jnp.float32)

        # Gate order [i, f, o, g]: one contiguous sigmoid over 3*Hp lanes.
        # sigmoid(x) = 0.5*(1 + tanh(0.5*x))  -> single EUP op per element.
        sig = 0.5 * (jnp.tanh(0.5 * gates[:, 0:3 * Hp]) + 1.0)
        i_g = sig[:, 0 * Hp:1 * Hp]
        f_g = sig[:, 1 * Hp:2 * Hp]
        o_g = sig[:, 2 * Hp:3 * Hp]
        g_g = jnp.tanh(gates[:, 3 * Hp:4 * Hp])

        c_new = f_g * c_prev + i_g * g_g
        h_new = o_g * jnp.tanh(c_new)

        if mask_tail:
            # Freeze state on padded timesteps (T not a multiple of TT).
            valid = (t_base + s) < seq_len
            c_new = jnp.where(valid, c_new, c_prev)
            h_new = jnp.where(valid, h_new, h_prev)

        y_ref[s] = h_new.astype(y_ref.dtype)
        return h_new, c_new

    h_last, c_last = lax.fori_loop(
        0, time_block, step, (h_s[...], c_s[...]),
        unroll=int(min(8, time_block)))
    h_s[...] = h_last
    c_s[...] = c_last
    # Written every block (cheap) so we never rely on last-block-only flush.
    hn_ref[...] = h_last.astype(hn_ref.dtype)
    cn_ref[...] = c_last.astype(cn_ref.dtype)


# ---------------------------------------------------------------------------
# Python wrappers
# ---------------------------------------------------------------------------
def _input_projection(x_tm, w_ih, b, matmul_dtype, stream_dtype):
    """gates_x = x @ W_ih + b as ONE big matmul over the whole sequence."""
    T, B, D = x_tm.shape
    gx = jnp.dot(x_tm.reshape(T * B, D).astype(matmul_dtype),
                 w_ih.astype(matmul_dtype),
                 preferred_element_type=jnp.float32)
    return (gx + b).astype(stream_dtype).reshape(T, B, -1)   # (T, B, 4Hp)


_SINGLE_BUFFER_OK = None      # lazily probed: does Buffered(1) lower cleanly?


def _lstm_recurrence(gates_x, h0, c0, w_hh, out_dtype, *,
                     seq_len, hidden, hidden_pad, time_block, batch_blocks,
                     vmem_limit, matmul_dtype):
    """Sequential LSTM recurrence on precomputed input pre-activations.

    gates_x: (Tp, B, 4*Hp) bf16/f32  (x @ W_ih + b), time-major, lane-padded
    h0, c0 : (B, H)                  previous states (unpadded)
    w_hh   : (Hp, 4*Hp)              matmul_dtype, padded at init
    returns  y (Tp, B, Hp) out_dtype, h_n (B, Hp) f32, c_n (B, Hp) f32
    """
    global _SINGLE_BUFFER_OK
    Tp, B, _ = gates_x.shape
    Hp, H = hidden_pad, hidden

    if Hp != H:
        h0 = jnp.pad(h0, ((0, 0), (0, Hp - H)))
        c0 = jnp.pad(c0, ((0, 0), (0, Hp - H)))
    h0 = h0.astype(jnp.float32)
    c0 = c0.astype(jnp.float32)

    TT = time_block
    NT = Tp // TT
    NB = batch_blocks
    B_blk = B // NB

    kernel = functools.partial(
        _lstm_recurrence_kernel, hidden_pad=Hp, time_block=TT,
        seq_len=seq_len, matmul_dtype=matmul_dtype)

    out_shapes = (
        jax.ShapeDtypeStruct((Tp, B, Hp), out_dtype),   # y
        jax.ShapeDtypeStruct((B, Hp), jnp.float32),     # h_n
        jax.ShapeDtypeStruct((B, Hp), jnp.float32),     # c_n
    )

    def call(single_buffer):
        # Loop-invariant inputs single-buffered when supported (big VMEM win
        # for W_hh, the key item on v7x's 64 MiB).
        inv = dict(pipeline_mode=pl.Buffered(1)) if single_buffer else {}
        grid_spec = pltpu.PrefetchScalarGridSpec(
            num_scalar_prefetch=0,
            grid=(NB, NT),
            in_specs=[
                pl.BlockSpec((TT, B_blk, 4 * Hp), lambda bb, tb: (tb, bb, 0)),
                pl.BlockSpec((B_blk, Hp), lambda bb, tb: (bb, 0), **inv),   # h0
                pl.BlockSpec((B_blk, Hp), lambda bb, tb: (bb, 0), **inv),   # c0
                pl.BlockSpec((Hp, 4 * Hp), lambda bb, tb: (0, 0), **inv),   # W_hh
            ],
            out_specs=[
                pl.BlockSpec((TT, B_blk, Hp), lambda bb, tb: (tb, bb, 0)),  # y
                pl.BlockSpec((B_blk, Hp), lambda bb, tb: (bb, 0)),          # h_n
                pl.BlockSpec((B_blk, Hp), lambda bb, tb: (bb, 0)),          # c_n
            ],
            scratch_shapes=[
                pltpu.VMEM((B_blk, Hp), jnp.float32),                # h state
                pltpu.VMEM((B_blk, Hp), jnp.float32),                # c state
            ],
        )
        return pl.pallas_call(
            kernel,
            out_shape=out_shapes,
            grid_spec=grid_spec,
            compiler_params=pltpu.CompilerParams(
                # Batch blocks are independent (v7x megacore can split them);
                # the time axis carries the recurrence -> sequential.
                dimension_semantics=("parallel", "arbitrary"),
                vmem_limit_bytes=int(vmem_limit)),
        )(gates_x, h0, c0, w_hh)

    if _SINGLE_BUFFER_OK is None:
        try:
            out = call(True)
            jax.block_until_ready(out)
            _SINGLE_BUFFER_OK = True
            return out
        except Exception:
            # Installed Pallas rejected Buffered(1): fall back to default
            # double-buffered specs (correct, slightly more resident VMEM).
            _SINGLE_BUFFER_OK = False
    return call(_SINGLE_BUFFER_OK)


# ---------------------------------------------------------------------------
# StatefulLSTM wrapper mirroring the padertorch module semantics.
# ---------------------------------------------------------------------------
class StatefulLSTM:
    _states = None

    def __init__(self, input_size, hidden_size, num_layers=1,
                 bidirectional=False, dropout=0.0, batch_first=True,
                 save_states=True, key=None,
                 matmul_dtype=jnp.bfloat16, max_time_block=32):
        assert not bidirectional, "TODO(synk): bidirectional not implemented"
        assert dropout == 0.0, "TODO(synk): inter-layer dropout not implemented"
        self.input_size = input_size
        self.hidden_size = hidden_size
        self.hidden_pad = _round_up(hidden_size, 128)   # lane-aligned gates
        self.num_layers = num_layers
        self.bidirectional = bidirectional
        self.batch_first = batch_first
        self.save_states = save_states
        self.matmul_dtype = matmul_dtype
        self.max_time_block = max_time_block

        if key is None:
            key = jax.random.PRNGKey(0)
        H, Hp = hidden_size, self.hidden_pad
        k = float(H) ** -0.5               # torch.nn.LSTM init law
        self.params = []
        for layer in range(num_layers):
            d_in = input_size if layer == 0 else H
            d_in_pad = input_size if layer == 0 else Hp   # layers>=1 eat padded y
            key, k1, k2, k3, k4 = jax.random.split(key, 5)
            w_ih = jax.random.uniform(k1, (4, d_in, H), jnp.float32, -k, k)
            w_hh = jax.random.uniform(k2, (4, H, H), jnp.float32, -k, k)
            b_ih = jax.random.uniform(k3, (4, H), jnp.float32, -k, k)
            b_hh = jax.random.uniform(k4, (4, H), jnp.float32, -k, k)
            # Pad ONCE at init (gate-wise, order [i, f, o, g]); padded rows /
            # columns / bias entries are zero so padded lanes stay exactly 0.
            w_ih_p = jnp.zeros((d_in_pad, 4 * Hp), jnp.float32)
            w_hh_p = jnp.zeros((Hp, 4 * Hp), jnp.float32)
            b_p = jnp.zeros((4 * Hp,), jnp.float32)
            for g in range(4):
                w_ih_p = w_ih_p.at[:d_in, g * Hp:g * Hp + H].set(w_ih[g])
                w_hh_p = w_hh_p.at[:H, g * Hp:g * Hp + H].set(w_hh[g])
                b_p = b_p.at[g * Hp:g * Hp + H].set(b_ih[g] + b_hh[g])
            self.params.append((w_ih_p.astype(matmul_dtype),
                                w_hh_p.astype(matmul_dtype),
                                b_p))

    # -- states property, matching the torch module --------------------------
    @property
    def states(self):
        return self._states

    @states.setter
    def states(self, states):
        self._states = states

    @states.deleter
    def states(self):
        self._states = None

    # -- forward --------------------------------------------------------------
    def __call__(self, x):
        if self.batch_first:
            x_tm = jnp.transpose(x, (1, 0, 2))   # -> (T, B, D)
        else:
            x_tm = x
        T, B, _ = x_tm.shape
        H, Hp, L = self.hidden_size, self.hidden_pad, self.num_layers

        if self._states is None:
            h0 = jnp.zeros((L, B, H), jnp.float32)
            c0 = jnp.zeros((L, B, H), jnp.float32)
        else:
            h0, c0 = self._states

        inter_dtype = jnp.bfloat16           # inter-layer activations
        final_dtype = x.dtype

        TT, NB, _, vmem_limit = _plan_blocks(
            T, B, Hp,
            gx_itemsize=2,                                    # bf16 gates_x
            out_itemsize=jnp.dtype(final_dtype).itemsize,
            whh_itemsize=jnp.dtype(self.matmul_dtype).itemsize,
            max_time_block=self.max_time_block)
        Tp = _round_up(T, TT)
        if Tp != T:
            x_tm = jnp.pad(x_tm, ((0, Tp - T), (0, 0), (0, 0)))

        hs, cs = [], []
        inp = x_tm                             # (Tp, B, D) then (Tp, B, Hp)
        for layer in range(L):
            w_ih, w_hh, b = self.params[layer]
            gx = _input_projection(inp, w_ih, b, self.matmul_dtype,
                                   stream_dtype=jnp.bfloat16)
            out_dtype = inter_dtype if layer < L - 1 else final_dtype
            y, h_n, c_n = _lstm_recurrence(
                gx, h0[layer], c0[layer], w_hh, out_dtype,
                seq_len=T, hidden=H, hidden_pad=Hp,
                time_block=TT, batch_blocks=NB, vmem_limit=vmem_limit,
                matmul_dtype=self.matmul_dtype)
            hs.append(h_n[:, :H])
            cs.append(c_n[:, :H])
            inp = y                            # padded (Tp, B, Hp), fed directly

        self._states = (jnp.stack(hs, axis=0), jnp.stack(cs, axis=0))
        if not self.save_states:
            del self.states

        out = inp[:T, :, :H]                   # slice padding off once, at the end
        if self.batch_first:
            out = jnp.transpose(out, (1, 0, 2))  # -> (B, T, H)
        return out


# ---------------------------------------------------------------------------
# Pure-JAX reference (lax.scan) with the same packing / rounding choices.
# ---------------------------------------------------------------------------
def _ref_lstm_layer(x_tm, h0_p, c0_p, w_ih, w_hh, b, Hp, matmul_dtype):
    gx = _input_projection(x_tm, w_ih, b, matmul_dtype,
                           stream_dtype=jnp.bfloat16).astype(jnp.float32)

    def step(carry, g_x):
        h, c = carry
        gates = g_x + jnp.dot(h.astype(matmul_dtype), w_hh,
                              preferred_element_type=jnp.float32)
        i = jax.nn.sigmoid(gates[:, 0 * Hp:1 * Hp])
        f = jax.nn.sigmoid(gates[:, 1 * Hp:2 * Hp])
        o = jax.nn.sigmoid(gates[:, 2 * Hp:3 * Hp])
        g = jnp.tanh(gates[:, 3 * Hp:4 * Hp])
        c_new = f * c + i * g
        h_new = o * jnp.tanh(c_new)
        return (h_new, c_new), h_new

    (h_n, c_n), ys = lax.scan(
        step, (h0_p.astype(jnp.float32), c0_p.astype(jnp.float32)), gx)
    return ys, h_n, c_n


def _ref_forward(model, x_tm, states):
    T, B, _ = x_tm.shape
    H, Hp, L = model.hidden_size, model.hidden_pad, model.num_layers
    if states is None:
        h0 = jnp.zeros((L, B, H), jnp.float32)
        c0 = jnp.zeros((L, B, H), jnp.float32)
    else:
        h0, c0 = states
    hs, cs = [], []
    inp = x_tm
    for layer in range(L):
        w_ih, w_hh, b = model.params[layer]
        h0_p = jnp.pad(h0[layer], ((0, 0), (0, Hp - H))) if Hp != H else h0[layer]
        c0_p = jnp.pad(c0[layer], ((0, 0), (0, Hp - H))) if Hp != H else c0[layer]
        ys, hn, cn = _ref_lstm_layer(inp, h0_p, c0_p, w_ih, w_hh, b, Hp,
                                     model.matmul_dtype)
        hs.append(hn[:, :H])
        cs.append(cn[:, :H])
        inp = ys.astype(jnp.bfloat16) if layer < L - 1 else ys
    out = inp[:, :, :H].astype(x_tm.dtype)
    return out, (jnp.stack(hs, 0), jnp.stack(cs, 0))


if __name__ == "__main__":
    B, T, D, H = 2, 8, 16, 32

    key = jax.random.PRNGKey(0)
    kx, kp = jax.random.split(key)
    x = jax.random.normal(kx, (B, T, D), jnp.float32)   # (batch, seq, input)

    model = StatefulLSTM(input_size=D, hidden_size=H, num_layers=2,
                         batch_first=True, save_states=True, key=kp)

    # First call: states start as None (zeros).
    y1 = jax.block_until_ready(model(x))
    # Second call reuses saved states (stateful behaviour).
    y2 = jax.block_until_ready(model(x))

    # Reference check (same bf16 operand / streaming rounding as the kernel).
    x_tm = jnp.transpose(x, (1, 0, 2))
    yr1_tm, st1 = _ref_forward(model, x_tm, None)
    yr2_tm, _ = _ref_forward(model, x_tm, st1)
    y_ref1 = jnp.transpose(yr1_tm, (1, 0, 2))
    y_ref2 = jnp.transpose(yr2_tm, (1, 0, 2))

    assert y1.shape == (B, T, H)
    assert jnp.allclose(y1, y_ref1, atol=1e-2, rtol=1e-2), \
        float(jnp.max(jnp.abs(y1 - y_ref1)))
    assert jnp.allclose(y2, y_ref2, atol=1e-2, rtol=1e-2), \
        float(jnp.max(jnp.abs(y2 - y_ref2)))

    print("KERNEL_OK")
</pallas_src>

<mosaic_0001>
module attributes {stable_mosaic.version = 11 : i64} {
  func.func @_lstm_recurrence_kernel(%arg0: i32, %arg1: i32, %arg2: memref<8x2x512xbf16, #tpu.memory_space<vmem>>, %arg3: memref<2x128xf32, #tpu.memory_space<vmem>>, %arg4: memref<2x128xf32, #tpu.memory_space<vmem>>, %arg5: memref<128x512xbf16, #tpu.memory_space<vmem>>, %arg6: memref<8x2x128xbf16, #tpu.memory_space<vmem>>, %arg7: memref<2x128xf32, #tpu.memory_space<vmem>>, %arg8: memref<2x128xf32, #tpu.memory_space<vmem>>, %arg9: memref<2x128xf32, #tpu.memory_space<vmem>>, %arg10: memref<2x128xf32, #tpu.memory_space<vmem>>) attributes {dimension_semantics = [#tpu.dimension_semantics<parallel>, #tpu.dimension_semantics<arbitrary>], iteration_bounds = array<i64: 1, 1>, scalar_prefetch = 0 : i64, scratch_operands = 2 : i64, tpu.core_type = #tpu.core_type<tc>, window_params = [{transform_indices = @transform_0, window_bounds = array<i64: 8, 2, 512>}, {pipeline_mode = #tpu.pipeline_mode<synchronous>, transform_indices = @transform_1, window_bounds = array<i64: 2, 128>}, {pipeline_mode = #tpu.pipeline_mode<synchronous>, transform_indices = @transform_2, window_bounds = array<i64: 2, 128>}, {pipeline_mode = #tpu.pipeline_mode<synchronous>, transform_indices = @transform_3, window_bounds = array<i64: 128, 512>}, {transform_indices = @transform_4, window_bounds = array<i64: 8, 2, 128>}, {transform_indices = @transform_5, window_bounds = array<i64: 2, 128>}, {transform_indices = @transform_6, window_bounds = array<i64: 2, 128>}]} {
    %c0_i32 = arith.constant 0 : i32
    %0 = arith.cmpi eq, %arg1, %c0_i32 : i32
    %1 = arith.extui %0 : i1 to i32
    %c0_i32_0 = arith.constant 0 : i32
    %2 = arith.cmpi ne, %1, %c0_i32_0 : i32
    scf.if %2 {
      %c0_78 = arith.constant 0 : index
      %c0_79 = arith.constant 0 : index
      %250 = vector.load %arg3[%c0_78, %c0_79] : memref<2x128xf32, #tpu.memory_space<vmem>>, vector<2x128xf32>
      %c0_80 = arith.constant 0 : index
      %c0_81 = arith.constant 0 : index
      %251 = vector.load %arg9[%c0_80, %c0_81] : memref<2x128xf32, #tpu.memory_space<vmem>>, vector<2x128xf32>
      tpu.vector_store %arg9[%c0_80, %c0_81], %250 {strides = array<i32>} : memref<2x128xf32, #tpu.memory_space<vmem>>, vector<2x128xf32>,
      %c0_82 = arith.constant 0 : index
      %c0_83 = arith.constant 0 : index
      %252 = vector.load %arg4[%c0_82, %c0_83] : memref<2x128xf32, #tpu.memory_space<vmem>>, vector<2x128xf32>
      %c0_84 = arith.constant 0 : index
      %c0_85 = arith.constant 0 : index
      %253 = vector.load %arg10[%c0_84, %c0_85] : memref<2x128xf32, #tpu.memory_space<vmem>>, vector<2x128xf32>
      tpu.vector_store %arg10[%c0_84, %c0_85], %252 {strides = array<i32>} : memref<2x128xf32, #tpu.memory_space<vmem>>, vector<2x128xf32>,
    } else {
    }
    %c0 = arith.constant 0 : index
    %c0_1 = arith.constant 0 : index
    %3 = vector.load %arg5[%c0, %c0_1] : memref<128x512xbf16, #tpu.memory_space<vmem>>, vector<128x512xbf16>
    %c0_2 = arith.constant 0 : index
    %c0_3 = arith.constant 0 : index
    %4 = vector.load %arg9[%c0_2, %c0_3] : memref<2x128xf32, #tpu.memory_space<vmem>>, vector<2x128xf32>
    %c0_4 = arith.constant 0 : index
    %c0_5 = arith.constant 0 : index
    %5 = vector.load %arg10[%c0_4, %c0_5] : memref<2x128xf32, #tpu.memory_space<vmem>>, vector<2x128xf32>
    %c0_i32_6 = arith.constant 0 : i32
    %6 = arith.index_cast %c0_i32_6 : i32 to index
    %c0_7 = arith.constant 0 : index
    %c0_8 = arith.constant 0 : index
    %7 = vector.load %arg2[%6, %c0_7, %c0_8] : memref<8x2x512xbf16, #tpu.memory_space<vmem>>, vector<1x2x512xbf16>
    %8 = vector.shape_cast %7 : vector<1x2x512xbf16> to vector<2x512xbf16>
    %9 = arith.extf %8 : vector<2x512xbf16> to vector<2x512xf32>
    %10 = arith.truncf %4 : vector<2x128xf32> to vector<2x128xbf16>
    %cst = arith.constant dense<0.000000e+00> : vector<2x512xf32>
    %11 = tpu.matmul %10, %3, %cst {dimension_numbers = #tpu.dot_dimension_numbers<[1], [0], [0], [1], [0, 0, 1, 1], [], []>} : vector<2x128xbf16>, vector<128x512xbf16>, vector<2x512xf32> -> vector<2x512xf32>
    %12 = arith.addf %9, %11 : vector<2x512xf32>
    %13 = vector.extract_strided_slice %12 {offsets = [0, 0], sizes = [2, 384], strides = [1, 1]} : vector<2x512xf32> to vector<2x384xf32>
    %cst_9 = arith.constant 5.000000e-01 : f32
    %14 = vector.broadcast %cst_9 : f32 to vector<2x384xf32>
    %15 = arith.mulf %14, %13 : vector<2x384xf32>
    %16 = math.tanh %15 : vector<2x384xf32>
    %cst_10 = arith.constant 1.000000e+00 : f32
    %17 = vector.broadcast %cst_10 : f32 to vector<2x384xf32>
    %18 = arith.addf %16, %17 : vector<2x384xf32>
    %cst_11 = arith.constant 5.000000e-01 : f32
    %19 = vector.broadcast %cst_11 : f32 to vector<2x384xf32>
    %20 = arith.mulf %19, %18 : vector<2x384xf32>
    %21 = vector.extract_strided_slice %20 {offsets = [0, 0], sizes = [2, 128], strides = [1, 1]} : vector<2x384xf32> to vector<2x128xf32>
    %22 = vector.extract_strided_slice %20 {offsets = [0, 128], sizes = [2, 128], strides = [1, 1]} : vector<2x384xf32> to vector<2x128xf32>
    %23 = vector.extract_strided_slice %20 {offsets = [0, 256], sizes = [2, 128], strides = [1, 1]} : vector<2x384xf32> to vector<2x128xf32>
    %24 = vector.extract_strided_slice %12 {offsets = [0, 384], sizes = [2, 128], strides = [1, 1]} : vector<2x512xf32> to vector<2x128xf32>
    %25 = math.tanh %24 : vector<2x128xf32>
    %26 = arith.mulf %22, %5 : vector<2x128xf32>
    %27 = arith.mulf %21, %25 : vector<2x128xf32>
    %28 = arith.addf %26, %27 : vector<2x128xf32>
    %29 = math.tanh %28 : vector<2x128xf32>
    %30 = arith.mulf %23, %29 : vector<2x128xf32>
    %31 = arith.truncf %30 : vector<2x128xf32> to vector<2x128xbf16>
    %32 = arith.index_cast %c0_i32_6 : i32 to index
    %c0_12 = arith.constant 0 : index
    %c0_13 = arith.constant 0 : index
    %33 = vector.load %arg6[%32, %c0_12, %c0_13] : memref<8x2x128xbf16, #tpu.memory_space<vmem>>, vector<1x2x128xbf16>
    %34 = vector.shape_cast %33 : vector<1x2x128xbf16> to vector<2x128xbf16>
    %35 = vector.shape_cast %31 : vector<2x128xbf16> to vector<1x2x128xbf16>
    tpu.vector_store %arg6[%32, %c0_12, %c0_13], %35 {strides = array<i32>} : memref<8x2x128xbf16, #tpu.memory_space<vmem>>, vector<1x2x128xbf16>,
    %c1_i32 = arith.constant 1 : i32
    %36 = arith.index_cast %c1_i32 : i32 to index
    %c0_14 = arith.constant 0 : index
    %c0_15 = arith.constant 0 : index
    %37 = vector.load %arg2[%36, %c0_14, %c0_15] : memref<8x2x512xbf16, #tpu.memory_space<vmem>>, vector<1x2x512xbf16>
    %38 = vector.shape_cast %37 : vector<1x2x512xbf16> to vector<2x512xbf16>
    %39 = arith.extf %38 : vector<2x512xbf16> to vector<2x512xf32>
    %40 = arith.truncf %30 : vector<2x128xf32> to vector<2x128xbf16>
    %cst_16 = arith.constant dense<0.000000e+00> : vector<2x512xf32>
    %41 = tpu.matmul %40, %3, %cst_16 {dimension_numbers = #tpu.dot_dimension_numbers<[1], [0], [0], [1], [0, 0, 1, 1], [], []>} : vector<2x128xbf16>, vector<128x512xbf16>, vector<2x512xf32> -> vector<2x512xf32>
    %42 = arith.addf %39, %41 : vector<2x512xf32>
    %43 = vector.extract_strided_slice %42 {offsets = [0, 0], sizes = [2, 384], strides = [1, 1]} : vector<2x512xf32> to vector<2x384xf32>
    %cst_17 = arith.constant 5.000000e-01 : f32
    %44 = vector.broadcast %cst_17 : f32 to vector<2x384xf32>
    %45 = arith.mulf %44, %43 : vector<2x384xf32>
    %46 = math.tanh %45 : vector<2x384xf32>
    %cst_18 = arith.constant 1.000000e+00 : f32
    %47 = vector.broadcast %cst_18 : f32 to vector<2x384xf32>
    %48 = arith.addf %46, %47 : vector<2x384xf32>
    %cst_19 = arith.constant 5.000000e-01 : f32
    %49 = vector.broadcast %cst_19 : f32 to vector<2x384xf32>
    %50 = arith.mulf %49, %48 : vector<2x384xf32>
    %51 = vector.extract_strided_slice %50 {offsets = [0, 0], sizes = [2, 128], strides = [1, 1]} : vector<2x384xf32> to vector<2x128xf32>
    %52 = vector.extract_strided_slice %50 {offsets = [0, 128], sizes = [2, 128], strides = [1, 1]} : vector<2x384xf32> to vector<2x128xf32>
    %53 = vector.extract_strided_slice %50 {offsets = [0, 256], sizes = [2, 128], strides = [1, 1]} : vector<2x384xf32> to vector<2x128xf32>
    %54 = vector.extract_strided_slice %42 {offsets = [0, 384], sizes = [2, 128], strides = [1, 1]} : vector<2x512xf32> to vector<2x128xf32>
    %55 = math.tanh %54 : vector<2x128xf32>
    %56 = arith.mulf %52, %28 : vector<2x128xf32>
    %57 = arith.mulf %51, %55 : vector<2x128xf32>
    %58 = arith.addf %56, %57 : vector<2x128xf32>
    %59 = math.tanh %58 : vector<2x128xf32>
    %60 = arith.mulf %53, %59 : vector<2x128xf32>
    %61 = arith.truncf %60 : vector<2x128xf32> to vector<2x128xbf16>
    %62 = arith.index_cast %c1_i32 : i32 to index
    %c0_20 = arith.constant 0 : index
    %c0_21 = arith.constant 0 : index
    %63 = vector.load %arg6[%62, %c0_20, %c0_21] : memref<8x2x128xbf16, #tpu.memory_space<vmem>>, vector<1x2x128xbf16>
    %64 = vector.shape_cast %63 : vector<1x2x128xbf16> to vector<2x128xbf16>
    %65 = vector.shape_cast %61 : vector<2x128xbf16> to vector<1x2x128xbf16>
    tpu.vector_store %arg6[%62, %c0_20, %c0_21], %65 {strides = array<i32>} : memref<8x2x128xbf16, #tpu.memory_space<vmem>>, vector<1x2x128xbf16>,
    %c2_i32 = arith.constant 2 : i32
    %66 = arith.index_cast %c2_i32 : i32 to index
    %c0_22 = arith.constant 0 : index
    %c0_23 = arith.constant 0 : index
    %67 = vector.load %arg2[%66, %c0_22, %c0_23] : memref<8x2x512xbf16, #tpu.memory_space<vmem>>, vector<1x2x512xbf16>
    %68 = vector.shape_cast %67 : vector<1x2x512xbf16> to vector<2x512xbf16>
    %69 = arith.extf %68 : vector<2x512xbf16> to vector<2x512xf32>
    %70 = arith.truncf %60 : vector<2x128xf32> to vector<2x128xbf16>
    %cst_24 = arith.constant dense<0.000000e+00> : vector<2x512xf32>
    %71 = tpu.matmul %70, %3, %cst_24 {dimension_numbers = #tpu.dot_dimension_numbers<[1], [0], [0], [1], [0, 0, 1, 1], [], []>} : vector<2x128xbf16>, vector<128x512xbf16>, vector<2x512xf32> -> vector<2x512xf32>
    %72 = arith.addf %69, %71 : vector<2x512xf32>
    %73 = vector.extract_strided_slice %72 {offsets = [0, 0], sizes = [2, 384], strides = [1, 1]} : vector<2x512xf32> to vector<2x384xf32>
    %cst_25 = arith.constant 5.000000e-01 : f32
    %74 = vector.broadcast %cst_25 : f32 to vector<2x384xf32>
    %75 = arith.mulf %74, %73 : vector<2x384xf32>
    %76 = math.tanh %75 : vector<2x384xf32>
    %cst_26 = arith.constant 1.000000e+00 : f32
    %77 = vector.broadcast %cst_26 : f32 to vector<2x384xf32>
    %78 = arith.addf %76, %77 : vector<2x384xf32>
    %cst_27 = arith.constant 5.000000e-01 : f32
    %79 = vector.broadcast %cst_27 : f32 to vector<2x384xf32>
    %80 = arith.mulf %79, %78 : vector<2x384xf32>
    %81 = vector.extract_strided_slice %80 {offsets = [0, 0], sizes = [2, 128], strides = [1, 1]} : vector<2x384xf32> to vector<2x128xf32>
    %82 = vector.extract_strided_slice %80 {offsets = [0, 128], sizes = [2, 128], strides = [1, 1]} : vector<2x384xf32> to vector<2x128xf32>
    %83 = vector.extract_strided_slice %80 {offsets = [0, 256], sizes = [2, 128], strides = [1, 1]} : vector<2x384xf32> to vector<2x128xf32>
    %84 = vector.extract_strided_slice %72 {offsets = [0, 384], sizes = [2, 128], strides = [1, 1]} : vector<2x512xf32> to vector<2x128xf32>
    %85 = math.tanh %84 : vector<2x128xf32>
    %86 = arith.mulf %82, %58 : vector<2x128xf32>
    %87 = arith.mulf %81, %85 : vector<2x128xf32>
    %88 = arith.addf %86, %87 : vector<2x128xf32>
    %89 = math.tanh %88 : vector<2x128xf32>
    %90 = arith.mulf %83, %89 : vector<2x128xf32>
    %91 = arith.truncf %90 : vector<2x128xf32> to vector<2x128xbf16>
    %92 = arith.index_cast %c2_i32 : i32 to index
    %c0_28 = arith.constant 0 : index
    %c0_29 = arith.constant 0 : index
    %93 = vector.load %arg6[%92, %c0_28, %c0_29] : memref<8x2x128xbf16, #tpu.memory_space<vmem>>, vector<1x2x128xbf16>
    %94 = vector.shape_cast %93 : vector<1x2x128xbf16> to vector<2x128xbf16>
    %95 = vector.shape_cast %91 : vector<2x128xbf16> to vector<1x2x128xbf16>
    tpu.vector_store %arg6[%92, %c0_28, %c0_29], %95 {strides = array<i32>} : memref<8x2x128xbf16, #tpu.memory_space<vmem>>, vector<1x2x128xbf16>,
    %c3_i32 = arith.constant 3 : i32
    %96 = arith.index_cast %c3_i32 : i32 to index
    %c0_30 = arith.constant 0 : index
    %c0_31 = arith.constant 0 : index
    %97 = vector.load %arg2[%96, %c0_30, %c0_31] : memref<8x2x512xbf16, #tpu.memory_space<vmem>>, vector<1x2x512xbf16>
    %98 = vector.shape_cast %97 : vector<1x2x512xbf16> to vector<2x512xbf16>
    %99 = arith.extf %98 : vector<2x512xbf16> to vector<2x512xf32>
    %100 = arith.truncf %90 : vector<2x128xf32> to vector<2x128xbf16>
    %cst_32 = arith.constant dense<0.000000e+00> : vector<2x512xf32>
    %101 = tpu.matmul %100, %3, %cst_32 {dimension_numbers = #tpu.dot_dimension_numbers<[1], [0], [0], [1], [0, 0, 1, 1], [], []>} : vector<2x128xbf16>, vector<128x512xbf16>, vector<2x512xf32> -> vector<2x512xf32>
    %102 = arith.addf %99, %101 : vector<2x512xf32>
    %103 = vector.extract_strided_slice %102 {offsets = [0, 0], sizes = [2, 384], strides = [1, 1]} : vector<2x512xf32> to vector<2x384xf32>
    %cst_33 = arith.constant 5.000000e-01 : f32
    %104 = vector.broadcast %cst_33 : f32 to vector<2x384xf32>
    %105 = arith.mulf %104, %103 : vector<2x384xf32>
    %106 = math.tanh %105 : vector<2x384xf32>
    %cst_34 = arith.constant 1.000000e+00 : f32
    %107 = vector.broadcast %cst_34 : f32 to vector<2x384xf32>
    %108 = arith.addf %106, %107 : vector<2x384xf32>
    %cst_35 = arith.constant 5.000000e-01 : f32
    %109 = vector.broadcast %cst_35 : f32 to vector<2x384xf32>
    %110 = arith.mulf %109, %108 : vector<2x384xf32>
    %111 = vector.extract_strided_slice %110 {offsets = [0, 0], sizes = [2, 128], strides = [1, 1]} : vector<2x384xf32> to vector<2x128xf32>
    %112 = vector.extract_strided_slice %110 {offsets = [0, 128], sizes = [2, 128], strides = [1, 1]} : vector<2x384xf32> to vector<2x128xf32>
    %113 = vector.extract_strided_slice %110 {offsets = [0, 256], sizes = [2, 128], strides = [1, 1]} : vector<2x384xf32> to vector<2x128xf32>
    %114 = vector.extract_strided_slice %102 {offsets = [0, 384], sizes = [2, 128], strides = [1, 1]} : vector<2x512xf32> to vector<2x128xf32>
    %115 = math.tanh %114 : vector<2x128xf32>
    %116 = arith.mulf %112, %88 : vector<2x128xf32>
    %117 = arith.mulf %111, %115 : vector<2x128xf32>
    %118 = arith.addf %116, %117 : vector<2x128xf32>
    %119 = math.tanh %118 : vector<2x128xf32>
    %120 = arith.mulf %113, %119 : vector<2x128xf32>
    %121 = arith.truncf %120 : vector<2x128xf32> to vector<2x128xbf16>
    %122 = arith.index_cast %c3_i32 : i32 to index
    %c0_36 = arith.constant 0 : index
    %c0_37 = arith.constant 0 : index
    %123 = vector.load %arg6[%122, %c0_36, %c0_37] : memref<8x2x128xbf16, #tpu.memory_space<vmem>>, vector<1x2x128xbf16>
    %124 = vector.shape_cast %123 : vector<1x2x128xbf16> to vector<2x128xbf16>
    %125 = vector.shape_cast %121 : vector<2x128xbf16> to vector<1x2x128xbf16>
    tpu.vector_store %arg6[%122, %c0_36, %c0_37], %125 {strides = array<i32>} : memref<8x2x128xbf16, #tpu.memory_space<vmem>>, vector<1x2x128xbf16>,
    %c4_i32 = arith.constant 4 : i32
    %126 = arith.index_cast %c4_i32 : i32 to index
    %c0_38 = arith.constant 0 : index
    %c0_39 = arith.constant 0 : index
    %127 = vector.load %arg2[%126, %c0_38, %c0_39] : memref<8x2x512xbf16, #tpu.memory_space<vmem>>, vector<1x2x512xbf16>
    %128 = vector.shape_cast %127 : vector<1x2x512xbf16> to vector<2x512xbf16>
    %129 = arith.extf %128 : vector<2x512xbf16> to vector<2x512xf32>
    %130 = arith.truncf %120 : vector<2x128xf32> to vector<2x128xbf16>
    %cst_40 = arith.constant dense<0.000000e+00> : vector<2x512xf32>
    %131 = tpu.matmul %130, %3, %cst_40 {dimension_numbers = #tpu.dot_dimension_numbers<[1], [0], [0], [1], [0, 0, 1, 1], [], []>} : vector<2x128xbf16>, vector<128x512xbf16>, vector<2x512xf32> -> vector<2x512xf32>
    %132 = arith.addf %129, %131 : vector<2x512xf32>
    %133 = vector.extract_strided_slice %132 {offsets = [0, 0], sizes = [2, 384], strides = [1, 1]} : vector<2x512xf32> to vector<2x384xf32>
    %cst_41 = arith.constant 5.000000e-01 : f32
    %134 = vector.broadcast %cst_41 : f32 to vector<2x384xf32>
    %135 = arith.mulf %134, %133 : vector<2x384xf32>
    %136 = math.tanh %135 : vector<2x384xf32>
    %cst_42 = arith.constant 1.000000e+00 : f32
    %137 = vector.broadcast %cst_42 : f32 to vector<2x384xf32>
    %138 = arith.addf %136, %137 : vector<2x384xf32>
    %cst_43 = arith.constant 5.000000e-01 : f32
    %139 = vector.broadcast %cst_43 : f32 to vector<2x384xf32>
    %140 = arith.mulf %139, %138 : vector<2x384xf32>
    %141 = vector.extract_strided_slice %140 {offsets = [0, 0], sizes = [2, 128], strides = [1, 1]} : vector<2x384xf32> to vector<2x128xf32>
    %142 = vector.extract_strided_slice %140 {offsets = [0, 128], sizes = [2, 128], strides = [1, 1]} : vector<2x384xf32> to vector<2x128xf32>
    %143 = vector.extract_strided_slice %140 {offsets = [0, 256], sizes = [2, 128], strides = [1, 1]} : vector<2x384xf32> to vector<2x128xf32>
    %144 = vector.extract_strided_slice %132 {offsets = [0, 384], sizes = [2, 128], strides = [1, 1]} : vector<2x512xf32> to vector<2x128xf32>
    %145 = math.tanh %144 : vector<2x128xf32>
    %146 = arith.mulf %142, %118 : vector<2x128xf32>
    %147 = arith.mulf %141, %145 : vector<2x128xf32>
    %148 = arith.addf %146, %147 : vector<2x128xf32>
    %149 = math.tanh %148 : vector<2x128xf32>
    %150 = arith.mulf %143, %149 : vector<2x128xf32>
    %151 = arith.truncf %150 : vector<2x128xf32> to vector<2x128xbf16>
    %152 = arith.index_cast %c4_i32 : i32 to index
    %c0_44 = arith.constant 0 : index
    %c0_45 = arith.constant 0 : index
    %153 = vector.load %arg6[%152, %c0_44, %c0_45] : memref<8x2x128xbf16, #tpu.memory_space<vmem>>, vector<1x2x128xbf16>
    %154 = vector.shape_cast %153 : vector<1x2x128xbf16> to vector<2x128xbf16>
    %155 = vector.shape_cast %151 : vector<2x128xbf16> to vector<1x2x128xbf16>
    tpu.vector_store %arg6[%152, %c0_44, %c0_45], %155 {strides = array<i32>} : memref<8x2x128xbf16, #tpu.memory_space<vmem>>, vector<1x2x128xbf16>,
    %c5_i32 = arith.constant 5 : i32
    %156 = arith.index_cast %c5_i32 : i32 to index
    %c0_46 = arith.constant 0 : index
    %c0_47 = arith.constant 0 : index
    %157 = vector.load %arg2[%156, %c0_46, %c0_47] : memref<8x2x512xbf16, #tpu.memory_space<vmem>>, vector<1x2x512xbf16>
    %158 = vector.shape_cast %157 : vector<1x2x512xbf16> to vector<2x512xbf16>
    %159 = arith.extf %158 : vector<2x512xbf16> to vector<2x512xf32>
    %160 = arith.truncf %150 : vector<2x128xf32> to vector<2x128xbf16>
    %cst_48 = arith.constant dense<0.000000e+00> : vector<2x512xf32>
    %161 = tpu.matmul %160, %3, %cst_48 {dimension_numbers = #tpu.dot_dimension_numbers<[1], [0], [0], [1], [0, 0, 1, 1], [], []>} : vector<2x128xbf16>, vector<128x512xbf16>, vector<2x512xf32> -> vector<2x512xf32>
    %162 = arith.addf %159, %161 : vector<2x512xf32>
    %163 = vector.extract_strided_slice %162 {offsets = [0, 0], sizes = [2, 384], strides = [1, 1]} : vector<2x512xf32> to vector<2x384xf32>
    %cst_49 = arith.constant 5.000000e-01 : f32
    %164 = vector.broadcast %cst_49 : f32 to vector<2x384xf32>
    %165 = arith.mulf %164, %163 : vector<2x384xf32>
    %166 = math.tanh %165 : vector<2x384xf32>
    %cst_50 = arith.constant 1.000000e+00 : f32
    %167 = vector.broadcast %cst_50 : f32 to vector<2x384xf32>
    %168 = arith.addf %166, %167 : vector<2x384xf32>
    %cst_51 = arith.constant 5.000000e-01 : f32
    %169 = vector.broadcast %cst_51 : f32 to vector<2x384xf32>
    %170 = arith.mulf %169, %168 : vector<2x384xf32>
    %171 = vector.extract_strided_slice %170 {offsets = [0, 0], sizes = [2, 128], strides = [1, 1]} : vector<2x384xf32> to vector<2x128xf32>
    %172 = vector.extract_strided_slice %170 {offsets = [0, 128], sizes = [2, 128], strides = [1, 1]} : vector<2x384xf32> to vector<2x128xf32>
    %173 = vector.extract_strided_slice %170 {offsets = [0, 256], sizes = [2, 128], strides = [1, 1]} : vector<2x384xf32> to vector<2x128xf32>
    %174 = vector.extract_strided_slice %162 {offsets = [0, 384], sizes = [2, 128], strides = [1, 1]} : vector<2x512xf32> to vector<2x128xf32>
    %175 = math.tanh %174 : vector<2x128xf32>
    %176 = arith.mulf %172, %148 : vector<2x128xf32>
    %177 = arith.mulf %171, %175 : vector<2x128xf32>
    %178 = arith.addf %176, %177 : vector<2x128xf32>
    %179 = math.tanh %178 : vector<2x128xf32>
    %180 = arith.mulf %173, %179 : vector<2x128xf32>
    %181 = arith.truncf %180 : vector<2x128xf32> to vector<2x128xbf16>
    %182 = arith.index_cast %c5_i32 : i32 to index
    %c0_52 = arith.constant 0 : index
    %c0_53 = arith.constant 0 : index
    %183 = vector.load %arg6[%182, %c0_52, %c0_53] : memref<8x2x128xbf16, #tpu.memory_space<vmem>>, vector<1x2x128xbf16>
    %184 = vector.shape_cast %183 : vector<1x2x128xbf16> to vector<2x128xbf16>
    %185 = vector.shape_cast %181 : vector<2x128xbf16> to vector<1x2x128xbf16>
    tpu.vector_store %arg6[%182, %c0_52, %c0_53], %185 {strides = array<i32>} : memref<8x2x128xbf16, #tpu.memory_space<vmem>>, vector<1x2x128xbf16>,
    %c6_i32 = arith.constant 6 : i32
    %186 = arith.index_cast %c6_i32 : i32 to index
    %c0_54 = arith.constant 0 : index
    %c0_55 = arith.constant 0 : index
    %187 = vector.load %arg2[%186, %c0_54, %c0_55] : memref<8x2x512xbf16, #tpu.memory_space<vmem>>, vector<1x2x512xbf16>
    %188 = vector.shape_cast %187 : vector<1x2x512xbf16> to vector<2x512xbf16>
    %189 = arith.extf %188 : vector<2x512xbf16> to vector<2x512xf32>
    %190 = arith.truncf %180 : vector<2x128xf32> to vector<2x128xbf16>
    %cst_56 = arith.constant dense<0.000000e+00> : vector<2x512xf32>
    %191 = tpu.matmul %190, %3, %cst_56 {dimension_numbers = #tpu.dot_dimension_numbers<[1], [0], [0], [1], [0, 0, 1, 1], [], []>} : vector<2x128xbf16>, vector<128x512xbf16>, vector<2x512xf32> -> vector<2x512xf32>
    %192 = arith.addf %189, %191 : vector<2x512xf32>
    %193 = vector.extract_strided_slice %192 {offsets = [0, 0], sizes = [2, 384], strides = [1, 1]} : vector<2x512xf32> to vector<2x384xf32>
    %cst_57 = arith.constant 5.000000e-01 : f32
    %194 = vector.broadcast %cst_57 : f32 to vector<2x384xf32>
    %195 = arith.mulf %194, %193 : vector<2x384xf32>
    %196 = math.tanh %195 : vector<2x384xf32>
    %cst_58 = arith.constant 1.000000e+00 : f32
    %197 = vector.broadcast %cst_58 : f32 to vector<2x384xf32>
    %198 = arith.addf %196, %197 : vector<2x384xf32>
    %cst_59 = arith.constant 5.000000e-01 : f32
    %199 = vector.broadcast %cst_59 : f32 to vector<2x384xf32>
    %200 = arith.mulf %199, %198 : vector<2x384xf32>
    %201 = vector.extract_strided_slice %200 {offsets = [0, 0], sizes = [2, 128], strides = [1, 1]} : vector<2x384xf32> to vector<2x128xf32>
    %202 = vector.extract_strided_slice %200 {offsets = [0, 128], sizes = [2, 128], strides = [1, 1]} : vector<2x384xf32> to vector<2x128xf32>
    %203 = vector.extract_strided_slice %200 {offsets = [0, 256], sizes = [2, 128], strides = [1, 1]} : vector<2x384xf32> to vector<2x128xf32>
    %204 = vector.extract_strided_slice %192 {offsets = [0, 384], sizes = [2, 128], strides = [1, 1]} : vector<2x512xf32> to vector<2x128xf32>
    %205 = math.tanh %204 : vector<2x128xf32>
    %206 = arith.mulf %202, %178 : vector<2x128xf32>
    %207 = arith.mulf %201, %205 : vector<2x128xf32>
    %208 = arith.addf %206, %207 : vector<2x128xf32>
    %209 = math.tanh %208 : vector<2x128xf32>
    %210 = arith.mulf %203, %209 : vector<2x128xf32>
    %211 = arith.truncf %210 : vector<2x128xf32> to vector<2x128xbf16>
    %212 = arith.index_cast %c6_i32 : i32 to index
    %c0_60 = arith.constant 0 : index
    %c0_61 = arith.constant 0 : index
    %213 = vector.load %arg6[%212, %c0_60, %c0_61] : memref<8x2x128xbf16, #tpu.memory_space<vmem>>, vector<1x2x128xbf16>
    %214 = vector.shape_cast %213 : vector<1x2x128xbf16> to vector<2x128xbf16>
    %215 = vector.shape_cast %211 : vector<2x128xbf16> to vector<1x2x128xbf16>
    tpu.vector_store %arg6[%212, %c0_60, %c0_61], %215 {strides = array<i32>} : memref<8x2x128xbf16, #tpu.memory_space<vmem>>, vector<1x2x128xbf16>,
    %c7_i32 = arith.constant 7 : i32
    %216 = arith.index_cast %c7_i32 : i32 to index
    %c0_62 = arith.constant 0 : index
    %c0_63 = arith.constant 0 : index
    %217 = vector.load %arg2[%216, %c0_62, %c0_63] : memref<8x2x512xbf16, #tpu.memory_space<vmem>>, vector<1x2x512xbf16>
    %218 = vector.shape_cast %217 : vector<1x2x512xbf16> to vector<2x512xbf16>
    %219 = arith.extf %218 : vector<2x512xbf16> to vector<2x512xf32>
    %220 = arith.truncf %210 : vector<2x128xf32> to vector<2x128xbf16>
    %cst_64 = arith.constant dense<0.000000e+00> : vector<2x512xf32>
    %221 = tpu.matmul %220, %3, %cst_64 {dimension_numbers = #tpu.dot_dimension_numbers<[1], [0], [0], [1], [0, 0, 1, 1], [], []>} : vector<2x128xbf16>, vector<128x512xbf16>, vector<2x512xf32> -> vector<2x512xf32>
    %222 = arith.addf %219, %221 : vector<2x512xf32>
    %223 = vector.extract_strided_slice %222 {offsets = [0, 0], sizes = [2, 384], strides = [1, 1]} : vector<2x512xf32> to vector<2x384xf32>
    %cst_65 = arith.constant 5.000000e-01 : f32
    %224 = vector.broadcast %cst_65 : f32 to vector<2x384xf32>
    %225 = arith.mulf %224, %223 : vector<2x384xf32>
    %226 = math.tanh %225 : vector<2x384xf32>
    %cst_66 = arith.constant 1.000000e+00 : f32
    %227 = vector.broadcast %cst_66 : f32 to vector<2x384xf32>
    %228 = arith.addf %226, %227 : vector<2x384xf32>
    %cst_67 = arith.constant 5.000000e-01 : f32
    %229 = vector.broadcast %cst_67 : f32 to vector<2x384xf32>
    %230 = arith.mulf %229, %228 : vector<2x384xf32>
    %231 = vector.extract_strided_slice %230 {offsets = [0, 0], sizes = [2, 128], strides = [1, 1]} : vector<2x384xf32> to vector<2x128xf32>
    %232 = vector.extract_strided_slice %230 {offsets = [0, 128], sizes = [2, 128], strides = [1, 1]} : vector<2x384xf32> to vector<2x128xf32>
    %233 = vector.extract_strided_slice %230 {offsets = [0, 256], sizes = [2, 128], strides = [1, 1]} : vector<2x384xf32> to vector<2x128xf32>
    %234 = vector.extract_strided_slice %222 {offsets = [0, 384], sizes = [2, 128], strides = [1, 1]} : vector<2x512xf32> to vector<2x128xf32>
    %235 = math.tanh %234 : vector<2x128xf32>
    %236 = arith.mulf %232, %208 : vector<2x128xf32>
    %237 = arith.mulf %231, %235 : vector<2x128xf32>
    %238 = arith.addf %236, %237 : vector<2x128xf32>
    %239 = math.tanh %238 : vector<2x128xf32>
    %240 = arith.mulf %233, %239 : vector<2x128xf32>
    %241 = arith.truncf %240 : vector<2x128xf32> to vector<2x128xbf16>
    %242 = arith.index_cast %c7_i32 : i32 to index
    %c0_68 = arith.constant 0 : index
    %c0_69 = arith.constant 0 : index
    %243 = vector.load %arg6[%242, %c0_68, %c0_69] : memref<8x2x128xbf16, #tpu.memory_space<vmem>>, vector<1x2x128xbf16>
    %244 = vector.shape_cast %243 : vector<1x2x128xbf16> to vector<2x128xbf16>
    %245 = vector.shape_cast %241 : vector<2x128xbf16> to vector<1x2x128xbf16>
    tpu.vector_store %arg6[%242, %c0_68, %c0_69], %245 {strides = array<i32>} : memref<8x2x128xbf16, #tpu.memory_space<vmem>>, vector<1x2x128xbf16>,
    %c8_i32 = arith.constant 8 : i32
    %c0_70 = arith.constant 0 : index
    %c0_71 = arith.constant 0 : index
    %246 = vector.load %arg9[%c0_70, %c0_71] : memref<2x128xf32, #tpu.memory_space<vmem>>, vector<2x128xf32>
    tpu.vector_store %arg9[%c0_70, %c0_71], %240 {strides = array<i32>} : memref<2x128xf32, #tpu.memory_space<vmem>>, vector<2x128xf32>,
    %c0_72 = arith.constant 0 : index
    %c0_73 = arith.constant 0 : index
    %247 = vector.load %arg10[%c0_72, %c0_73] : memref<2x128xf32, #tpu.memory_space<vmem>>, vector<2x128xf32>
    tpu.vector_store %arg10[%c0_72, %c0_73], %238 {strides = array<i32>} : memref<2x128xf32, #tpu.memory_space<vmem>>, vector<2x128xf32>,
    %c0_74 = arith.constant 0 : index
    %c0_75 = arith.constant 0 : index
    %248 = vector.load %arg7[%c0_74, %c0_75] : memref<2x128xf32, #tpu.memory_space<vmem>>, vector<2x128xf32>
    tpu.vector_store %arg7[%c0_74, %c0_75], %240 {strides = array<i32>} : memref<2x128xf32, #tpu.memory_space<vmem>>, vector<2x128xf32>,
    %c0_76 = arith.constant 0 : index
    %c0_77 = arith.constant 0 : index
    %249 = vector.load %arg8[%c0_76, %c0_77] : memref<2x128xf32, #tpu.memory_space<vmem>>, vector<2x128xf32>
    tpu.vector_store %arg8[%c0_76, %c0_77], %238 {strides = array<i32>} : memref<2x128xf32, #tpu.memory_space<vmem>>, vector<2x128xf32>,
    return
  }
  func.func @transform_0(%arg0: i32, %arg1: i32) -> (i32, i32, i32) {
    %c0_i32 = arith.constant 0 : i32
    %c0_i32_0 = arith.constant 0 : i32
    return %arg1, %arg0, %c0_i32 : i32, i32, i32
  }
  func.func @transform_1(%arg0: i32, %arg1: i32) -> (i32, i32) {
    %c0_i32 = arith.constant 0 : i32
    %c0_i32_0 = arith.constant 0 : i32
    return %arg0, %c0_i32 : i32, i32
  }
  func.func @transform_2(%arg0: i32, %arg1: i32) -> (i32, i32) {
    %c0_i32 = arith.constant 0 : i32
    %c0_i32_0 = arith.constant 0 : i32
    return %arg0, %c0_i32 : i32, i32
  }
  func.func @transform_3(%arg0: i32, %arg1: i32) -> (i32, i32) {
    %c0_i32 = arith.constant 0 : i32
    %c0_i32_0 = arith.constant 0 : i32
    %c0_i32_1 = arith.constant 0 : i32
    return %c0_i32, %c0_i32_0 : i32, i32
  }
  func.func @transform_4(%arg0: i32, %arg1: i32) -> (i32, i32, i32) {
    %c0_i32 = arith.constant 0 : i32
    %c0_i32_0 = arith.constant 0 : i32
    return %arg1, %arg0, %c0_i32 : i32, i32, i32
  }
  func.func @transform_5(%arg0: i32, %arg1: i32) -> (i32, i32) {
    %c0_i32 = arith.constant 0 : i32
    %c0_i32_0 = arith.constant 0 : i32
    return %arg0, %c0_i32 : i32, i32
  }
  func.func @transform_6(%arg0: i32, %arg1: i32) -> (i32, i32) {
    %c0_i32 = arith.constant 0 : i32
    %c0_i32_0 = arith.constant 0 : i32
    return %arg0, %c0_i32 : i32, i32
  }
}

module attributes {stable_mosaic.version = 11 : i64} {
  func.func @_lstm_recurrence_kernel(%arg0: i32, %arg1: i32, %arg2: memref<8x2x512xbf16, #tpu.memory_space<vmem>>, %arg3: memref<2x128xf32, #tpu.memory_space<vmem>>, %arg4: memref<2x128xf32, #tpu.memory_space<vmem>>, %arg5: memref<128x512xbf16, #tpu.memory_space<vmem>>, %arg6: memref<8x2x128xbf16, #tpu.memory_space<vmem>>, %arg7: memref<2x128xf32, #tpu.memory_space<vmem>>, %arg8: memref<2x128xf32, #tpu.memory_space<vmem>>, %arg9: memref<2x128xf32, #tpu.memory_space<vmem>>, %arg10: memref<2x128xf32, #tpu.memory_space<vmem>>) attributes {dimension_semantics = [#tpu.dimension_semantics<parallel>, #tpu.dimension_semantics<arbitrary>], iteration_bounds = array<i64: 1, 1>, scalar_prefetch = 0 : i64, scratch_operands = 2 : i64, tpu.core_type = #tpu.core_type<tc>, window_params = [{transform_indices = @transform_0, window_bounds = array<i64: 8, 2, 512>}, {transform_indices = @transform_1, window_bounds = array<i64: 2, 128>}, {transform_indices = @transform_2, window_bounds = array<i64: 2, 128>}, {pipeline_mode = #tpu.pipeline_mode<synchronous>, transform_indices = @transform_3, window_bounds = array<i64: 128, 512>}, {transform_indices = @transform_4, window_bounds = array<i64: 8, 2, 128>}, {transform_indices = @transform_5, window_bounds = array<i64: 2, 128>}, {transform_indices = @transform_6, window_bounds = array<i64: 2, 128>}]} {
    %c0_i32 = arith.constant 0 : i32
    %0 = arith.cmpi eq, %arg1, %c0_i32 : i32
    %1 = arith.extui %0 : i1 to i32
    %c0_i32_0 = arith.constant 0 : i32
    %2 = arith.cmpi ne, %1, %c0_i32_0 : i32
    scf.if %2 {
      %c0_78 = arith.constant 0 : index
      %c0_79 = arith.constant 0 : index
      %250 = vector.load %arg3[%c0_78, %c0_79] : memref<2x128xf32, #tpu.memory_space<vmem>>, vector<2x128xf32>
      %c0_80 = arith.constant 0 : index
      %c0_81 = arith.constant 0 : index
      %251 = vector.load %arg9[%c0_80, %c0_81] : memref<2x128xf32, #tpu.memory_space<vmem>>, vector<2x128xf32>
      tpu.vector_store %arg9[%c0_80, %c0_81], %250 {strides = array<i32>} : memref<2x128xf32, #tpu.memory_space<vmem>>, vector<2x128xf32>,
      %c0_82 = arith.constant 0 : index
      %c0_83 = arith.constant 0 : index
      %252 = vector.load %arg4[%c0_82, %c0_83] : memref<2x128xf32, #tpu.memory_space<vmem>>, vector<2x128xf32>
      %c0_84 = arith.constant 0 : index
      %c0_85 = arith.constant 0 : index
      %253 = vector.load %arg10[%c0_84, %c0_85] : memref<2x128xf32, #tpu.memory_space<vmem>>, vector<2x128xf32>
      tpu.vector_store %arg10[%c0_84, %c0_85], %252 {strides = array<i32>} : memref<2x128xf32, #tpu.memory_space<vmem>>, vector<2x128xf32>,
    } else {
    }
    %c0 = arith.constant 0 : index
    %c0_1 = arith.constant 0 : index
    %3 = vector.load %arg5[%c0, %c0_1] : memref<128x512xbf16, #tpu.memory_space<vmem>>, vector<128x512xbf16>
    %c0_2 = arith.constant 0 : index
    %c0_3 = arith.constant 0 : index
    %4 = vector.load %arg9[%c0_2, %c0_3] : memref<2x128xf32, #tpu.memory_space<vmem>>, vector<2x128xf32>
    %c0_4 = arith.constant 0 : index
    %c0_5 = arith.constant 0 : index
    %5 = vector.load %arg10[%c0_4, %c0_5] : memref<2x128xf32, #tpu.memory_space<vmem>>, vector<2x128xf32>
    %c0_i32_6 = arith.constant 0 : i32
    %6 = arith.index_cast %c0_i32_6 : i32 to index
    %c0_7 = arith.constant 0 : index
    %c0_8 = arith.constant 0 : index
    %7 = vector.load %arg2[%6, %c0_7, %c0_8] : memref<8x2x512xbf16, #tpu.memory_space<vmem>>, vector<1x2x512xbf16>
    %8 = vector.shape_cast %7 : vector<1x2x512xbf16> to vector<2x512xbf16>
    %9 = arith.extf %8 : vector<2x512xbf16> to vector<2x512xf32>
    %10 = arith.truncf %4 : vector<2x128xf32> to vector<2x128xbf16>
    %cst = arith.constant dense<0.000000e+00> : vector<2x512xf32>
    %11 = tpu.matmul %10, %3, %cst {dimension_numbers = #tpu.dot_dimension_numbers<[1], [0], [0], [1], [0, 0, 1, 1], [], []>} : vector<2x128xbf16>, vector<128x512xbf16>, vector<2x512xf32> -> vector<2x512xf32>
    %12 = arith.addf %9, %11 : vector<2x512xf32>
    %13 = vector.extract_strided_slice %12 {offsets = [0, 0], sizes = [2, 384], strides = [1, 1]} : vector<2x512xf32> to vector<2x384xf32>
    %cst_9 = arith.constant 5.000000e-01 : f32
    %14 = vector.broadcast %cst_9 : f32 to vector<2x384xf32>
    %15 = arith.mulf %14, %13 : vector<2x384xf32>
    %16 = math.tanh %15 : vector<2x384xf32>
    %cst_10 = arith.constant 1.000000e+00 : f32
    %17 = vector.broadcast %cst_10 : f32 to vector<2x384xf32>
    %18 = arith.addf %16, %17 : vector<2x384xf32>
    %cst_11 = arith.constant 5.000000e-01 : f32
    %19 = vector.broadcast %cst_11 : f32 to vector<2x384xf32>
    %20 = arith.mulf %19, %18 : vector<2x384xf32>
    %21 = vector.extract_strided_slice %20 {offsets = [0, 0], sizes = [2, 128], strides = [1, 1]} : vector<2x384xf32> to vector<2x128xf32>
    %22 = vector.extract_strided_slice %20 {offsets = [0, 128], sizes = [2, 128], strides = [1, 1]} : vector<2x384xf32> to vector<2x128xf32>
    %23 = vector.extract_strided_slice %20 {offsets = [0, 256], sizes = [2, 128], strides = [1, 1]} : vector<2x384xf32> to vector<2x128xf32>
    %24 = vector.extract_strided_slice %12 {offsets = [0, 384], sizes = [2, 128], strides = [1, 1]} : vector<2x512xf32> to vector<2x128xf32>
    %25 = math.tanh %24 : vector<2x128xf32>
    %26 = arith.mulf %22, %5 : vector<2x128xf32>
    %27 = arith.mulf %21, %25 : vector<2x128xf32>
    %28 = arith.addf %26, %27 : vector<2x128xf32>
    %29 = math.tanh %28 : vector<2x128xf32>
    %30 = arith.mulf %23, %29 : vector<2x128xf32>
    %31 = arith.truncf %30 : vector<2x128xf32> to vector<2x128xbf16>
    %32 = arith.index_cast %c0_i32_6 : i32 to index
    %c0_12 = arith.constant 0 : index
    %c0_13 = arith.constant 0 : index
    %33 = vector.load %arg6[%32, %c0_12, %c0_13] : memref<8x2x128xbf16, #tpu.memory_space<vmem>>, vector<1x2x128xbf16>
    %34 = vector.shape_cast %33 : vector<1x2x128xbf16> to vector<2x128xbf16>
    %35 = vector.shape_cast %31 : vector<2x128xbf16> to vector<1x2x128xbf16>
    tpu.vector_store %arg6[%32, %c0_12, %c0_13], %35 {strides = array<i32>} : memref<8x2x128xbf16, #tpu.memory_space<vmem>>, vector<1x2x128xbf16>,
    %c1_i32 = arith.constant 1 : i32
    %36 = arith.index_cast %c1_i32 : i32 to index
    %c0_14 = arith.constant 0 : index
    %c0_15 = arith.constant 0 : index
    %37 = vector.load %arg2[%36, %c0_14, %c0_15] : memref<8x2x512xbf16, #tpu.memory_space<vmem>>, vector<1x2x512xbf16>
    %38 = vector.shape_cast %37 : vector<1x2x512xbf16> to vector<2x512xbf16>
    %39 = arith.extf %38 : vector<2x512xbf16> to vector<2x512xf32>
    %40 = arith.truncf %30 : vector<2x128xf32> to vector<2x128xbf16>
    %cst_16 = arith.constant dense<0.000000e+00> : vector<2x512xf32>
    %41 = tpu.matmul %40, %3, %cst_16 {dimension_numbers = #tpu.dot_dimension_numbers<[1], [0], [0], [1], [0, 0, 1, 1], [], []>} : vector<2x128xbf16>, vector<128x512xbf16>, vector<2x512xf32> -> vector<2x512xf32>
    %42 = arith.addf %39, %41 : vector<2x512xf32>
    %43 = vector.extract_strided_slice %42 {offsets = [0, 0], sizes = [2, 384], strides = [1, 1]} : vector<2x512xf32> to vector<2x384xf32>
    %cst_17 = arith.constant 5.000000e-01 : f32
    %44 = vector.broadcast %cst_17 : f32 to vector<2x384xf32>
    %45 = arith.mulf %44, %43 : vector<2x384xf32>
    %46 = math.tanh %45 : vector<2x384xf32>
    %cst_18 = arith.constant 1.000000e+00 : f32
    %47 = vector.broadcast %cst_18 : f32 to vector<2x384xf32>
    %48 = arith.addf %46, %47 : vector<2x384xf32>
    %cst_19 = arith.constant 5.000000e-01 : f32
    %49 = vector.broadcast %cst_19 : f32 to vector<2x384xf32>
    %50 = arith.mulf %49, %48 : vector<2x384xf32>
    %51 = vector.extract_strided_slice %50 {offsets = [0, 0], sizes = [2, 128], strides = [1, 1]} : vector<2x384xf32> to vector<2x128xf32>
    %52 = vector.extract_strided_slice %50 {offsets = [0, 128], sizes = [2, 128], strides = [1, 1]} : vector<2x384xf32> to vector<2x128xf32>
    %53 = vector.extract_strided_slice %50 {offsets = [0, 256], sizes = [2, 128], strides = [1, 1]} : vector<2x384xf32> to vector<2x128xf32>
    %54 = vector.extract_strided_slice %42 {offsets = [0, 384], sizes = [2, 128], strides = [1, 1]} : vector<2x512xf32> to vector<2x128xf32>
    %55 = math.tanh %54 : vector<2x128xf32>
    %56 = arith.mulf %52, %28 : vector<2x128xf32>
    %57 = arith.mulf %51, %55 : vector<2x128xf32>
    %58 = arith.addf %56, %57 : vector<2x128xf32>
    %59 = math.tanh %58 : vector<2x128xf32>
    %60 = arith.mulf %53, %59 : vector<2x128xf32>
    %61 = arith.truncf %60 : vector<2x128xf32> to vector<2x128xbf16>
    %62 = arith.index_cast %c1_i32 : i32 to index
    %c0_20 = arith.constant 0 : index
    %c0_21 = arith.constant 0 : index
    %63 = vector.load %arg6[%62, %c0_20, %c0_21] : memref<8x2x128xbf16, #tpu.memory_space<vmem>>, vector<1x2x128xbf16>
    %64 = vector.shape_cast %63 : vector<1x2x128xbf16> to vector<2x128xbf16>
    %65 = vector.shape_cast %61 : vector<2x128xbf16> to vector<1x2x128xbf16>
    tpu.vector_store %arg6[%62, %c0_20, %c0_21], %65 {strides = array<i32>} : memref<8x2x128xbf16, #tpu.memory_space<vmem>>, vector<1x2x128xbf16>,
    %c2_i32 = arith.constant 2 : i32
    %66 = arith.index_cast %c2_i32 : i32 to index
    %c0_22 = arith.constant 0 : index
    %c0_23 = arith.constant 0 : index
    %67 = vector.load %arg2[%66, %c0_22, %c0_23] : memref<8x2x512xbf16, #tpu.memory_space<vmem>>, vector<1x2x512xbf16>
    %68 = vector.shape_cast %67 : vector<1x2x512xbf16> to vector<2x512xbf16>
    %69 = arith.extf %68 : vector<2x512xbf16> to vector<2x512xf32>
    %70 = arith.truncf %60 : vector<2x128xf32> to vector<2x128xbf16>
    %cst_24 = arith.constant dense<0.000000e+00> : vector<2x512xf32>
    %71 = tpu.matmul %70, %3, %cst_24 {dimension_numbers = #tpu.dot_dimension_numbers<[1], [0], [0], [1], [0, 0, 1, 1], [], []>} : vector<2x128xbf16>, vector<128x512xbf16>, vector<2x512xf32> -> vector<2x512xf32>
    %72 = arith.addf %69, %71 : vector<2x512xf32>
    %73 = vector.extract_strided_slice %72 {offsets = [0, 0], sizes = [2, 384], strides = [1, 1]} : vector<2x512xf32> to vector<2x384xf32>
    %cst_25 = arith.constant 5.000000e-01 : f32
    %74 = vector.broadcast %cst_25 : f32 to vector<2x384xf32>
    %75 = arith.mulf %74, %73 : vector<2x384xf32>
    %76 = math.tanh %75 : vector<2x384xf32>
    %cst_26 = arith.constant 1.000000e+00 : f32
    %77 = vector.broadcast %cst_26 : f32 to vector<2x384xf32>
    %78 = arith.addf %76, %77 : vector<2x384xf32>
    %cst_27 = arith.constant 5.000000e-01 : f32
    %79 = vector.broadcast %cst_27 : f32 to vector<2x384xf32>
    %80 = arith.mulf %79, %78 : vector<2x384xf32>
    %81 = vector.extract_strided_slice %80 {offsets = [0, 0], sizes = [2, 128], strides = [1, 1]} : vector<2x384xf32> to vector<2x128xf32>
    %82 = vector.extract_strided_slice %80 {offsets = [0, 128], sizes = [2, 128], strides = [1, 1]} : vector<2x384xf32> to vector<2x128xf32>
    %83 = vector.extract_strided_slice %80 {offsets = [0, 256], sizes = [2, 128], strides = [1, 1]} : vector<2x384xf32> to vector<2x128xf32>
    %84 = vector.extract_strided_slice %72 {offsets = [0, 384], sizes = [2, 128], strides = [1, 1]} : vector<2x512xf32> to vector<2x128xf32>
    %85 = math.tanh %84 : vector<2x128xf32>
    %86 = arith.mulf %82, %58 : vector<2x128xf32>
    %87 = arith.mulf %81, %85 : vector<2x128xf32>
    %88 = arith.addf %86, %87 : vector<2x128xf32>
    %89 = math.tanh %88 : vector<2x128xf32>
    %90 = arith.mulf %83, %89 : vector<2x128xf32>
    %91 = arith.truncf %90 : vector<2x128xf32> to vector<2x128xbf16>
    %92 = arith.index_cast %c2_i32 : i32 to index
    %c0_28 = arith.constant 0 : index
    %c0_29 = arith.constant 0 : index
    %93 = vector.load %arg6[%92, %c0_28, %c0_29] : memref<8x2x128xbf16, #tpu.memory_space<vmem>>, vector<1x2x128xbf16>
    %94 = vector.shape_cast %93 : vector<1x2x128xbf16> to vector<2x128xbf16>
    %95 = vector.shape_cast %91 : vector<2x128xbf16> to vector<1x2x128xbf16>
    tpu.vector_store %arg6[%92, %c0_28, %c0_29], %95 {strides = array<i32>} : memref<8x2x128xbf16, #tpu.memory_space<vmem>>, vector<1x2x128xbf16>,
    %c3_i32 = arith.constant 3 : i32
    %96 = arith.index_cast %c3_i32 : i32 to index
    %c0_30 = arith.constant 0 : index
    %c0_31 = arith.constant 0 : index
    %97 = vector.load %arg2[%96, %c0_30, %c0_31] : memref<8x2x512xbf16, #tpu.memory_space<vmem>>, vector<1x2x512xbf16>
    %98 = vector.shape_cast %97 : vector<1x2x512xbf16> to vector<2x512xbf16>
    %99 = arith.extf %98 : vector<2x512xbf16> to vector<2x512xf32>
    %100 = arith.truncf %90 : vector<2x128xf32> to vector<2x128xbf16>
    %cst_32 = arith.constant dense<0.000000e+00> : vector<2x512xf32>
    %101 = tpu.matmul %100, %3, %cst_32 {dimension_numbers = #tpu.dot_dimension_numbers<[1], [0], [0], [1], [0, 0, 1, 1], [], []>} : vector<2x128xbf16>, vector<128x512xbf16>, vector<2x512xf32> -> vector<2x512xf32>
    %102 = arith.addf %99, %101 : vector<2x512xf32>
    %103 = vector.extract_strided_slice %102 {offsets = [0, 0], sizes = [2, 384], strides = [1, 1]} : vector<2x512xf32> to vector<2x384xf32>
    %cst_33 = arith.constant 5.000000e-01 : f32
    %104 = vector.broadcast %cst_33 : f32 to vector<2x384xf32>
    %105 = arith.mulf %104, %103 : vector<2x384xf32>
    %106 = math.tanh %105 : vector<2x384xf32>
    %cst_34 = arith.constant 1.000000e+00 : f32
    %107 = vector.broadcast %cst_34 : f32 to vector<2x384xf32>
    %108 = arith.addf %106, %107 : vector<2x384xf32>
    %cst_35 = arith.constant 5.000000e-01 : f32
    %109 = vector.broadcast %cst_35 : f32 to vector<2x384xf32>
    %110 = arith.mulf %109, %108 : vector<2x384xf32>
    %111 = vector.extract_strided_slice %110 {offsets = [0, 0], sizes = [2, 128], strides = [1, 1]} : vector<2x384xf32> to vector<2x128xf32>
    %112 = vector.extract_strided_slice %110 {offsets = [0, 128], sizes = [2, 128], strides = [1, 1]} : vector<2x384xf32> to vector<2x128xf32>
    %113 = vector.extract_strided_slice %110 {offsets = [0, 256], sizes = [2, 128], strides = [1, 1]} : vector<2x384xf32> to vector<2x128xf32>
    %114 = vector.extract_strided_slice %102 {offsets = [0, 384], sizes = [2, 128], strides = [1, 1]} : vector<2x512xf32> to vector<2x128xf32>
    %115 = math.tanh %114 : vector<2x128xf32>
    %116 = arith.mulf %112, %88 : vector<2x128xf32>
    %117 = arith.mulf %111, %115 : vector<2x128xf32>
    %118 = arith.addf %116, %117 : vector<2x128xf32>
    %119 = math.tanh %118 : vector<2x128xf32>
    %120 = arith.mulf %113, %119 : vector<2x128xf32>
    %121 = arith.truncf %120 : vector<2x128xf32> to vector<2x128xbf16>
    %122 = arith.index_cast %c3_i32 : i32 to index
    %c0_36 = arith.constant 0 : index
    %c0_37 = arith.constant 0 : index
    %123 = vector.load %arg6[%122, %c0_36, %c0_37] : memref<8x2x128xbf16, #tpu.memory_space<vmem>>, vector<1x2x128xbf16>
    %124 = vector.shape_cast %123 : vector<1x2x128xbf16> to vector<2x128xbf16>
    %125 = vector.shape_cast %121 : vector<2x128xbf16> to vector<1x2x128xbf16>
    tpu.vector_store %arg6[%122, %c0_36, %c0_37], %125 {strides = array<i32>} : memref<8x2x128xbf16, #tpu.memory_space<vmem>>, vector<1x2x128xbf16>,
    %c4_i32 = arith.constant 4 : i32
    %126 = arith.index_cast %c4_i32 : i32 to index
    %c0_38 = arith.constant 0 : index
    %c0_39 = arith.constant 0 : index
    %127 = vector.load %arg2[%126, %c0_38, %c0_39] : memref<8x2x512xbf16, #tpu.memory_space<vmem>>, vector<1x2x512xbf16>
    %128 = vector.shape_cast %127 : vector<1x2x512xbf16> to vector<2x512xbf16>
    %129 = arith.extf %128 : vector<2x512xbf16> to vector<2x512xf32>
    %130 = arith.truncf %120 : vector<2x128xf32> to vector<2x128xbf16>
    %cst_40 = arith.constant dense<0.000000e+00> : vector<2x512xf32>
    %131 = tpu.matmul %130, %3, %cst_40 {dimension_numbers = #tpu.dot_dimension_numbers<[1], [0], [0], [1], [0, 0, 1, 1], [], []>} : vector<2x128xbf16>, vector<128x512xbf16>, vector<2x512xf32> -> vector<2x512xf32>
    %132 = arith.addf %129, %131 : vector<2x512xf32>
    %133 = vector.extract_strided_slice %132 {offsets = [0, 0], sizes = [2, 384], strides = [1, 1]} : vector<2x512xf32> to vector<2x384xf32>
    %cst_41 = arith.constant 5.000000e-01 : f32
    %134 = vector.broadcast %cst_41 : f32 to vector<2x384xf32>
    %135 = arith.mulf %134, %133 : vector<2x384xf32>
    %136 = math.tanh %135 : vector<2x384xf32>
    %cst_42 = arith.constant 1.000000e+00 : f32
    %137 = vector.broadcast %cst_42 : f32 to vector<2x384xf32>
    %138 = arith.addf %136, %137 : vector<2x384xf32>
    %cst_43 = arith.constant 5.000000e-01 : f32
    %139 = vector.broadcast %cst_43 : f32 to vector<2x384xf32>
    %140 = arith.mulf %139, %138 : vector<2x384xf32>
    %141 = vector.extract_strided_slice %140 {offsets = [0, 0], sizes = [2, 128], strides = [1, 1]} : vector<2x384xf32> to vector<2x128xf32>
    %142 = vector.extract_strided_slice %140 {offsets = [0, 128], sizes = [2, 128], strides = [1, 1]} : vector<2x384xf32> to vector<2x128xf32>
    %143 = vector.extract_strided_slice %140 {offsets = [0, 256], sizes = [2, 128], strides = [1, 1]} : vector<2x384xf32> to vector<2x128xf32>
    %144 = vector.extract_strided_slice %132 {offsets = [0, 384], sizes = [2, 128], strides = [1, 1]} : vector<2x512xf32> to vector<2x128xf32>
    %145 = math.tanh %144 : vector<2x128xf32>
    %146 = arith.mulf %142, %118 : vector<2x128xf32>
    %147 = arith.mulf %141, %145 : vector<2x128xf32>
    %148 = arith.addf %146, %147 : vector<2x128xf32>
    %149 = math.tanh %148 : vector<2x128xf32>
    %150 = arith.mulf %143, %149 : vector<2x128xf32>
    %151 = arith.truncf %150 : vector<2x128xf32> to vector<2x128xbf16>
    %152 = arith.index_cast %c4_i32 : i32 to index
    %c0_44 = arith.constant 0 : index
    %c0_45 = arith.constant 0 : index
    %153 = vector.load %arg6[%152, %c0_44, %c0_45] : memref<8x2x128xbf16, #tpu.memory_space<vmem>>, vector<1x2x128xbf16>
    %154 = vector.shape_cast %153 : vector<1x2x128xbf16> to vector<2x128xbf16>
    %155 = vector.shape_cast %151 : vector<2x128xbf16> to vector<1x2x128xbf16>
    tpu.vector_store %arg6[%152, %c0_44, %c0_45], %155 {strides = array<i32>} : memref<8x2x128xbf16, #tpu.memory_space<vmem>>, vector<1x2x128xbf16>,
    %c5_i32 = arith.constant 5 : i32
    %156 = arith.index_cast %c5_i32 : i32 to index
    %c0_46 = arith.constant 0 : index
    %c0_47 = arith.constant 0 : index
    %157 = vector.load %arg2[%156, %c0_46, %c0_47] : memref<8x2x512xbf16, #tpu.memory_space<vmem>>, vector<1x2x512xbf16>
    %158 = vector.shape_cast %157 : vector<1x2x512xbf16> to vector<2x512xbf16>
    %159 = arith.extf %158 : vector<2x512xbf16> to vector<2x512xf32>
    %160 = arith.truncf %150 : vector<2x128xf32> to vector<2x128xbf16>
    %cst_48 = arith.constant dense<0.000000e+00> : vector<2x512xf32>
    %161 = tpu.matmul %160, %3, %cst_48 {dimension_numbers = #tpu.dot_dimension_numbers<[1], [0], [0], [1], [0, 0, 1, 1], [], []>} : vector<2x128xbf16>, vector<128x512xbf16>, vector<2x512xf32> -> vector<2x512xf32>
    %162 = arith.addf %159, %161 : vector<2x512xf32>
    %163 = vector.extract_strided_slice %162 {offsets = [0, 0], sizes = [2, 384], strides = [1, 1]} : vector<2x512xf32> to vector<2x384xf32>
    %cst_49 = arith.constant 5.000000e-01 : f32
    %164 = vector.broadcast %cst_49 : f32 to vector<2x384xf32>
    %165 = arith.mulf %164, %163 : vector<2x384xf32>
    %166 = math.tanh %165 : vector<2x384xf32>
    %cst_50 = arith.constant 1.000000e+00 : f32
    %167 = vector.broadcast %cst_50 : f32 to vector<2x384xf32>
    %168 = arith.addf %166, %167 : vector<2x384xf32>
    %cst_51 = arith.constant 5.000000e-01 : f32
    %169 = vector.broadcast %cst_51 : f32 to vector<2x384xf32>
    %170 = arith.mulf %169, %168 : vector<2x384xf32>
    %171 = vector.extract_strided_slice %170 {offsets = [0, 0], sizes = [2, 128], strides = [1, 1]} : vector<2x384xf32> to vector<2x128xf32>
    %172 = vector.extract_strided_slice %170 {offsets = [0, 128], sizes = [2, 128], strides = [1, 1]} : vector<2x384xf32> to vector<2x128xf32>
    %173 = vector.extract_strided_slice %170 {offsets = [0, 256], sizes = [2, 128], strides = [1, 1]} : vector<2x384xf32> to vector<2x128xf32>
    %174 = vector.extract_strided_slice %162 {offsets = [0, 384], sizes = [2, 128], strides = [1, 1]} : vector<2x512xf32> to vector<2x128xf32>
    %175 = math.tanh %174 : vector<2x128xf32>
    %176 = arith.mulf %172, %148 : vector<2x128xf32>
    %177 = arith.mulf %171, %175 : vector<2x128xf32>
    %178 = arith.addf %176, %177 : vector<2x128xf32>
    %179 = math.tanh %178 : vector<2x128xf32>
    %180 = arith.mulf %173, %179 : vector<2x128xf32>
    %181 = arith.truncf %180 : vector<2x128xf32> to vector<2x128xbf16>
    %182 = arith.index_cast %c5_i32 : i32 to index
    %c0_52 = arith.constant 0 : index
    %c0_53 = arith.constant 0 : index
    %183 = vector.load %arg6[%182, %c0_52, %c0_53] : memref<8x2x128xbf16, #tpu.memory_space<vmem>>, vector<1x2x128xbf16>
    %184 = vector.shape_cast %183 : vector<1x2x128xbf16> to vector<2x128xbf16>
    %185 = vector.shape_cast %181 : vector<2x128xbf16> to vector<1x2x128xbf16>
    tpu.vector_store %arg6[%182, %c0_52, %c0_53], %185 {strides = array<i32>} : memref<8x2x128xbf16, #tpu.memory_space<vmem>>, vector<1x2x128xbf16>,
    %c6_i32 = arith.constant 6 : i32
    %186 = arith.index_cast %c6_i32 : i32 to index
    %c0_54 = arith.constant 0 : index
    %c0_55 = arith.constant 0 : index
    %187 = vector.load %arg2[%186, %c0_54, %c0_55] : memref<8x2x512xbf16, #tpu.memory_space<vmem>>, vector<1x2x512xbf16>
    %188 = vector.shape_cast %187 : vector<1x2x512xbf16> to vector<2x512xbf16>
    %189 = arith.extf %188 : vector<2x512xbf16> to vector<2x512xf32>
    %190 = arith.truncf %180 : vector<2x128xf32> to vector<2x128xbf16>
    %cst_56 = arith.constant dense<0.000000e+00> : vector<2x512xf32>
    %191 = tpu.matmul %190, %3, %cst_56 {dimension_numbers = #tpu.dot_dimension_numbers<[1], [0], [0], [1], [0, 0, 1, 1], [], []>} : vector<2x128xbf16>, vector<128x512xbf16>, vector<2x512xf32> -> vector<2x512xf32>
    %192 = arith.addf %189, %191 : vector<2x512xf32>
    %193 = vector.extract_strided_slice %192 {offsets = [0, 0], sizes = [2, 384], strides = [1, 1]} : vector<2x512xf32> to vector<2x384xf32>
    %cst_57 = arith.constant 5.000000e-01 : f32
    %194 = vector.broadcast %cst_57 : f32 to vector<2x384xf32>
    %195 = arith.mulf %194, %193 : vector<2x384xf32>
    %196 = math.tanh %195 : vector<2x384xf32>
    %cst_58 = arith.constant 1.000000e+00 : f32
    %197 = vector.broadcast %cst_58 : f32 to vector<2x384xf32>
    %198 = arith.addf %196, %197 : vector<2x384xf32>
    %cst_59 = arith.constant 5.000000e-01 : f32
    %199 = vector.broadcast %cst_59 : f32 to vector<2x384xf32>
    %200 = arith.mulf %199, %198 : vector<2x384xf32>
    %201 = vector.extract_strided_slice %200 {offsets = [0, 0], sizes = [2, 128], strides = [1, 1]} : vector<2x384xf32> to vector<2x128xf32>
    %202 = vector.extract_strided_slice %200 {offsets = [0, 128], sizes = [2, 128], strides = [1, 1]} : vector<2x384xf32> to vector<2x128xf32>
    %203 = vector.extract_strided_slice %200 {offsets = [0, 256], sizes = [2, 128], strides = [1, 1]} : vector<2x384xf32> to vector<2x128xf32>
    %204 = vector.extract_strided_slice %192 {offsets = [0, 384], sizes = [2, 128], strides = [1, 1]} : vector<2x512xf32> to vector<2x128xf32>
    %205 = math.tanh %204 : vector<2x128xf32>
    %206 = arith.mulf %202, %178 : vector<2x128xf32>
    %207 = arith.mulf %201, %205 : vector<2x128xf32>
    %208 = arith.addf %206, %207 : vector<2x128xf32>
    %209 = math.tanh %208 : vector<2x128xf32>
    %210 = arith.mulf %203, %209 : vector<2x128xf32>
    %211 = arith.truncf %210 : vector<2x128xf32> to vector<2x128xbf16>
    %212 = arith.index_cast %c6_i32 : i32 to index
    %c0_60 = arith.constant 0 : index
    %c0_61 = arith.constant 0 : index
    %213 = vector.load %arg6[%212, %c0_60, %c0_61] : memref<8x2x128xbf16, #tpu.memory_space<vmem>>, vector<1x2x128xbf16>
    %214 = vector.shape_cast %213 : vector<1x2x128xbf16> to vector<2x128xbf16>
    %215 = vector.shape_cast %211 : vector<2x128xbf16> to vector<1x2x128xbf16>
    tpu.vector_store %arg6[%212, %c0_60, %c0_61], %215 {strides = array<i32>} : memref<8x2x128xbf16, #tpu.memory_space<vmem>>, vector<1x2x128xbf16>,
    %c7_i32 = arith.constant 7 : i32
    %216 = arith.index_cast %c7_i32 : i32 to index
    %c0_62 = arith.constant 0 : index
    %c0_63 = arith.constant 0 : index
    %217 = vector.load %arg2[%216, %c0_62, %c0_63] : memref<8x2x512xbf16, #tpu.memory_space<vmem>>, vector<1x2x512xbf16>
    %218 = vector.shape_cast %217 : vector<1x2x512xbf16> to vector<2x512xbf16>
    %219 = arith.extf %218 : vector<2x512xbf16> to vector<2x512xf32>
    %220 = arith.truncf %210 : vector<2x128xf32> to vector<2x128xbf16>
    %cst_64 = arith.constant dense<0.000000e+00> : vector<2x512xf32>
    %221 = tpu.matmul %220, %3, %cst_64 {dimension_numbers = #tpu.dot_dimension_numbers<[1], [0], [0], [1], [0, 0, 1, 1], [], []>} : vector<2x128xbf16>, vector<128x512xbf16>, vector<2x512xf32> -> vector<2x512xf32>
    %222 = arith.addf %219, %221 : vector<2x512xf32>
    %223 = vector.extract_strided_slice %222 {offsets = [0, 0], sizes = [2, 384], strides = [1, 1]} : vector<2x512xf32> to vector<2x384xf32>
    %cst_65 = arith.constant 5.000000e-01 : f32
    %224 = vector.broadcast %cst_65 : f32 to vector<2x384xf32>
    %225 = arith.mulf %224, %223 : vector<2x384xf32>
    %226 = math.tanh %225 : vector<2x384xf32>
    %cst_66 = arith.constant 1.000000e+00 : f32
    %227 = vector.broadcast %cst_66 : f32 to vector<2x384xf32>
    %228 = arith.addf %226, %227 : vector<2x384xf32>
    %cst_67 = arith.constant 5.000000e-01 : f32
    %229 = vector.broadcast %cst_67 : f32 to vector<2x384xf32>
    %230 = arith.mulf %229, %228 : vector<2x384xf32>
    %231 = vector.extract_strided_slice %230 {offsets = [0, 0], sizes = [2, 128], strides = [1, 1]} : vector<2x384xf32> to vector<2x128xf32>
    %232 = vector.extract_strided_slice %230 {offsets = [0, 128], sizes = [2, 128], strides = [1, 1]} : vector<2x384xf32> to vector<2x128xf32>
    %233 = vector.extract_strided_slice %230 {offsets = [0, 256], sizes = [2, 128], strides = [1, 1]} : vector<2x384xf32> to vector<2x128xf32>
    %234 = vector.extract_strided_slice %222 {offsets = [0, 384], sizes = [2, 128], strides = [1, 1]} : vector<2x512xf32> to vector<2x128xf32>
    %235 = math.tanh %234 : vector<2x128xf32>
    %236 = arith.mulf %232, %208 : vector<2x128xf32>
    %237 = arith.mulf %231, %235 : vector<2x128xf32>
    %238 = arith.addf %236, %237 : vector<2x128xf32>
    %239 = math.tanh %238 : vector<2x128xf32>
    %240 = arith.mulf %233, %239 : vector<2x128xf32>
    %241 = arith.truncf %240 : vector<2x128xf32> to vector<2x128xbf16>
    %242 = arith.index_cast %c7_i32 : i32 to index
    %c0_68 = arith.constant 0 : index
    %c0_69 = arith.constant 0 : index
    %243 = vector.load %arg6[%242, %c0_68, %c0_69] : memref<8x2x128xbf16, #tpu.memory_space<vmem>>, vector<1x2x128xbf16>
    %244 = vector.shape_cast %243 : vector<1x2x128xbf16> to vector<2x128xbf16>
    %245 = vector.shape_cast %241 : vector<2x128xbf16> to vector<1x2x128xbf16>
    tpu.vector_store %arg6[%242, %c0_68, %c0_69], %245 {strides = array<i32>} : memref<8x2x128xbf16, #tpu.memory_space<vmem>>, vector<1x2x128xbf16>,
    %c8_i32 = arith.constant 8 : i32
    %c0_70 = arith.constant 0 : index
    %c0_71 = arith.constant 0 : index
    %246 = vector.load %arg9[%c0_70, %c0_71] : memref<2x128xf32, #tpu.memory_space<vmem>>, vector<2x128xf32>
    tpu.vector_store %arg9[%c0_70, %c0_71], %240 {strides = array<i32>} : memref<2x128xf32, #tpu.memory_space<vmem>>, vector<2x128xf32>,
    %c0_72 = arith.constant 0 : index
    %c0_73 = arith.constant 0 : index
    %247 = vector.load %arg10[%c0_72, %c0_73] : memref<2x128xf32, #tpu.memory_space<vmem>>, vector<2x128xf32>
    tpu.vector_store %arg10[%c0_72, %c0_73], %238 {strides = array<i32>} : memref<2x128xf32, #tpu.memory_space<vmem>>, vector<2x128xf32>,
    %c0_74 = arith.constant 0 : index
    %c0_75 = arith.constant 0 : index
    %248 = vector.load %arg7[%c0_74, %c0_75] : memref<2x128xf32, #tpu.memory_space<vmem>>, vector<2x128xf32>
    tpu.vector_store %arg7[%c0_74, %c0_75], %240 {strides = array<i32>} : memref<2x128xf32, #tpu.memory_space<vmem>>, vector<2x128xf32>,
    %c0_76 = arith.constant 0 : index
    %c0_77 = arith.constant 0 : index
    %249 = vector.load %arg8[%c0_76, %c0_77] : memref<2x128xf32, #tpu.memory_space<vmem>>, vector<2x128xf32>
    tpu.vector_store %arg8[%c0_76, %c0_77], %238 {strides = array<i32>} : memref<2x128xf32, #tpu.memory_space<vmem>>, vector<2x128xf32>,
    return
  }
  func.func @transform_0(%arg0: i32, %arg1: i32) -> (i32, i32, i32) {
    %c0_i32 = arith.constant 0 : i32
    %c0_i32_0 = arith.constant 0 : i32
    return %arg1, %arg0, %c0_i32 : i32, i32, i32
  }
  func.func @transform_1(%arg0: i32, %arg1: i32) -> (i32, i32) {
    %c0_i32 = arith.constant 0 : i32
    %c0_i32_0 = arith.constant 0 : i32
    return %arg0, %c0_i32 : i32, i32
  }
  func.func @transform_2(%arg0: i32, %arg1: i32) -> (i32, i32) {
    %c0_i32 = arith.constant 0 : i32
    %c0_i32_0 = arith.constant 0 : i32
    return %arg0, %c0_i32 : i32, i32
  }
  func.func @transform_3(%arg0: i32, %arg1: i32) -> (i32, i32) {
    %c0_i32 = arith.constant 0 : i32
    %c0_i32_0 = arith.constant 0 : i32
    %c0_i32_1 = arith.constant 0 : i32
    return %c0_i32, %c0_i32_0 : i32, i32
  }
  func.func @transform_4(%arg0: i32, %arg1: i32) -> (i32, i32, i32) {
    %c0_i32 = arith.constant 0 : i32
    %c0_i32_0 = arith.constant 0 : i32
    return %arg1, %arg0, %c0_i32 : i32, i32, i32
  }
  func.func @transform_5(%arg0: i32, %arg1: i32) -> (i32, i32) {
    %c0_i32 = arith.constant 0 : i32
    %c0_i32_0 = arith.constant 0 : i32
    return %arg0, %c0_i32 : i32, i32
  }
  func.func @transform_6(%arg0: i32, %arg1: i32) -> (i32, i32) {
    %c0_i32 = arith.constant 0 : i32
    %c0_i32_0 = arith.constant 0 : i32
    return %arg0, %c0_i32 : i32, i32
  }
}

</mosaic_0001>

<llo_original>
// kernel: tpu_custom_call.1
$region0: #{tpu_custom_call.1}
  #allocation0 [shape = 'u32[]', space=smem, size = 0x4, offset = 0x4, fixed_abs, tag = 'smem constant byte address 0x4 - core index']
  #allocation1 [shape = 'u32[144,128]{1,0:T(1,128)}', space=vmem, size = 0x12000, scoped, tag = 'internal scratch']
  #allocation2 [shape = 'f32[2,128]{1,0:T(2,128)}', space=vmem, size = 0x400, scoped, tag = 'scratch operand']
  #allocation3 [shape = 'f32[2,128]{1,0:T(2,128)}', space=vmem, size = 0x400, scoped, tag = 'scratch operand']
  %s0 = inlined_call_operand.hbm [shape: bf16[8,2,512], index: 0, kind: input, shape index: {}]
  %s1 = inlined_call_operand.vmem [shape: f32[2,128], index: 1, kind: input, shape index: {}]
  %s2 = inlined_call_operand.vmem [shape: f32[2,128], index: 2, kind: input, shape index: {}]
  %s3 = inlined_call_operand.hbm [shape: bf16[128,512], index: 3, kind: input, shape index: {}]
  %s4 = inlined_call_operand.hbm [shape: bf16[8,2,128], index: 4, kind: output, shape index: {0}]
  %s5 = inlined_call_operand.hbm [shape: f32[2,128], index: 5, kind: output, shape index: {1}]
  %s6 = inlined_call_operand.hbm [shape: f32[2,128], index: 6, kind: output, shape index: {2}]
  %7 = xla_tuple %s4, %s5, %s6
  %s8 = sld [smem:[#allocation0]]
  $region54: #{tpu_custom_call.1} parent=0
    _
  %s10 = ssub.s32 1, %s8
  %s11 = scalar_select 0, %s10, %s8
  $region1: #{tpu_custom_call.1} parent=0
    #allocation4 [shape = 'u8[16384]{0}', space=vmem, size = 0x4000, scoped, tag = 'input window, operand 0, single buffered']
    #allocation5 [shape = 's32[1]{0}', space=sflag, size = 0x4, scoped, tag = 'scoped memory for tpu_custom_call.1']
    #allocation6 [shape = 's32[1]{0}', space=sflag, size = 0x4, scoped, tag = 'scoped memory for tpu_custom_call.1']
    #allocation7 [shape = 'u8[131072]{0}', space=vmem, size = 0x20000, scoped, tag = 'input window, operand 3, single buffered']
    #allocation8 [shape = 's32[1]{0}', space=sflag, size = 0x4, scoped, tag = 'scoped memory for tpu_custom_call.1']
    #allocation9 [shape = 'u8[4096]{0}', space=vmem, size = 0x1000, scoped, tag = 'output window, operand 0, single buffered']
    #allocation10 [shape = 'u8[1024]{0}', space=vmem, size = 0x400, scoped, tag = 'output window, operand 1, single buffered']
    #allocation11 [shape = 's32[1]{0}', space=sflag, size = 0x4, scoped, tag = 'scoped memory for tpu_custom_call.1']
    #allocation12 [shape = 'u8[1024]{0}', space=vmem, size = 0x400, scoped, tag = 'output window, operand 2, single buffered']
    %12 = vsyncpa [#allocation5], 0
    %13 = vsyncpa [#allocation8], 0
    %14 = vsyncpa [#allocation6], 0
    %15 = vsyncpa [#allocation11], 0
    // Predicated region
    $region2: #{tpu_custom_call.1} parent=1 // pred_check
      _
    $region3: #{tpu_custom_call.1} parent=1 // pred_check_branch
      %17 = sbr.rel (0) target = $region5
    $region4: #{tpu_custom_call.1} parent=1 // pred_region
      %s19 = ssub.s32 512, 512
      %20 = vsyncadd [#allocation5], %s19
      %s21 = sshll.u32 [#allocation4], 4
      %s22 = int_to_ptr.vmem [resolvable:$true] %s21
      %27 = dma.hbm_to_vmem [thread:$0]  %s0, 512, %s22, [#allocation5], 64, 64, 4
    $region5: #{tpu_custom_call.1} parent=1 // pred_fallthru
      _
    // Predicated region
    $region6: #{tpu_custom_call.1} parent=1 // pred_check
      _
    $region7: #{tpu_custom_call.1} parent=1 // pred_check_branch
      %29 = sbr.rel (0) target = $region9
    $region8: #{tpu_custom_call.1} parent=1 // pred_region
      _
    $region9: #{tpu_custom_call.1} parent=1 // pred_fallthru
      _
    // Predicated region
    $region10: #{tpu_custom_call.1} parent=1 // pred_check
      _
    $region11: #{tpu_custom_call.1} parent=1 // pred_check_branch
      %31 = sbr.rel (0) target = $region13
    $region12: #{tpu_custom_call.1} parent=1 // pred_region
      _
    $region13: #{tpu_custom_call.1} parent=1 // pred_fallthru
      _
    // Predicated region
    $region14: #{tpu_custom_call.1} parent=1 // pred_check
      _
    $region15: #{tpu_custom_call.1} parent=1 // pred_check_branch
      %33 = sbr.rel (0) target = $region17
    $region16: #{tpu_custom_call.1} parent=1 // pred_region
      %s35 = ssub.s32 4096, 4096
      %36 = vsyncadd [#allocation8], %s35
      %s37 = sshll.u32 [#allocation7], 4
      %s38 = int_to_ptr.vmem [resolvable:$true] %s37
      %43 = dma.hbm_to_vmem [thread:$0]  %s3, 4096, %s38, [#allocation8], 256, 256, 16
    $region17: #{tpu_custom_call.1} parent=1 // pred_fallthru
      _
    // Predicated region
    $region18: #{tpu_custom_call.1} parent=1 // pred_check
      _
    $region19: #{tpu_custom_call.1} parent=1 // pred_check_branch
      %45 = sbr.rel (0) target = $region21
    $region20: #{tpu_custom_call.1} parent=1 // pred_region
      %46 = dma.done [#allocation5], 512
    $region21: #{tpu_custom_call.1} parent=1 // pred_fallthru
      _
    // Predicated region
    $region22: #{tpu_custom_call.1} parent=1 // pred_check
      _
    $region23: #{tpu_custom_call.1} parent=1 // pred_check_branch
      %48 = sbr.rel (0) target = $region25
    $region24: #{tpu_custom_call.1} parent=1 // pred_region
      %49 = dma.done [#allocation8], 4096
    $region25: #{tpu_custom_call.1} parent=1 // pred_fallthru
      _
    %p51 = scmp.eq.s32.totalorder 0, 0
    // Predicated region
    $region26: #{tpu_custom_call.1} parent=1 // pred_check
      %p52 = pneg %p51
    $region27: #{tpu_custom_call.1} parent=1 // pred_check_branch
      %54 = sbr.rel (%p52) target = $region29
    $region28: #{tpu_custom_call.1} parent=1 // pred_region
      %v55 = vld [vmem:[%s1] sm:$0x3]
      %56 = vst [vmem:[#allocation2] sm:$0x3] %v55
      %v57 = vld [vmem:[%s2] sm:$0x3]
      %58 = vst [vmem:[#allocation3] sm:$0x3] %v57
    $region29: #{tpu_custom_call.1} parent=1 // pred_fallthru
      _
    %v59 = vld [vmem:[#allocation7] sm:$0xff]
    %v60 = vld [vmem:[#allocation7 + $0x8] sm:$0xff]
    %v61 = vld [vmem:[#allocation7 + $0x10] sm:$0xff]
    %v62 = vld [vmem:[#allocation7 + $0x18] sm:$0xff]
    %v63 = vld [vmem:[#allocation7 + $0x20] sm:$0xff]
    %v64 = vld [vmem:[#allocation7 + $0x28] sm:$0xff]
    %v65 = vld [vmem:[#allocation7 + $0x30] sm:$0xff]
    %v66 = vld [vmem:[#allocation7 + $0x38] sm:$0xff]
    %v67 = vld [vmem:[#allocation7 + $0x40] sm:$0xff]
    %v68 = vld [vmem:[#allocation7 + $0x48] sm:$0xff]
    %v69 = vld [vmem:[#allocation7 + $0x50] sm:$0xff]
    %v70 = vld [vmem:[#allocation7 + $0x58] sm:$0xff]
    %v71 = vld [vmem:[#allocation7 + $0x60] sm:$0xff]
    %v72 = vld [vmem:[#allocation7 + $0x68] sm:$0xff]
    %v73 = vld [vmem:[#allocation7 + $0x70] sm:$0xff]
    %v74 = vld [vmem:[#allocation7 + $0x78] sm:$0xff]
    %v75 = vld [vmem:[#allocation7 + $0x80] sm:$0xff]
    %v76 = vld [vmem:[#allocation7 + $0x88] sm:$0xff]
    %v77 = vld [vmem:[#allocation7 + $0x90] sm:$0xff]
    %v78 = vld [vmem:[#allocation7 + $0x98] sm:$0xff]
    %v79 = vld [vmem:[#allocation7 + $0xa0] sm:$0xff]
    %v80 = vld [vmem:[#allocation7 + $0xa8] sm:$0xff]
    %v81 = vld [vmem:[#allocation7 + $0xb0] sm:$0xff]
    %v82 = vld [vmem:[#allocation7 + $0xb8] sm:$0xff]
    %v83 = vld [vmem:[#allocation7 + $0xc0] sm:$0xff]
    %v84 = vld [vmem:[#allocation7 + $0xc8] sm:$0xff]
    %v85 = vld [vmem:[#allocation7 + $0xd0] sm:$0xff]
    %v86 = vld [vmem:[#allocation7 + $0xd8] sm:$0xff]
    %v87 = vld [vmem:[#allocation7 + $0xe0] sm:$0xff]
    %v88 = vld [vmem:[#allocation7 + $0xe8] sm:$0xff]
    %v89 = vld [vmem:[#allocation7 + $0xf0] sm:$0xff]
    %v90 = vld [vmem:[#allocation7 + $0xf8] sm:$0xff]
    %v91 = vld [vmem:[#allocation2] sm:$0x3]
    %v92 = vld [vmem:[#allocation3] sm:$0x3]
    %v93 = vld [vmem:[#allocation4] sm:$0xf]
    %v94 = vunpack.c.l.bf16 %v93
    %v95 = vpack.c.bf16 %v91, %v91
    %v128 = vunpack.c.l.b16 %v59
    %v129 = vunpack.c.h.b16 %v59
    %v130 = vunpack.c.l.b16 %v60
    %v131 = vunpack.c.h.b16 %v60
    %v132 = vunpack.c.l.b16 %v61
    %v133 = vunpack.c.h.b16 %v61
    %v134 = vunpack.c.l.b16 %v62
    %v135 = vunpack.c.h.b16 %v62
    %v136 = vunpack.c.l.b16 %v63
    %v137 = vunpack.c.h.b16 %v63
    %v138 = vunpack.c.l.b16 %v64
    %v139 = vunpack.c.h.b16 %v64
    %v140 = vunpack.c.l.b16 %v65
    %v141 = vunpack.c.h.b16 %v65
    %v142 = vunpack.c.l.b16 %v66
    %v143 = vunpack.c.h.b16 %v66
    %v144 = vunpack.c.l.b16 %v67
    %v145 = vunpack.c.h.b16 %v67
    %v146 = vunpack.c.l.b16 %v68
    %v147 = vunpack.c.h.b16 %v68
    %v148 = vunpack.c.l.b16 %v69
    %v149 = vunpack.c.h.b16 %v69
    %v150 = vunpack.c.l.b16 %v70
    %v151 = vunpack.c.h.b16 %v70
    %v152 = vunpack.c.l.b16 %v71
    %v153 = vunpack.c.h.b16 %v71
    %v154 = vunpack.c.l.b16 %v72
    %v155 = vunpack.c.h.b16 %v72
    %v156 = vunpack.c.l.b16 %v73
    %v157 = vunpack.c.h.b16 %v73
    %v158 = vunpack.c.l.b16 %v74
    %v159 = vunpack.c.h.b16 %v74
    %v160 = vunpack.c.l.b16 %v75
    %v161 = vunpack.c.h.b16 %v75
    %v162 = vunpack.c.l.b16 %v76
    %v163 = vunpack.c.h.b16 %v76
    %v164 = vunpack.c.l.b16 %v77
    %v165 = vunpack.c.h.b16 %v77
    %v166 = vunpack.c.l.b16 %v78
    %v167 = vunpack.c.h.b16 %v78
    %v168 = vunpack.c.l.b16 %v79
    %v169 = vunpack.c.h.b16 %v79
    %v170 = vunpack.c.l.b16 %v80
    %v171 = vunpack.c.h.b16 %v80
    %v172 = vunpack.c.l.b16 %v81
    %v173 = vunpack.c.h.b16 %v81
    %v174 = vunpack.c.l.b16 %v82
    %v175 = vunpack.c.h.b16 %v82
    %v176 = vunpack.c.l.b16 %v83
    %v177 = vunpack.c.h.b16 %v83
    %v178 = vunpack.c.l.b16 %v84
    %v179 = vunpack.c.h.b16 %v84
    %v180 = vunpack.c.l.b16 %v85
    %v181 = vunpack.c.h.b16 %v85
    %v182 = vunpack.c.l.b16 %v86
    %v183 = vunpack.c.h.b16 %v86
    %v184 = vunpack.c.l.b16 %v87
    %v185 = vunpack.c.h.b16 %v87
    %v186 = vunpack.c.l.b16 %v88
    %v187 = vunpack.c.h.b16 %v88
    %v188 = vunpack.c.l.b16 %v89
    %v189 = vunpack.c.h.b16 %v89
    %v190 = vunpack.c.l.b16 %v90
    %v191 = vunpack.c.h.b16 %v90
    %v192 = vpack.c.b16 %v132, %v128
    %v193 = vpack.c.b16 %v133, %v129
    %v194 = vpack.c.b16 %v134, %v130
    %v195 = vpack.c.b16 %v135, %v131
    %v196 = vpack.c.b16 %v140, %v136
    %v197 = vpack.c.b16 %v141, %v137
    %v198 = vpack.c.b16 %v142, %v138
    %v199 = vpack.c.b16 %v143, %v139
    %v200 = vpack.c.b16 %v148, %v144
    %v201 = vpack.c.b16 %v149, %v145
    %v202 = vpack.c.b16 %v150, %v146
    %v203 = vpack.c.b16 %v151, %v147
    %v204 = vpack.c.b16 %v156, %v152
    %v205 = vpack.c.b16 %v157, %v153
    %v206 = vpack.c.b16 %v158, %v154
    %v207 = vpack.c.b16 %v159, %v155
    %v208 = vpack.c.b16 %v164, %v160
    %v209 = vpack.c.b16 %v165, %v161
    %v210 = vpack.c.b16 %v166, %v162
    %v211 = vpack.c.b16 %v167, %v163
    %v212 = vpack.c.b16 %v172, %v168
    %v213 = vpack.c.b16 %v173, %v169
    %v214 = vpack.c.b16 %v174, %v170
    %v215 = vpack.c.b16 %v175, %v171
    %v216 = vpack.c.b16 %v180, %v176
    %v217 = vpack.c.b16 %v181, %v177
    %v218 = vpack.c.b16 %v182, %v178
    %v219 = vpack.c.b16 %v183, %v179
    %v220 = vpack.c.b16 %v188, %v184
    %v221 = vpack.c.b16 %v189, %v185
    %v222 = vpack.c.b16 %v190, %v186
    %v223 = vpack.c.b16 %v191, %v187
    %256 = vmatprep.subr.bf16.mxu0 %v193
    %257 = vmatpush1.bf16.msra.mxu0 %v192
    %258 = vmatprep.subr.bf16.mxu0 %v197
    %259 = vmatpush1.bf16.msra.mxu0 %v196
    %260 = vmatprep.subr.bf16.mxu0 %v201
    %261 = vmatpush1.bf16.msra.mxu0 %v200
    %262 = vmatprep.subr.bf16.mxu0 %v205
    %263 = vmatpush1.bf16.msra.mxu0 %v204
    %264 = vmatprep.subr.bf16.mxu0 %v209
    %265 = vmatpush1.bf16.msra.mxu0 %v208
    %266 = vmatprep.subr.bf16.mxu0 %v213
    %267 = vmatpush1.bf16.msra.mxu0 %v212
    %268 = vmatprep.subr.bf16.mxu0 %v217
    %269 = vmatpush1.bf16.msra.mxu0 %v216
    %270 = vmatprep.subr.bf16.mxu0 %v221
    %271 = vmatpush1.bf16.msra.mxu0 %v220
    %272 = vmatprep.subr.bf16.mxu0 0
    %273 = vmatpush1.bf16.msra.mxu0 0
    %274 = vmatprep.subr.bf16.mxu0 0
    %275 = vmatpush1.bf16.msra.mxu0 0
    %276 = vmatprep.subr.bf16.mxu0 0
    %277 = vmatpush1.bf16.msra.mxu0 0
    %278 = vmatprep.subr.bf16.mxu0 0
    %279 = vmatpush1.bf16.msra.mxu0 0
    %280 = vmatprep.subr.bf16.mxu0 0
    %281 = vmatpush1.bf16.msra.mxu0 0
    %282 = vmatprep.subr.bf16.mxu0 0
    %283 = vmatpush1.bf16.msra.mxu0 0
    %284 = vmatprep.subr.bf16.mxu0 0
    %285 = vmatpush1.bf16.msra.mxu0 0
    %286 = vmatprep.subr.bf16.mxu0 0
    %287 = vmatpush1.bf16.msra.mxu0 0
    %288 = vmatprep.mubr.bf16.mxu0 0
    %289 = vmatmul.mubr.bf16.gmra.mrb[0].mxu0 %v95
    %v290 = vpop.f32.mrb[0].mxu0
    %v291 = vadd.f32 0.0, %v290
    %v292 = vpop.f32.mrb[0].mxu0
    %v293 = vadd.f32 0.0, %v292
    %v294 = vpop.f32.mrb[0].mxu0
    %v295 = vpop.f32.mrb[0].mxu0
    %296 = vdwg.mxu0
    %297 = vmatprep.subr.bf16.mxu0 %v195
    %298 = vmatpush1.bf16.msra.mxu0 %v194
    %299 = vmatprep.subr.bf16.mxu0 %v199
    %300 = vmatpush1.bf16.msra.mxu0 %v198
    %301 = vmatprep.subr.bf16.mxu0 %v203
    %302 = vmatpush1.bf16.msra.mxu0 %v202
    %303 = vmatprep.subr.bf16.mxu0 %v207
    %304 = vmatpush1.bf16.msra.mxu0 %v206
    %305 = vmatprep.subr.bf16.mxu0 %v211
    %306 = vmatpush1.bf16.msra.mxu0 %v210
    %307 = vmatprep.subr.bf16.mxu0 %v215
    %308 = vmatpush1.bf16.msra.mxu0 %v214
    %309 = vmatprep.subr.bf16.mxu0 %v219
    %310 = vmatpush1.bf16.msra.mxu0 %v218
    %311 = vmatprep.subr.bf16.mxu0 %v223
    %312 = vmatpush1.bf16.msra.mxu0 %v222
    %313 = vmatprep.subr.bf16.mxu0 0
    %314 = vmatpush1.bf16.msra.mxu0 0
    %315 = vmatprep.subr.bf16.mxu0 0
    %316 = vmatpush1.bf16.msra.mxu0 0
    %317 = vmatprep.subr.bf16.mxu0 0
    %318 = vmatpush1.bf16.msra.mxu0 0
    %319 = vmatprep.subr.bf16.mxu0 0
    %320 = vmatpush1.bf16.msra.mxu0 0
    %321 = vmatprep.subr.bf16.mxu0 0
    %322 = vmatpush1.bf16.msra.mxu0 0
    %323 = vmatprep.subr.bf16.mxu0 0
    %324 = vmatpush1.bf16.msra.mxu0 0
    %325 = vmatprep.subr.bf16.mxu0 0
    %326 = vmatpush1.bf16.msra.mxu0 0
    %327 = vmatprep.subr.bf16.mxu0 0
    %328 = vmatpush1.bf16.msra.mxu0 0
    %329 = vmatprep.mubr.bf16.mxu0 0
    %330 = vmatmul.mubr.bf16.gmra.mrb[0].mxu0 %v95
    %v331 = vpop.f32.mrb[0].mxu0
    %v332 = vadd.f32 0.0, %v331
    %v333 = vpop.f32.mrb[0].mxu0
    %v334 = vadd.f32 0.0, %v333
    %v335 = vpop.f32.mrb[0].mxu0
    %v336 = vpop.f32.mrb[0].mxu0
    %337 = vdwg.mxu0
    %v342 = vcombine.low %v291, %v293
    %v343 = vcombine.low %v332, %v334
    %v345 = vunpack.c.l.s4 1983009808
    %v346 = vunpack.c.0.s8 %v345
    %v347 = vlaneseq
    %v348 = vshrl.u32 %v347, 7
    %v349 = vsub.s32 %v346, %v348
    %v350 = vrot.slane %v342, %v349
    %v352 = vunpack.c.l.s4 1983009808
    %v353 = vunpack.c.0.s8 %v352
    %v354 = vlaneseq
    %v355 = vshrl.u32 %v354, 7
    %v356 = vsub.s32 %v353, %v355
    %v357 = vrot.slane %v343, %v356
    %v358 = vcombine.low %v350, %v357
    %v360 = vadd.f32 %v94, %v358
    %v361 = vmul.f32 %v360, 0.5
    %v362 = vtanh.pop %v361
    %v363 = vadd.f32 %v362, 1.0
    %v364 = vmul.f32 %v363, 0.5
    %v366 = vrot.slane %v360, 6
    %v368 = vtanh.pop %v366
    %v370 = vrot.slane %v364, 2
    %v372 = vmul.f32 %v370, %v92
    %v373 = vmul.f32 %v364, %v368
    %v374 = vadd.f32 %v372, %v373
    %v375 = vtanh.pop %v374
    %v376 = vrot.slane %v364, 4
    %v378 = vmul.f32 %v376, %v375
    %v379 = vpack.c.bf16 %v378, %v378
    %380 = vst [vmem:[#allocation9] sm:$0x1] %v379
    %s381 = scalar_lea.vmem [#allocation4], 4
    %v382 = vld [vmem:[%s381] sm:$0xf]
    %v383 = vunpack.c.l.bf16 %v382
    %384 = vmatprep.subr.bf16.mxu0 %v193
    %385 = vmatpush1.bf16.msra.mxu0 %v192
    %386 = vmatprep.subr.bf16.mxu0 %v197
    %387 = vmatpush1.bf16.msra.mxu0 %v196
    %388 = vmatprep.subr.bf16.mxu0 %v201
    %389 = vmatpush1.bf16.msra.mxu0 %v200
    %390 = vmatprep.subr.bf16.mxu0 %v205
    %391 = vmatpush1.bf16.msra.mxu0 %v204
    %392 = vmatprep.subr.bf16.mxu0 %v209
    %393 = vmatpush1.bf16.msra.mxu0 %v208
    %394 = vmatprep.subr.bf16.mxu0 %v213
    %395 = vmatpush1.bf16.msra.mxu0 %v212
    %396 = vmatprep.subr.bf16.mxu0 %v217
    %397 = vmatpush1.bf16.msra.mxu0 %v216
    %398 = vmatprep.subr.bf16.mxu0 %v221
    %399 = vmatpush1.bf16.msra.mxu0 %v220
    %400 = vmatprep.subr.bf16.mxu0 0
    %401 = vmatpush1.bf16.msra.mxu0 0
    %402 = vmatprep.subr.bf16.mxu0 0
    %403 = vmatpush1.bf16.msra.mxu0 0
    %404 = vmatprep.subr.bf16.mxu0 0
    %405 = vmatpush1.bf16.msra.mxu0 0
    %406 = vmatprep.subr.bf16.mxu0 0
    %407 = vmatpush1.bf16.msra.mxu0 0
    %408 = vmatprep.subr.bf16.mxu0 0
    %409 = vmatpush1.bf16.msra.mxu0 0
    %410 = vmatprep.subr.bf16.mxu0 0
    %411 = vmatpush1.bf16.msra.mxu0 0
    %412 = vmatprep.subr.bf16.mxu0 0
    %413 = vmatpush1.bf16.msra.mxu0 0
    %414 = vmatprep.subr.bf16.mxu0 0
    %415 = vmatpush1.bf16.msra.mxu0 0
    %416 = vmatprep.mubr.bf16.mxu0 0
    %417 = vmatmul.mubr.bf16.gmra.mrb[0].mxu0 %v379
    %v418 = vpop.f32.mrb[0].mxu0
    %v419 = vadd.f32 0.0, %v418
    %v420 = vpop.f32.mrb[0].mxu0
    %v421 = vadd.f32 0.0, %v420
    %v422 = vpop.f32.mrb[0].mxu0
    %v423 = vpop.f32.mrb[0].mxu0
    %424 = vdwg.mxu0
    %425 = vmatprep.subr.bf16.mxu0 %v195
    %426 = vmatpush1.bf16.msra.mxu0 %v194
    %427 = vmatprep.subr.bf16.mxu0 %v199
    %428 = vmatpush1.bf16.msra.mxu0 %v198
    %429 = vmatprep.subr.bf16.mxu0 %v203
    %430 = vmatpush1.bf16.msra.mxu0 %v202
    %431 = vmatprep.subr.bf16.mxu0 %v207
    %432 = vmatpush1.bf16.msra.mxu0 %v206
    %433 = vmatprep.subr.bf16.mxu0 %v211
    %434 = vmatpush1.bf16.msra.mxu0 %v210
    %435 = vmatprep.subr.bf16.mxu0 %v215
    %436 = vmatpush1.bf16.msra.mxu0 %v214
    %437 = vmatprep.subr.bf16.mxu0 %v219
    %438 = vmatpush1.bf16.msra.mxu0 %v218
    %439 = vmatprep.subr.bf16.mxu0 %v223
    %440 = vmatpush1.bf16.msra.mxu0 %v222
    %441 = vmatprep.subr.bf16.mxu0 0
    %442 = vmatpush1.bf16.msra.mxu0 0
    %443 = vmatprep.subr.bf16.mxu0 0
    %444 = vmatpush1.bf16.msra.mxu0 0
    %445 = vmatprep.subr.bf16.mxu0 0
    %446 = vmatpush1.bf16.msra.mxu0 0
    %447 = vmatprep.subr.bf16.mxu0 0
    %448 = vmatpush1.bf16.msra.mxu0 0
    %449 = vmatprep.subr.bf16.mxu0 0
    %450 = vmatpush1.bf16.msra.mxu0 0
    %451 = vmatprep.subr.bf16.mxu0 0
    %452 = vmatpush1.bf16.msra.mxu0 0
    %453 = vmatprep.subr.bf16.mxu0 0
    %454 = vmatpush1.bf16.msra.mxu0 0
    %455 = vmatprep.subr.bf16.mxu0 0
    %456 = vmatpush1.bf16.msra.mxu0 0
    %457 = vmatprep.mubr.bf16.mxu0 0
    %458 = vmatmul.mubr.bf16.gmra.mrb[0].mxu0 %v379
    %v459 = vpop.f32.mrb[0].mxu0
    %v460 = vadd.f32 0.0, %v459
    %v461 = vpop.f32.mrb[0].mxu0
    %v462 = vadd.f32 0.0, %v461
    %v463 = vpop.f32.mrb[0].mxu0
    %v464 = vpop.f32.mrb[0].mxu0
    %465 = vdwg.mxu0
    %v470 = vcombine.low %v419, %v421
    %v471 = vcombine.low %v460, %v462
    %v473 = vunpack.c.l.s4 1983009808
    %v474 = vunpack.c.0.s8 %v473
    %v475 = vlaneseq
    %v476 = vshrl.u32 %v475, 7
    %v477 = vsub.s32 %v474, %v476
    %v478 = vrot.slane %v470, %v477
    %v480 = vunpack.c.l.s4 1983009808
    %v481 = vunpack.c.0.s8 %v480
    %v482 = vlaneseq
    %v483 = vshrl.u32 %v482, 7
    %v484 = vsub.s32 %v481, %v483
    %v485 = vrot.slane %v471, %v484
    %v486 = vcombine.low %v478, %v485
    %v488 = vadd.f32 %v383, %v486
    %v489 = vmul.f32 %v488, 0.5
    %v490 = vtanh.pop %v489
    %v491 = vadd.f32 %v490, 1.0
    %v492 = vmul.f32 %v491, 0.5
    %v494 = vrot.slane %v488, 6
    %v496 = vtanh.pop %v494
    %v498 = vrot.slane %v492, 2
    %v500 = vmul.f32 %v498, %v374
    %v501 = vmul.f32 %v492, %v496
    %v502 = vadd.f32 %v500, %v501
    %v503 = vtanh.pop %v502
    %v504 = vrot.slane %v492, 4
    %v506 = vmul.f32 %v504, %v503
    %v507 = vpack.c.bf16 %v506, %v506
    %s508 = scalar_lea.vmem [#allocation9], 1
    %509 = vst [vmem:[%s508] sm:$0x1] %v507
    %s510 = scalar_lea.vmem [#allocation4], 8
    %v511 = vld [vmem:[%s510] sm:$0xf]
    %v512 = vunpack.c.l.bf16 %v511
    %513 = vmatprep.subr.bf16.mxu0 %v193
    %514 = vmatpush1.bf16.msra.mxu0 %v192
    %515 = vmatprep.subr.bf16.mxu0 %v197
    %516 = vmatpush1.bf16.msra.mxu0 %v196
    %517 = vmatprep.subr.bf16.mxu0 %v201
    %518 = vmatpush1.bf16.msra.mxu0 %v200
    %519 = vmatprep.subr.bf16.mxu0 %v205
    %520 = vmatpush1.bf16.msra.mxu0 %v204
    %521 = vmatprep.subr.bf16.mxu0 %v209
    %522 = vmatpush1.bf16.msra.mxu0 %v208
    %523 = vmatprep.subr.bf16.mxu0 %v213
    %524 = vmatpush1.bf16.msra.mxu0 %v212
    %525 = vmatprep.subr.bf16.mxu0 %v217
    %526 = vmatpush1.bf16.msra.mxu0 %v216
    %527 = vmatprep.subr.bf16.mxu0 %v221
    %528 = vmatpush1.bf16.msra.mxu0 %v220
    %529 = vmatprep.subr.bf16.mxu0 0
    %530 = vmatpush1.bf16.msra.mxu0 0
    %531 = vmatprep.subr.bf16.mxu0 0
    %532 = vmatpush1.bf16.msra.mxu0 0
    %533 = vmatprep.subr.bf16.mxu0 0
    %534 = vmatpush1.bf16.msra.mxu0 0
    %535 = vmatprep.subr.bf16.mxu0 0
    %536 = vmatpush1.bf16.msra.mxu0 0
    %537 = vmatprep.subr.bf16.mxu0 0
    %538 = vmatpush1.bf16.msra.mxu0 0
    %539 = vmatprep.subr.bf16.mxu0 0
    %540 = vmatpush1.bf16.msra.mxu0 0
    %541 = vmatprep.subr.bf16.mxu0 0
    %542 = vmatpush1.bf16.msra.mxu0 0
    %543 = vmatprep.subr.bf16.mxu0 0
    %544 = vmatpush1.bf16.msra.mxu0 0
    %545 = vmatprep.mubr.bf16.mxu0 0
    %546 = vmatmul.mubr.bf16.gmra.mrb[0].mxu0 %v507
    %v547 = vpop.f32.mrb[0].mxu0
    %v548 = vadd.f32 0.0, %v547
    %v549 = vpop.f32.mrb[0].mxu0
    %v550 = vadd.f32 0.0, %v549
    %v551 = vpop.f32.mrb[0].mxu0
    %v552 = vpop.f32.mrb[0].mxu0
    %553 = vdwg.mxu0
    %554 = vmatprep.subr.bf16.mxu0 %v195
    %555 = vmatpush1.bf16.msra.mxu0 %v194
    %556 = vmatprep.subr.bf16.mxu0 %v199
    %557 = vmatpush1.bf16.msra.mxu0 %v198
    %558 = vmatprep.subr.bf16.mxu0 %v203
    %559 = vmatpush1.bf16.msra.mxu0 %v202
    %560 = vmatprep.subr.bf16.mxu0 %v207
    %561 = vmatpush1.bf16.msra.mxu0 %v206
    %562 = vmatprep.subr.bf16.mxu0 %v211
    %563 = vmatpush1.bf16.msra.mxu0 %v210
    %564 = vmatprep.subr.bf16.mxu0 %v215
    %565 = vmatpush1.bf16.msra.mxu0 %v214
    %566 = vmatprep.subr.bf16.mxu0 %v219
    %567 = vmatpush1.bf16.msra.mxu0 %v218
    %568 = vmatprep.subr.bf16.mxu0 %v223
    %569 = vmatpush1.bf16.msra.mxu0 %v222
    %570 = vmatprep.subr.bf16.mxu0 0
    %571 = vmatpush1.bf16.msra.mxu0 0
    %572 = vmatprep.subr.bf16.mxu0 0
    %573 = vmatpush1.bf16.msra.mxu0 0
    %574 = vmatprep.subr.bf16.mxu0 0
    %575 = vmatpush1.bf16.msra.mxu0 0
    %576 = vmatprep.subr.bf16.mxu0 0
    %577 = vmatpush1.bf16.msra.mxu0 0
    %578 = vmatprep.subr.bf16.mxu0 0
    %579 = vmatpush1.bf16.msra.mxu0 0
    %580 = vmatprep.subr.bf16.mxu0 0
    %581 = vmatpush1.bf16.msra.mxu0 0
    %582 = vmatprep.subr.bf16.mxu0 0
    %583 = vmatpush1.bf16.msra.mxu0 0
    %584 = vmatprep.subr.bf16.mxu0 0
    %585 = vmatpush1.bf16.msra.mxu0 0
    %586 = vmatprep.mubr.bf16.mxu0 0
    %587 = vmatmul.mubr.bf16.gmra.mrb[0].mxu0 %v507
    %v588 = vpop.f32.mrb[0].mxu0
    %v589 = vadd.f32 0.0, %v588
    %v590 = vpop.f32.mrb[0].mxu0
    %v591 = vadd.f32 0.0, %v590
    %v592 = vpop.f32.mrb[0].mxu0
    %v593 = vpop.f32.mrb[0].mxu0
    %594 = vdwg.mxu0
    %v599 = vcombine.low %v548, %v550
    %v600 = vcombine.low %v589, %v591
    %v602 = vunpack.c.l.s4 1983009808
    %v603 = vunpack.c.0.s8 %v602
    %v604 = vlaneseq
    %v605 = vshrl.u32 %v604, 7
    %v606 = vsub.s32 %v603, %v605
    %v607 = vrot.slane %v599, %v606
    %v609 = vunpack.c.l.s4 1983009808
    %v610 = vunpack.c.0.s8 %v609
    %v611 = vlaneseq
    %v612 = vshrl.u32 %v611, 7
    %v613 = vsub.s32 %v610, %v612
    %v614 = vrot.slane %v600, %v613
    %v615 = vcombine.low %v607, %v614
    %v617 = vadd.f32 %v512, %v615
    %v618 = vmul.f32 %v617, 0.5
    %v619 = vtanh.pop %v618
    %v620 = vadd.f32 %v619, 1.0
    %v621 = vmul.f32 %v620, 0.5
    %v623 = vrot.slane %v617, 6
    %v625 = vtanh.pop %v623
    %v627 = vrot.slane %v621, 2
    %v629 = vmul.f32 %v627, %v502
    %v630 = vmul.f32 %v621, %v625
    %v631 = vadd.f32 %v629, %v630
    %v632 = vtanh.pop %v631
    %v633 = vrot.slane %v621, 4
    %v635 = vmul.f32 %v633, %v632
    %v636 = vpack.c.bf16 %v635, %v635
    %s637 = scalar_lea.vmem [#allocation9], 2
    %638 = vst [vmem:[%s637] sm:$0x1] %v636
    %s639 = scalar_lea.vmem [#allocation4], 12
    %v640 = vld [vmem:[%s639] sm:$0xf]
    %v641 = vunpack.c.l.bf16 %v640
    %642 = vmatprep.subr.bf16.mxu0 %v193
    %643 = vmatpush1.bf16.msra.mxu0 %v192
    %644 = vmatprep.subr.bf16.mxu0 %v197
    %645 = vmatpush1.bf16.msra.mxu0 %v196
    %646 = vmatprep.subr.bf16.mxu0 %v201
    %647 = vmatpush1.bf16.msra.mxu0 %v200
    %648 = vmatprep.subr.bf16.mxu0 %v205
    %649 = vmatpush1.bf16.msra.mxu0 %v204
    %650 = vmatprep.subr.bf16.mxu0 %v209
    %651 = vmatpush1.bf16.msra.mxu0 %v208
    %652 = vmatprep.subr.bf16.mxu0 %v213
    %653 = vmatpush1.bf16.msra.mxu0 %v212
    %654 = vmatprep.subr.bf16.mxu0 %v217
    %655 = vmatpush1.bf16.msra.mxu0 %v216
    %656 = vmatprep.subr.bf16.mxu0 %v221
    %657 = vmatpush1.bf16.msra.mxu0 %v220
    %658 = vmatprep.subr.bf16.mxu0 0
    %659 = vmatpush1.bf16.msra.mxu0 0
    %660 = vmatprep.subr.bf16.mxu0 0
    %661 = vmatpush1.bf16.msra.mxu0 0
    %662 = vmatprep.subr.bf16.mxu0 0
    %663 = vmatpush1.bf16.msra.mxu0 0
    %664 = vmatprep.subr.bf16.mxu0 0
    %665 = vmatpush1.bf16.msra.mxu0 0
    %666 = vmatprep.subr.bf16.mxu0 0
    %667 = vmatpush1.bf16.msra.mxu0 0
    %668 = vmatprep.subr.bf16.mxu0 0
    %669 = vmatpush1.bf16.msra.mxu0 0
    %670 = vmatprep.subr.bf16.mxu0 0
    %671 = vmatpush1.bf16.msra.mxu0 0
    %672 = vmatprep.subr.bf16.mxu0 0
    %673 = vmatpush1.bf16.msra.mxu0 0
    %674 = vmatprep.mubr.bf16.mxu0 0
    %675 = vmatmul.mubr.bf16.gmra.mrb[0].mxu0 %v636
    %v676 = vpop.f32.mrb[0].mxu0
    %v677 = vadd.f32 0.0, %v676
    %v678 = vpop.f32.mrb[0].mxu0
    %v679 = vadd.f32 0.0, %v678
    %v680 = vpop.f32.mrb[0].mxu0
    %v681 = vpop.f32.mrb[0].mxu0
    %682 = vdwg.mxu0
    %683 = vmatprep.subr.bf16.mxu0 %v195
    %684 = vmatpush1.bf16.msra.mxu0 %v194
    %685 = vmatprep.subr.bf16.mxu0 %v199
    %686 = vmatpush1.bf16.msra.mxu0 %v198
    %687 = vmatprep.subr.bf16.mxu0 %v203
    %688 = vmatpush1.bf16.msra.mxu0 %v202
    %689 = vmatprep.subr.bf16.mxu0 %v207
    %690 = vmatpush1.bf16.msra.mxu0 %v206
    %691 = vmatprep.subr.bf16.mxu0 %v211
    %692 = vmatpush1.bf16.msra.mxu0 %v210
    %693 = vmatprep.subr.bf16.mxu0 %v215
    %694 = vmatpush1.bf16.msra.mxu0 %v214
    %695 = vmatprep.subr.bf16.mxu0 %v219
    %696 = vmatpush1.bf16.msra.mxu0 %v218
    %697 = vmatprep.subr.bf16.mxu0 %v223
    %698 = vmatpush1.bf16.msra.mxu0 %v222
    %699 = vmatprep.subr.bf16.mxu0 0
    %700 = vmatpush1.bf16.msra.mxu0 0
    %701 = vmatprep.subr.bf16.mxu0 0
    %702 = vmatpush1.bf16.msra.mxu0 0
    %703 = vmatprep.subr.bf16.mxu0 0
    %704 = vmatpush1.bf16.msra.mxu0 0
    %705 = vmatprep.subr.bf16.mxu0 0
    %706 = vmatpush1.bf16.msra.mxu0 0
    %707 = vmatprep.subr.bf16.mxu0 0
    %708 = vmatpush1.bf16.msra.mxu0 0
    %709 = vmatprep.subr.bf16.mxu0 0
    %710 = vmatpush1.bf16.msra.mxu0 0
    %711 = vmatprep.subr.bf16.mxu0 0
    %712 = vmatpush1.bf16.msra.mxu0 0
    %713 = vmatprep.subr.bf16.mxu0 0
    %714 = vmatpush1.bf16.msra.mxu0 0
    %715 = vmatprep.mubr.bf16.mxu0 0
    %716 = vmatmul.mubr.bf16.gmra.mrb[0].mxu0 %v636
    %v717 = vpop.f32.mrb[0].mxu0
    %v718 = vadd.f32 0.0, %v717
    %v719 = vpop.f32.mrb[0].mxu0
    %v720 = vadd.f32 0.0, %v719
    %v721 = vpop.f32.mrb[0].mxu0
    %v722 = vpop.f32.mrb[0].mxu0
    %723 = vdwg.mxu0
    %v728 = vcombine.low %v677, %v679
    %v729 = vcombine.low %v718, %v720
    %v731 = vunpack.c.l.s4 1983009808
    %v732 = vunpack.c.0.s8 %v731
    %v733 = vlaneseq
    %v734 = vshrl.u32 %v733, 7
    %v735 = vsub.s32 %v732, %v734
    %v736 = vrot.slane %v728, %v735
    %v738 = vunpack.c.l.s4 1983009808
    %v739 = vunpack.c.0.s8 %v738
    %v740 = vlaneseq
    %v741 = vshrl.u32 %v740, 7
    %v742 = vsub.s32 %v739, %v741
    %v743 = vrot.slane %v729, %v742
    %v744 = vcombine.low %v736, %v743
    %v746 = vadd.f32 %v641, %v744
    %v747 = vmul.f32 %v746, 0.5
    %v748 = vtanh.pop %v747
    %v749 = vadd.f32 %v748, 1.0
    %v750 = vmul.f32 %v749, 0.5
    %v752 = vrot.slane %v746, 6
    %v754 = vtanh.pop %v752
    %v756 = vrot.slane %v750, 2
    %v758 = vmul.f32 %v756, %v631
    %v759 = vmul.f32 %v750, %v754
    %v760 = vadd.f32 %v758, %v759
    %v761 = vtanh.pop %v760
    %v762 = vrot.slane %v750, 4
    %v764 = vmul.f32 %v762, %v761
    %v765 = vpack.c.bf16 %v764, %v764
    %s766 = scalar_lea.vmem [#allocation9], 3
    %767 = vst [vmem:[%s766] sm:$0x1] %v765
    %s768 = scalar_lea.vmem [#allocation4], 16
    %v769 = vld [vmem:[%s768] sm:$0xf]
    %v770 = vunpack.c.l.bf16 %v769
    %771 = vmatprep.subr.bf16.mxu0 %v193
    %772 = vmatpush1.bf16.msra.mxu0 %v192
    %773 = vmatprep.subr.bf16.mxu0 %v197
    %774 = vmatpush1.bf16.msra.mxu0 %v196
    %775 = vmatprep.subr.bf16.mxu0 %v201
    %776 = vmatpush1.bf16.msra.mxu0 %v200
    %777 = vmatprep.subr.bf16.mxu0 %v205
    %778 = vmatpush1.bf16.msra.mxu0 %v204
    %779 = vmatprep.subr.bf16.mxu0 %v209
    %780 = vmatpush1.bf16.msra.mxu0 %v208
    %781 = vmatprep.subr.bf16.mxu0 %v213
    %782 = vmatpush1.bf16.msra.mxu0 %v212
    %783 = vmatprep.subr.bf16.mxu0 %v217
    %784 = vmatpush1.bf16.msra.mxu0 %v216
    %785 = vmatprep.subr.bf16.mxu0 %v221
    %786 = vmatpush1.bf16.msra.mxu0 %v220
    %787 = vmatprep.subr.bf16.mxu0 0
    %788 = vmatpush1.bf16.msra.mxu0 0
    %789 = vmatprep.subr.bf16.mxu0 0
    %790 = vmatpush1.bf16.msra.mxu0 0
    %791 = vmatprep.subr.bf16.mxu0 0
    %792 = vmatpush1.bf16.msra.mxu0 0
    %793 = vmatprep.subr.bf16.mxu0 0
    %794 = vmatpush1.bf16.msra.mxu0 0
    %795 = vmatprep.subr.bf16.mxu0 0
    %796 = vmatpush1.bf16.msra.mxu0 0
    %797 = vmatprep.subr.bf16.mxu0 0
    %798 = vmatpush1.bf16.msra.mxu0 0
    %799 = vmatprep.subr.bf16.mxu0 0
    %800 = vmatpush1.bf16.msra.mxu0 0
    %801 = vmatprep.subr.bf16.mxu0 0
    %802 = vmatpush1.bf16.msra.mxu0 0
    %803 = vmatprep.mubr.bf16.mxu0 0
    %804 = vmatmul.mubr.bf16.gmra.mrb[0].mxu0 %v765
    %v805 = vpop.f32.mrb[0].mxu0
    %v806 = vadd.f32 0.0, %v805
    %v807 = vpop.f32.mrb[0].mxu0
    %v808 = vadd.f32 0.0, %v807
    %v809 = vpop.f32.mrb[0].mxu0
    %v810 = vpop.f32.mrb[0].mxu0
    %811 = vdwg.mxu0
    %812 = vmatprep.subr.bf16.mxu0 %v195
    %813 = vmatpush1.bf16.msra.mxu0 %v194
    %814 = vmatprep.subr.bf16.mxu0 %v199
    %815 = vmatpush1.bf16.msra.mxu0 %v198
    %816 = vmatprep.subr.bf16.mxu0 %v203
    %817 = vmatpush1.bf16.msra.mxu0 %v202
    %818 = vmatprep.subr.bf16.mxu0 %v207
    %819 = vmatpush1.bf16.msra.mxu0 %v206
    %820 = vmatprep.subr.bf16.mxu0 %v211
    %821 = vmatpush1.bf16.msra.mxu0 %v210
    %822 = vmatprep.subr.bf16.mxu0 %v215
    %823 = vmatpush1.bf16.msra.mxu0 %v214
    %824 = vmatprep.subr.bf16.mxu0 %v219
    %825 = vmatpush1.bf16.msra.mxu0 %v218
    %826 = vmatprep.subr.bf16.mxu0 %v223
    %827 = vmatpush1.bf16.msra.mxu0 %v222
    %828 = vmatprep.subr.bf16.mxu0 0
    %829 = vmatpush1.bf16.msra.mxu0 0
    %830 = vmatprep.subr.bf16.mxu0 0
    %831 = vmatpush1.bf16.msra.mxu0 0
    %832 = vmatprep.subr.bf16.mxu0 0
    %833 = vmatpush1.bf16.msra.mxu0 0
    %834 = vmatprep.subr.bf16.mxu0 0
    %835 = vmatpush1.bf16.msra.mxu0 0
    %836 = vmatprep.subr.bf16.mxu0 0
    %837 = vmatpush1.bf16.msra.mxu0 0
    %838 = vmatprep.subr.bf16.mxu0 0
    %839 = vmatpush1.bf16.msra.mxu0 0
    %840 = vmatprep.subr.bf16.mxu0 0
    %841 = vmatpush1.bf16.msra.mxu0 0
    %842 = vmatprep.subr.bf16.mxu0 0
    %843 = vmatpush1.bf16.msra.mxu0 0
    %844 = vmatprep.mubr.bf16.mxu0 0
    %845 = vmatmul.mubr.bf16.gmra.mrb[0].mxu0 %v765
    %v846 = vpop.f32.mrb[0].mxu0
    %v847 = vadd.f32 0.0, %v846
    %v848 = vpop.f32.mrb[0].mxu0
    %v849 = vadd.f32 0.0, %v848
    %v850 = vpop.f32.mrb[0].mxu0
    %v851 = vpop.f32.mrb[0].mxu0
    %852 = vdwg.mxu0
    %v857 = vcombine.low %v806, %v808
    %v858 = vcombine.low %v847, %v849
    %v860 = vunpack.c.l.s4 1983009808
    %v861 = vunpack.c.0.s8 %v860
    %v862 = vlaneseq
    %v863 = vshrl.u32 %v862, 7
    %v864 = vsub.s32 %v861, %v863
    %v865 = vrot.slane %v857, %v864
    %v867 = vunpack.c.l.s4 1983009808
    %v868 = vunpack.c.0.s8 %v867
    %v869 = vlaneseq
    %v870 = vshrl.u32 %v869, 7
    %v871 = vsub.s32 %v868, %v870
    %v872 = vrot.slane %v858, %v871
    %v873 = vcombine.low %v865, %v872
    %v875 = vadd.f32 %v770, %v873
    %v876 = vmul.f32 %v875, 0.5
    %v877 = vtanh.pop %v876
    %v878 = vadd.f32 %v877, 1.0
    %v879 = vmul.f32 %v878, 0.5
    %v881 = vrot.slane %v875, 6
    %v883 = vtanh.pop %v881
    %v885 = vrot.slane %v879, 2
    %v887 = vmul.f32 %v885, %v760
    %v888 = vmul.f32 %v879, %v883
    %v889 = vadd.f32 %v887, %v888
    %v890 = vtanh.pop %v889
    %v891 = vrot.slane %v879, 4
    %v893 = vmul.f32 %v891, %v890
    %v894 = vpack.c.bf16 %v893, %v893
    %s895 = scalar_lea.vmem [#allocation9], 4
    %896 = vst [vmem:[%s895] sm:$0x1] %v894
    %s897 = scalar_lea.vmem [#allocation4], 20
    %v898 = vld [vmem:[%s897] sm:$0xf]
    %v899 = vunpack.c.l.bf16 %v898
    %900 = vmatprep.subr.bf16.mxu0 %v193
    %901 = vmatpush1.bf16.msra.mxu0 %v192
    %902 = vmatprep.subr.bf16.mxu0 %v197
    %903 = vmatpush1.bf16.msra.mxu0 %v196
    %904 = vmatprep.subr.bf16.mxu0 %v201
    %905 = vmatpush1.bf16.msra.mxu0 %v200
    %906 = vmatprep.subr.bf16.mxu0 %v205
    %907 = vmatpush1.bf16.msra.mxu0 %v204
    %908 = vmatprep.subr.bf16.mxu0 %v209
    %909 = vmatpush1.bf16.msra.mxu0 %v208
    %910 = vmatprep.subr.bf16.mxu0 %v213
    %911 = vmatpush1.bf16.msra.mxu0 %v212
    %912 = vmatprep.subr.bf16.mxu0 %v217
    %913 = vmatpush1.bf16.msra.mxu0 %v216
    %914 = vmatprep.subr.bf16.mxu0 %v221
    %915 = vmatpush1.bf16.msra.mxu0 %v220
    %916 = vmatprep.subr.bf16.mxu0 0
    %917 = vmatpush1.bf16.msra.mxu0 0
    %918 = vmatprep.subr.bf16.mxu0 0
    %919 = vmatpush1.bf16.msra.mxu0 0
    %920 = vmatprep.subr.bf16.mxu0 0
    %921 = vmatpush1.bf16.msra.mxu0 0
    %922 = vmatprep.subr.bf16.mxu0 0
    %923 = vmatpush1.bf16.msra.mxu0 0
    %924 = vmatprep.subr.bf16.mxu0 0
    %925 = vmatpush1.bf16.msra.mxu0 0
    %926 = vmatprep.subr.bf16.mxu0 0
    %927 = vmatpush1.bf16.msra.mxu0 0
    %928 = vmatprep.subr.bf16.mxu0 0
    %929 = vmatpush1.bf16.msra.mxu0 0
    %930 = vmatprep.subr.bf16.mxu0 0
    %931 = vmatpush1.bf16.msra.mxu0 0
    %932 = vmatprep.mubr.bf16.mxu0 0
    %933 = vmatmul.mubr.bf16.gmra.mrb[0].mxu0 %v894
    %v934 = vpop.f32.mrb[0].mxu0
    %v935 = vadd.f32 0.0, %v934
    %v936 = vpop.f32.mrb[0].mxu0
    %v937 = vadd.f32 0.0, %v936
    %v938 = vpop.f32.mrb[0].mxu0
    %v939 = vpop.f32.mrb[0].mxu0
    %940 = vdwg.mxu0
    %941 = vmatprep.subr.bf16.mxu0 %v195
    %942 = vmatpush1.bf16.msra.mxu0 %v194
    %943 = vmatprep.subr.bf16.mxu0 %v199
    %944 = vmatpush1.bf16.msra.mxu0 %v198
    %945 = vmatprep.subr.bf16.mxu0 %v203
    %946 = vmatpush1.bf16.msra.mxu0 %v202
    %947 = vmatprep.subr.bf16.mxu0 %v207
    %948 = vmatpush1.bf16.msra.mxu0 %v206
    %949 = vmatprep.subr.bf16.mxu0 %v211
    %950 = vmatpush1.bf16.msra.mxu0 %v210
    %951 = vmatprep.subr.bf16.mxu0 %v215
    %952 = vmatpush1.bf16.msra.mxu0 %v214
    %953 = vmatprep.subr.bf16.mxu0 %v219
    %954 = vmatpush1.bf16.msra.mxu0 %v218
    %955 = vmatprep.subr.bf16.mxu0 %v223
    %956 = vmatpush1.bf16.msra.mxu0 %v222
    %957 = vmatprep.subr.bf16.mxu0 0
    %958 = vmatpush1.bf16.msra.mxu0 0
    %959 = vmatprep.subr.bf16.mxu0 0
    %960 = vmatpush1.bf16.msra.mxu0 0
    %961 = vmatprep.subr.bf16.mxu0 0
    %962 = vmatpush1.bf16.msra.mxu0 0
    %963 = vmatprep.subr.bf16.mxu0 0
    %964 = vmatpush1.bf16.msra.mxu0 0
    %965 = vmatprep.subr.bf16.mxu0 0
    %966 = vmatpush1.bf16.msra.mxu0 0
    %967 = vmatprep.subr.bf16.mxu0 0
    %968 = vmatpush1.bf16.msra.mxu0 0
    %969 = vmatprep.subr.bf16.mxu0 0
    %970 = vmatpush1.bf16.msra.mxu0 0
    %971 = vmatprep.subr.bf16.mxu0 0
    %972 = vmatpush1.bf16.msra.mxu0 0
    %973 = vmatprep.mubr.bf16.mxu0 0
    %974 = vmatmul.mubr.bf16.gmra.mrb[0].mxu0 %v894
    %v975 = vpop.f32.mrb[0].mxu0
    %v976 = vadd.f32 0.0, %v975
    %v977 = vpop.f32.mrb[0].mxu0
    %v978 = vadd.f32 0.0, %v977
    %v979 = vpop.f32.mrb[0].mxu0
    %v980 = vpop.f32.mrb[0].mxu0
    %981 = vdwg.mxu0
    %v986 = vcombine.low %v935, %v937
    %v987 = vcombine.low %v976, %v978
    %v989 = vunpack.c.l.s4 1983009808
    %v990 = vunpack.c.0.s8 %v989
    %v991 = vlaneseq
    %v992 = vshrl.u32 %v991, 7
    %v993 = vsub.s32 %v990, %v992
    %v994 = vrot.slane %v986, %v993
    %v996 = vunpack.c.l.s4 1983009808
    %v997 = vunpack.c.0.s8 %v996
    %v998 = vlaneseq
    %v999 = vshrl.u32 %v998, 7
    %v1000 = vsub.s32 %v997, %v999
    %v1001 = vrot.slane %v987, %v1000
    %v1002 = vcombine.low %v994, %v1001
    %v1004 = vadd.f32 %v899, %v1002
    %v1005 = vmul.f32 %v1004, 0.5
    %v1006 = vtanh.pop %v1005
    %v1007 = vadd.f32 %v1006, 1.0
    %v1008 = vmul.f32 %v1007, 0.5
    %v1010 = vrot.slane %v1004, 6
    %v1012 = vtanh.pop %v1010
    %v1014 = vrot.slane %v1008, 2
    %v1016 = vmul.f32 %v1014, %v889
    %v1017 = vmul.f32 %v1008, %v1012
    %v1018 = vadd.f32 %v1016, %v1017
    %v1019 = vtanh.pop %v1018
    %v1020 = vrot.slane %v1008, 4
    %v1022 = vmul.f32 %v1020, %v1019
    %v1023 = vpack.c.bf16 %v1022, %v1022
    %s1024 = scalar_lea.vmem [#allocation9], 5
    %1025 = vst [vmem:[%s1024] sm:$0x1] %v1023
    %s1026 = scalar_lea.vmem [#allocation4], 24
    %v1027 = vld [vmem:[%s1026] sm:$0xf]
    %v1028 = vunpack.c.l.bf16 %v1027
    %1029 = vmatprep.subr.bf16.mxu0 %v193
    %1030 = vmatpush1.bf16.msra.mxu0 %v192
    %1031 = vmatprep.subr.bf16.mxu0 %v197
    %1032 = vmatpush1.bf16.msra.mxu0 %v196
    %1033 = vmatprep.subr.bf16.mxu0 %v201
    %1034 = vmatpush1.bf16.msra.mxu0 %v200
    %1035 = vmatprep.subr.bf16.mxu0 %v205
    %1036 = vmatpush1.bf16.msra.mxu0 %v204
    %1037 = vmatprep.subr.bf16.mxu0 %v209
    %1038 = vmatpush1.bf16.msra.mxu0 %v208
    %1039 = vmatprep.subr.bf16.mxu0 %v213
    %1040 = vmatpush1.bf16.msra.mxu0 %v212
    %1041 = vmatprep.subr.bf16.mxu0 %v217
    %1042 = vmatpush1.bf16.msra.mxu0 %v216
    %1043 = vmatprep.subr.bf16.mxu0 %v221
    %1044 = vmatpush1.bf16.msra.mxu0 %v220
    %1045 = vmatprep.subr.bf16.mxu0 0
    %1046 = vmatpush1.bf16.msra.mxu0 0
    %1047 = vmatprep.subr.bf16.mxu0 0
    %1048 = vmatpush1.bf16.msra.mxu0 0
    %1049 = vmatprep.subr.bf16.mxu0 0
    %1050 = vmatpush1.bf16.msra.mxu0 0
    %1051 = vmatprep.subr.bf16.mxu0 0
    %1052 = vmatpush1.bf16.msra.mxu0 0
    %1053 = vmatprep.subr.bf16.mxu0 0
    %1054 = vmatpush1.bf16.msra.mxu0 0
    %1055 = vmatprep.subr.bf16.mxu0 0
    %1056 = vmatpush1.bf16.msra.mxu0 0
    %1057 = vmatprep.subr.bf16.mxu0 0
    %1058 = vmatpush1.bf16.msra.mxu0 0
    %1059 = vmatprep.subr.bf16.mxu0 0
    %1060 = vmatpush1.bf16.msra.mxu0 0
    %1061 = vmatprep.mubr.bf16.mxu0 0
    %1062 = vmatmul.mubr.bf16.gmra.mrb[0].mxu0 %v1023
    %v1063 = vpop.f32.mrb[0].mxu0
    %v1064 = vadd.f32 0.0, %v1063
    %v1065 = vpop.f32.mrb[0].mxu0
    %v1066 = vadd.f32 0.0, %v1065
    %v1067 = vpop.f32.mrb[0].mxu0
    %v1068 = vpop.f32.mrb[0].mxu0
    %1069 = vdwg.mxu0
    %1070 = vmatprep.subr.bf16.mxu0 %v195
    %1071 = vmatpush1.bf16.msra.mxu0 %v194
    %1072 = vmatprep.subr.bf16.mxu0 %v199
    %1073 = vmatpush1.bf16.msra.mxu0 %v198
    %1074 = vmatprep.subr.bf16.mxu0 %v203
    %1075 = vmatpush1.bf16.msra.mxu0 %v202
    %1076 = vmatprep.subr.bf16.mxu0 %v207
    %1077 = vmatpush1.bf16.msra.mxu0 %v206
    %1078 = vmatprep.subr.bf16.mxu0 %v211
    %1079 = vmatpush1.bf16.msra.mxu0 %v210
    %1080 = vmatprep.subr.bf16.mxu0 %v215
    %1081 = vmatpush1.bf16.msra.mxu0 %v214
    %1082 = vmatprep.subr.bf16.mxu0 %v219
    %1083 = vmatpush1.bf16.msra.mxu0 %v218
    %1084 = vmatprep.subr.bf16.mxu0 %v223
    %1085 = vmatpush1.bf16.msra.mxu0 %v222
    %1086 = vmatprep.subr.bf16.mxu0 0
    %1087 = vmatpush1.bf16.msra.mxu0 0
    %1088 = vmatprep.subr.bf16.mxu0 0
    %1089 = vmatpush1.bf16.msra.mxu0 0
    %1090 = vmatprep.subr.bf16.mxu0 0
    %1091 = vmatpush1.bf16.msra.mxu0 0
    %1092 = vmatprep.subr.bf16.mxu0 0
    %1093 = vmatpush1.bf16.msra.mxu0 0
    %1094 = vmatprep.subr.bf16.mxu0 0
    %1095 = vmatpush1.bf16.msra.mxu0 0
    %1096 = vmatprep.subr.bf16.mxu0 0
    %1097 = vmatpush1.bf16.msra.mxu0 0
    %1098 = vmatprep.subr.bf16.mxu0 0
    %1099 = vmatpush1.bf16.msra.mxu0 0
    %1100 = vmatprep.subr.bf16.mxu0 0
    %1101 = vmatpush1.bf16.msra.mxu0 0
    %1102 = vmatprep.mubr.bf16.mxu0 0
    %1103 = vmatmul.mubr.bf16.gmra.mrb[0].mxu0 %v1023
    %v1104 = vpop.f32.mrb[0].mxu0
    %v1105 = vadd.f32 0.0, %v1104
    %v1106 = vpop.f32.mrb[0].mxu0
    %v1107 = vadd.f32 0.0, %v1106
    %v1108 = vpop.f32.mrb[0].mxu0
    %v1109 = vpop.f32.mrb[0].mxu0
    %1110 = vdwg.mxu0
    %v1115 = vcombine.low %v1064, %v1066
    %v1116 = vcombine.low %v1105, %v1107
    %v1118 = vunpack.c.l.s4 1983009808
    %v1119 = vunpack.c.0.s8 %v1118
    %v1120 = vlaneseq
    %v1121 = vshrl.u32 %v1120, 7
    %v1122 = vsub.s32 %v1119, %v1121
    %v1123 = vrot.slane %v1115, %v1122
    %v1125 = vunpack.c.l.s4 1983009808
    %v1126 = vunpack.c.0.s8 %v1125
    %v1127 = vlaneseq
    %v1128 = vshrl.u32 %v1127, 7
    %v1129 = vsub.s32 %v1126, %v1128
    %v1130 = vrot.slane %v1116, %v1129
    %v1131 = vcombine.low %v1123, %v1130
    %v1133 = vadd.f32 %v1028, %v1131
    %v1134 = vmul.f32 %v1133, 0.5
    %v1135 = vtanh.pop %v1134
    %v1136 = vadd.f32 %v1135, 1.0
    %v1137 = vmul.f32 %v1136, 0.5
    %v1139 = vrot.slane %v1133, 6
    %v1141 = vtanh.pop %v1139
    %v1143 = vrot.slane %v1137, 2
    %v1145 = vmul.f32 %v1143, %v1018
    %v1146 = vmul.f32 %v1137, %v1141
    %v1147 = vadd.f32 %v1145, %v1146
    %v1148 = vtanh.pop %v1147
    %v1149 = vrot.slane %v1137, 4
    %v1151 = vmul.f32 %v1149, %v1148
    %v1152 = vpack.c.bf16 %v1151, %v1151
    %s1153 = scalar_lea.vmem [#allocation9], 6
    %1154 = vst [vmem:[%s1153] sm:$0x1] %v1152
    %s1155 = scalar_lea.vmem [#allocation4], 28
    %v1156 = vld [vmem:[%s1155] sm:$0xf]
    %v1157 = vunpack.c.l.bf16 %v1156
    %1158 = vmatprep.subr.bf16.mxu0 %v193
    %1159 = vmatpush1.bf16.msra.mxu0 %v192
    %1160 = vmatprep.subr.bf16.mxu0 %v197
    %1161 = vmatpush1.bf16.msra.mxu0 %v196
    %1162 = vmatprep.subr.bf16.mxu0 %v201
    %1163 = vmatpush1.bf16.msra.mxu0 %v200
    %1164 = vmatprep.subr.bf16.mxu0 %v205
    %1165 = vmatpush1.bf16.msra.mxu0 %v204
    %1166 = vmatprep.subr.bf16.mxu0 %v209
    %1167 = vmatpush1.bf16.msra.mxu0 %v208
    %1168 = vmatprep.subr.bf16.mxu0 %v213
    %1169 = vmatpush1.bf16.msra.mxu0 %v212
    %1170 = vmatprep.subr.bf16.mxu0 %v217
    %1171 = vmatpush1.bf16.msra.mxu0 %v216
    %1172 = vmatprep.subr.bf16.mxu0 %v221
    %1173 = vmatpush1.bf16.msra.mxu0 %v220
    %1174 = vmatprep.subr.bf16.mxu0 0
    %1175 = vmatpush1.bf16.msra.mxu0 0
    %1176 = vmatprep.subr.bf16.mxu0 0
    %1177 = vmatpush1.bf16.msra.mxu0 0
    %1178 = vmatprep.subr.bf16.mxu0 0
    %1179 = vmatpush1.bf16.msra.mxu0 0
    %1180 = vmatprep.subr.bf16.mxu0 0
    %1181 = vmatpush1.bf16.msra.mxu0 0
    %1182 = vmatprep.subr.bf16.mxu0 0
    %1183 = vmatpush1.bf16.msra.mxu0 0
    %1184 = vmatprep.subr.bf16.mxu0 0
    %1185 = vmatpush1.bf16.msra.mxu0 0
    %1186 = vmatprep.subr.bf16.mxu0 0
    %1187 = vmatpush1.bf16.msra.mxu0 0
    %1188 = vmatprep.subr.bf16.mxu0 0
    %1189 = vmatpush1.bf16.msra.mxu0 0
    %1190 = vmatprep.mubr.bf16.mxu0 0
    %1191 = vmatmul.mubr.bf16.gmra.mrb[0].mxu0 %v1152
    %v1192 = vpop.f32.mrb[0].mxu0
    %v1193 = vadd.f32 0.0, %v1192
    %v1194 = vpop.f32.mrb[0].mxu0
    %v1195 = vadd.f32 0.0, %v1194
    %v1196 = vpop.f32.mrb[0].mxu0
    %v1197 = vpop.f32.mrb[0].mxu0
    %1198 = vdwg.mxu0
    %1199 = vmatprep.subr.bf16.mxu0 %v195
    %1200 = vmatpush1.bf16.msra.mxu0 %v194
    %1201 = vmatprep.subr.bf16.mxu0 %v199
    %1202 = vmatpush1.bf16.msra.mxu0 %v198
    %1203 = vmatprep.subr.bf16.mxu0 %v203
    %1204 = vmatpush1.bf16.msra.mxu0 %v202
    %1205 = vmatprep.subr.bf16.mxu0 %v207
    %1206 = vmatpush1.bf16.msra.mxu0 %v206
    %1207 = vmatprep.subr.bf16.mxu0 %v211
    %1208 = vmatpush1.bf16.msra.mxu0 %v210
    %1209 = vmatprep.subr.bf16.mxu0 %v215
    %1210 = vmatpush1.bf16.msra.mxu0 %v214
    %1211 = vmatprep.subr.bf16.mxu0 %v219
    %1212 = vmatpush1.bf16.msra.mxu0 %v218
    %1213 = vmatprep.subr.bf16.mxu0 %v223
    %1214 = vmatpush1.bf16.msra.mxu0 %v222
    %1215 = vmatprep.subr.bf16.mxu0 0
    %1216 = vmatpush1.bf16.msra.mxu0 0
    %1217 = vmatprep.subr.bf16.mxu0 0
    %1218 = vmatpush1.bf16.msra.mxu0 0
    %1219 = vmatprep.subr.bf16.mxu0 0
    %1220 = vmatpush1.bf16.msra.mxu0 0
    %1221 = vmatprep.subr.bf16.mxu0 0
    %1222 = vmatpush1.bf16.msra.mxu0 0
    %1223 = vmatprep.subr.bf16.mxu0 0
    %1224 = vmatpush1.bf16.msra.mxu0 0
    %1225 = vmatprep.subr.bf16.mxu0 0
    %1226 = vmatpush1.bf16.msra.mxu0 0
    %1227 = vmatprep.subr.bf16.mxu0 0
    %1228 = vmatpush1.bf16.msra.mxu0 0
    %1229 = vmatprep.subr.bf16.mxu0 0
    %1230 = vmatpush1.bf16.msra.mxu0 0
    %1231 = vmatprep.mubr.bf16.mxu0 0
    %1232 = vmatmul.mubr.bf16.gmra.mrb[0].mxu0 %v1152
    %v1233 = vpop.f32.mrb[0].mxu0
    %v1234 = vadd.f32 0.0, %v1233
    %v1235 = vpop.f32.mrb[0].mxu0
    %v1236 = vadd.f32 0.0, %v1235
    %v1237 = vpop.f32.mrb[0].mxu0
    %v1238 = vpop.f32.mrb[0].mxu0
    %1239 = vdwg.mxu0
    %v1244 = vcombine.low %v1193, %v1195
    %v1245 = vcombine.low %v1234, %v1236
    %v1247 = vunpack.c.l.s4 1983009808
    %v1248 = vunpack.c.0.s8 %v1247
    %v1249 = vlaneseq
    %v1250 = vshrl.u32 %v1249, 7
    %v1251 = vsub.s32 %v1248, %v1250
    %v1252 = vrot.slane %v1244, %v1251
    %v1254 = vunpack.c.l.s4 1983009808
    %v1255 = vunpack.c.0.s8 %v1254
    %v1256 = vlaneseq
    %v1257 = vshrl.u32 %v1256, 7
    %v1258 = vsub.s32 %v1255, %v1257
    %v1259 = vrot.slane %v1245, %v1258
    %v1260 = vcombine.low %v1252, %v1259
    %v1262 = vadd.f32 %v1157, %v1260
    %v1263 = vmul.f32 %v1262, 0.5
    %v1264 = vtanh.pop %v1263
    %v1265 = vadd.f32 %v1264, 1.0
    %v1266 = vmul.f32 %v1265, 0.5
    %v1268 = vrot.slane %v1262, 6
    %v1270 = vtanh.pop %v1268
    %v1272 = vrot.slane %v1266, 2
    %v1274 = vmul.f32 %v1272, %v1147
    %v1275 = vmul.f32 %v1266, %v1270
    %v1276 = vadd.f32 %v1274, %v1275
    %v1277 = vtanh.pop %v1276
    %v1278 = vrot.slane %v1266, 4
    %v1280 = vmul.f32 %v1278, %v1277
    %v1281 = vpack.c.bf16 %v1280, %v1280
    %s1282 = scalar_lea.vmem [#allocation9], 7
    %1283 = vst [vmem:[%s1282] sm:$0x1] %v1281
    %1284 = vst [vmem:[#allocation2] sm:$0x3] %v1280
    %1285 = vst [vmem:[#allocation3] sm:$0x3] %v1276
    %1286 = vst [vmem:[#allocation10] sm:$0x3] %v1280
    %1287 = vst [vmem:[#allocation12] sm:$0x3] %v1276
    // Predicated region
    $region30: #{tpu_custom_call.1} parent=1 // pred_check
      _
    $region31: #{tpu_custom_call.1} parent=1 // pred_check_branch
      %1289 = sbr.rel (0) target = $region33
    $region32: #{tpu_custom_call.1} parent=1 // pred_region
      %s1291 = ssub.s32 128, 128
      %1292 = vsyncadd [#allocation6], %s1291
      %s1293 = sshll.u32 [#allocation9], 4
      %s1294 = int_to_ptr.vmem [resolvable:$true] %s1293
      %1299 = dma.vmem_to_hbm [thread:$0]  %s1294, 128, %s4, [#allocation6], 16, 16, 1
    $region33: #{tpu_custom_call.1} parent=1 // pred_fallthru
      _
    // Predicated region
    $region34: #{tpu_custom_call.1} parent=1 // pred_check
      _
    $region35: #{tpu_custom_call.1} parent=1 // pred_check_branch
      %1301 = sbr.rel (0) target = $region37
    $region36: #{tpu_custom_call.1} parent=1 // pred_region
      %s1303 = ssub.s32 32, 32
      %1304 = vsyncadd [#allocation11], %s1303
      %s1306 = sshll.u32 [#allocation10], 4
      %s1307 = int_to_ptr.vmem [resolvable:$true] %s1306
      %1309 = dma.vmem_to_hbm [thread:$0]  %s1307, 32, %s5, [#allocation11]
    $region37: #{tpu_custom_call.1} parent=1 // pred_fallthru
      _
    // Predicated region
    $region38: #{tpu_custom_call.1} parent=1 // pred_check
      _
    $region39: #{tpu_custom_call.1} parent=1 // pred_check_branch
      %1311 = sbr.rel (0) target = $region41
    $region40: #{tpu_custom_call.1} parent=1 // pred_region
      %s1313 = ssub.s32 32, 32
      %1314 = vsyncadd [#allocation11], %s1313
      %s1316 = sshll.u32 [#allocation12], 4
      %s1317 = int_to_ptr.vmem [resolvable:$true] %s1316
      %1319 = dma.vmem_to_hbm [thread:$0]  %s1317, 32, %s6, [#allocation11]
    $region41: #{tpu_custom_call.1} parent=1 // pred_fallthru
      _
    // Predicated region
    $region42: #{tpu_custom_call.1} parent=1 // pred_check
      _
    $region43: #{tpu_custom_call.1} parent=1 // pred_check_branch
      %1321 = sbr.rel (0) target = $region45
    $region44: #{tpu_custom_call.1} parent=1 // pred_region
      %1322 = dma.done [#allocation6], 128
    $region45: #{tpu_custom_call.1} parent=1 // pred_fallthru
      _
    // Predicated region
    $region46: #{tpu_custom_call.1} parent=1 // pred_check
      _
    $region47: #{tpu_custom_call.1} parent=1 // pred_check_branch
      %1324 = sbr.rel (0) target = $region49
    $region48: #{tpu_custom_call.1} parent=1 // pred_region
      %1325 = dma.done [#allocation11], 32
    $region49: #{tpu_custom_call.1} parent=1 // pred_fallthru
      _
    // Predicated region
    $region50: #{tpu_custom_call.1} parent=1 // pred_check
      _
    $region51: #{tpu_custom_call.1} parent=1 // pred_check_branch
      %1327 = sbr.rel (0) target = $region53
    $region52: #{tpu_custom_call.1} parent=1 // pred_region
      %1328 = dma.done [#allocation11], 32
    $region53: #{tpu_custom_call.1} parent=1 // pred_fallthru
      _
    %1329 = vsyncpa [#allocation5], 1
    %1330 = vsyncpa [#allocation8], 1
    %1331 = vsyncpa [#allocation6], 1
    %1332 = vsyncpa [#allocation11], 1

// kernel: tpu_custom_call.1
$region0: #{tpu_custom_call.1}
  #allocation0 [shape = 'u32[]', space=smem, size = 0x4, offset = 0x4, fixed_abs, tag = 'smem constant byte address 0x4 - core index']
  #allocation1 [shape = 'u32[144,128]{1,0:T(1,128)}', space=vmem, size = 0x12000, scoped, tag = 'internal scratch']
  #allocation2 [shape = 'f32[2,128]{1,0:T(2,128)}', space=vmem, size = 0x400, scoped, tag = 'scratch operand']
  #allocation3 [shape = 'f32[2,128]{1,0:T(2,128)}', space=vmem, size = 0x400, scoped, tag = 'scratch operand']
  %s0 = inlined_call_operand.hbm [shape: bf16[8,2,512], index: 0, kind: input, shape index: {}]
  %s1 = inlined_call_operand.vmem [shape: f32[2,128], index: 1, kind: input, shape index: {}]
  %s2 = inlined_call_operand.vmem [shape: f32[2,128], index: 2, kind: input, shape index: {}]
  %s3 = inlined_call_operand.hbm [shape: bf16[128,512], index: 3, kind: input, shape index: {}]
  %s4 = inlined_call_operand.hbm [shape: bf16[8,2,128], index: 4, kind: output, shape index: {0}]
  %s5 = inlined_call_operand.hbm [shape: f32[2,128], index: 5, kind: output, shape index: {1}]
  %s6 = inlined_call_operand.hbm [shape: f32[2,128], index: 6, kind: output, shape index: {2}]
  %7 = xla_tuple %s4, %s5, %s6
  %s8 = sld [smem:[#allocation0]]
  $region54: #{tpu_custom_call.1} parent=0
    _
  %s10 = ssub.s32 1, %s8
  %s11 = scalar_select 0, %s10, %s8
  $region1: #{tpu_custom_call.1} parent=0
    #allocation4 [shape = 'u8[16384]{0}', space=vmem, size = 0x4000, scoped, tag = 'input window, operand 0, single buffered']
    #allocation5 [shape = 's32[1]{0}', space=sflag, size = 0x4, scoped, tag = 'scoped memory for tpu_custom_call.1']
    #allocation6 [shape = 's32[1]{0}', space=sflag, size = 0x4, scoped, tag = 'scoped memory for tpu_custom_call.1']
    #allocation7 [shape = 'u8[131072]{0}', space=vmem, size = 0x20000, scoped, tag = 'input window, operand 3, single buffered']
    #allocation8 [shape = 's32[1]{0}', space=sflag, size = 0x4, scoped, tag = 'scoped memory for tpu_custom_call.1']
    #allocation9 [shape = 'u8[4096]{0}', space=vmem, size = 0x1000, scoped, tag = 'output window, operand 0, single buffered']
    #allocation10 [shape = 'u8[1024]{0}', space=vmem, size = 0x400, scoped, tag = 'output window, operand 1, single buffered']
    #allocation11 [shape = 's32[1]{0}', space=sflag, size = 0x4, scoped, tag = 'scoped memory for tpu_custom_call.1']
    #allocation12 [shape = 'u8[1024]{0}', space=vmem, size = 0x400, scoped, tag = 'output window, operand 2, single buffered']
    %12 = vsyncpa [#allocation5], 0
    %13 = vsyncpa [#allocation8], 0
    %14 = vsyncpa [#allocation6], 0
    %15 = vsyncpa [#allocation11], 0
    // Predicated region
    $region2: #{tpu_custom_call.1} parent=1 // pred_check
      _
    $region3: #{tpu_custom_call.1} parent=1 // pred_check_branch
      %17 = sbr.rel (0) target = $region5
    $region4: #{tpu_custom_call.1} parent=1 // pred_region
      %s19 = ssub.s32 512, 512
      %20 = vsyncadd [#allocation5], %s19
      %s21 = sshll.u32 [#allocation4], 4
      %s22 = int_to_ptr.vmem [resolvable:$true] %s21
      %27 = dma.hbm_to_vmem [thread:$0]  %s0, 512, %s22, [#allocation5], 64, 64, 4
    $region5: #{tpu_custom_call.1} parent=1 // pred_fallthru
      _
    // Predicated region
    $region6: #{tpu_custom_call.1} parent=1 // pred_check
      _
    $region7: #{tpu_custom_call.1} parent=1 // pred_check_branch
      %29 = sbr.rel (0) target = $region9
    $region8: #{tpu_custom_call.1} parent=1 // pred_region
      _
    $region9: #{tpu_custom_call.1} parent=1 // pred_fallthru
      _
    // Predicated region
    $region10: #{tpu_custom_call.1} parent=1 // pred_check
      _
    $region11: #{tpu_custom_call.1} parent=1 // pred_check_branch
      %31 = sbr.rel (0) target = $region13
    $region12: #{tpu_custom_call.1} parent=1 // pred_region
      _
    $region13: #{tpu_custom_call.1} parent=1 // pred_fallthru
      _
    // Predicated region
    $region14: #{tpu_custom_call.1} parent=1 // pred_check
      _
    $region15: #{tpu_custom_call.1} parent=1 // pred_check_branch
      %33 = sbr.rel (0) target = $region17
    $region16: #{tpu_custom_call.1} parent=1 // pred_region
      %s35 = ssub.s32 4096, 4096
      %36 = vsyncadd [#allocation8], %s35
      %s37 = sshll.u32 [#allocation7], 4
      %s38 = int_to_ptr.vmem [resolvable:$true] %s37
      %43 = dma.hbm_to_vmem [thread:$0]  %s3, 4096, %s38, [#allocation8], 256, 256, 16
    $region17: #{tpu_custom_call.1} parent=1 // pred_fallthru
      _
    // Predicated region
    $region18: #{tpu_custom_call.1} parent=1 // pred_check
      _
    $region19: #{tpu_custom_call.1} parent=1 // pred_check_branch
      %45 = sbr.rel (0) target = $region21
    $region20: #{tpu_custom_call.1} parent=1 // pred_region
      %46 = dma.done [#allocation5], 512
    $region21: #{tpu_custom_call.1} parent=1 // pred_fallthru
      _
    // Predicated region
    $region22: #{tpu_custom_call.1} parent=1 // pred_check
      _
    $region23: #{tpu_custom_call.1} parent=1 // pred_check_branch
      %48 = sbr.rel (0) target = $region25
    $region24: #{tpu_custom_call.1} parent=1 // pred_region
      %49 = dma.done [#allocation8], 4096
    $region25: #{tpu_custom_call.1} parent=1 // pred_fallthru
      _
    %p51 = scmp.eq.s32.totalorder 0, 0
    // Predicated region
    $region26: #{tpu_custom_call.1} parent=1 // pred_check
      %p52 = pneg %p51
    $region27: #{tpu_custom_call.1} parent=1 // pred_check_branch
      %54 = sbr.rel (%p52) target = $region29
    $region28: #{tpu_custom_call.1} parent=1 // pred_region
      %v55 = vld [vmem:[%s1] sm:$0x3]
      %56 = vst [vmem:[#allocation2] sm:$0x3] %v55
      %v57 = vld [vmem:[%s2] sm:$0x3]
      %58 = vst [vmem:[#allocation3] sm:$0x3] %v57
    $region29: #{tpu_custom_call.1} parent=1 // pred_fallthru
      _
    %v59 = vld [vmem:[#allocation7] sm:$0xff]
    %v60 = vld [vmem:[#allocation7 + $0x8] sm:$0xff]
    %v61 = vld [vmem:[#allocation7 + $0x10] sm:$0xff]
    %v62 = vld [vmem:[#allocation7 + $0x18] sm:$0xff]
    %v63 = vld [vmem:[#allocation7 + $0x20] sm:$0xff]
    %v64 = vld [vmem:[#allocation7 + $0x28] sm:$0xff]
    %v65 = vld [vmem:[#allocation7 + $0x30] sm:$0xff]
    %v66 = vld [vmem:[#allocation7 + $0x38] sm:$0xff]
    %v67 = vld [vmem:[#allocation7 + $0x40] sm:$0xff]
    %v68 = vld [vmem:[#allocation7 + $0x48] sm:$0xff]
    %v69 = vld [vmem:[#allocation7 + $0x50] sm:$0xff]
    %v70 = vld [vmem:[#allocation7 + $0x58] sm:$0xff]
    %v71 = vld [vmem:[#allocation7 + $0x60] sm:$0xff]
    %v72 = vld [vmem:[#allocation7 + $0x68] sm:$0xff]
    %v73 = vld [vmem:[#allocation7 + $0x70] sm:$0xff]
    %v74 = vld [vmem:[#allocation7 + $0x78] sm:$0xff]
    %v75 = vld [vmem:[#allocation7 + $0x80] sm:$0xff]
    %v76 = vld [vmem:[#allocation7 + $0x88] sm:$0xff]
    %v77 = vld [vmem:[#allocation7 + $0x90] sm:$0xff]
    %v78 = vld [vmem:[#allocation7 + $0x98] sm:$0xff]
    %v79 = vld [vmem:[#allocation7 + $0xa0] sm:$0xff]
    %v80 = vld [vmem:[#allocation7 + $0xa8] sm:$0xff]
    %v81 = vld [vmem:[#allocation7 + $0xb0] sm:$0xff]
    %v82 = vld [vmem:[#allocation7 + $0xb8] sm:$0xff]
    %v83 = vld [vmem:[#allocation7 + $0xc0] sm:$0xff]
    %v84 = vld [vmem:[#allocation7 + $0xc8] sm:$0xff]
    %v85 = vld [vmem:[#allocation7 + $0xd0] sm:$0xff]
    %v86 = vld [vmem:[#allocation7 + $0xd8] sm:$0xff]
    %v87 = vld [vmem:[#allocation7 + $0xe0] sm:$0xff]
    %v88 = vld [vmem:[#allocation7 + $0xe8] sm:$0xff]
    %v89 = vld [vmem:[#allocation7 + $0xf0] sm:$0xff]
    %v90 = vld [vmem:[#allocation7 + $0xf8] sm:$0xff]
    %v91 = vld [vmem:[#allocation2] sm:$0x3]
    %v92 = vld [vmem:[#allocation3] sm:$0x3]
    %v93 = vld [vmem:[#allocation4] sm:$0xf]
    %v94 = vunpack.c.l.bf16 %v93
    %v95 = vpack.c.bf16 %v91, %v91
    %v128 = vunpack.c.l.b16 %v59
    %v129 = vunpack.c.h.b16 %v59
    %v130 = vunpack.c.l.b16 %v60
    %v131 = vunpack.c.h.b16 %v60
    %v132 = vunpack.c.l.b16 %v61
    %v133 = vunpack.c.h.b16 %v61
    %v134 = vunpack.c.l.b16 %v62
    %v135 = vunpack.c.h.b16 %v62
    %v136 = vunpack.c.l.b16 %v63
    %v137 = vunpack.c.h.b16 %v63
    %v138 = vunpack.c.l.b16 %v64
    %v139 = vunpack.c.h.b16 %v64
    %v140 = vunpack.c.l.b16 %v65
    %v141 = vunpack.c.h.b16 %v65
    %v142 = vunpack.c.l.b16 %v66
    %v143 = vunpack.c.h.b16 %v66
    %v144 = vunpack.c.l.b16 %v67
    %v145 = vunpack.c.h.b16 %v67
    %v146 = vunpack.c.l.b16 %v68
    %v147 = vunpack.c.h.b16 %v68
    %v148 = vunpack.c.l.b16 %v69
    %v149 = vunpack.c.h.b16 %v69
    %v150 = vunpack.c.l.b16 %v70
    %v151 = vunpack.c.h.b16 %v70
    %v152 = vunpack.c.l.b16 %v71
    %v153 = vunpack.c.h.b16 %v71
    %v154 = vunpack.c.l.b16 %v72
    %v155 = vunpack.c.h.b16 %v72
    %v156 = vunpack.c.l.b16 %v73
    %v157 = vunpack.c.h.b16 %v73
    %v158 = vunpack.c.l.b16 %v74
    %v159 = vunpack.c.h.b16 %v74
    %v160 = vunpack.c.l.b16 %v75
    %v161 = vunpack.c.h.b16 %v75
    %v162 = vunpack.c.l.b16 %v76
    %v163 = vunpack.c.h.b16 %v76
    %v164 = vunpack.c.l.b16 %v77
    %v165 = vunpack.c.h.b16 %v77
    %v166 = vunpack.c.l.b16 %v78
    %v167 = vunpack.c.h.b16 %v78
    %v168 = vunpack.c.l.b16 %v79
    %v169 = vunpack.c.h.b16 %v79
    %v170 = vunpack.c.l.b16 %v80
    %v171 = vunpack.c.h.b16 %v80
    %v172 = vunpack.c.l.b16 %v81
    %v173 = vunpack.c.h.b16 %v81
    %v174 = vunpack.c.l.b16 %v82
    %v175 = vunpack.c.h.b16 %v82
    %v176 = vunpack.c.l.b16 %v83
    %v177 = vunpack.c.h.b16 %v83
    %v178 = vunpack.c.l.b16 %v84
    %v179 = vunpack.c.h.b16 %v84
    %v180 = vunpack.c.l.b16 %v85
    %v181 = vunpack.c.h.b16 %v85
    %v182 = vunpack.c.l.b16 %v86
    %v183 = vunpack.c.h.b16 %v86
    %v184 = vunpack.c.l.b16 %v87
    %v185 = vunpack.c.h.b16 %v87
    %v186 = vunpack.c.l.b16 %v88
    %v187 = vunpack.c.h.b16 %v88
    %v188 = vunpack.c.l.b16 %v89
    %v189 = vunpack.c.h.b16 %v89
    %v190 = vunpack.c.l.b16 %v90
    %v191 = vunpack.c.h.b16 %v90
    %v192 = vpack.c.b16 %v132, %v128
    %v193 = vpack.c.b16 %v133, %v129
    %v194 = vpack.c.b16 %v134, %v130
    %v195 = vpack.c.b16 %v135, %v131
    %v196 = vpack.c.b16 %v140, %v136
    %v197 = vpack.c.b16 %v141, %v137
    %v198 = vpack.c.b16 %v142, %v138
    %v199 = vpack.c.b16 %v143, %v139
    %v200 = vpack.c.b16 %v148, %v144
    %v201 = vpack.c.b16 %v149, %v145
    %v202 = vpack.c.b16 %v150, %v146
    %v203 = vpack.c.b16 %v151, %v147
    %v204 = vpack.c.b16 %v156, %v152
    %v205 = vpack.c.b16 %v157, %v153
    %v206 = vpack.c.b16 %v158, %v154
    %v207 = vpack.c.b16 %v159, %v155
    %v208 = vpack.c.b16 %v164, %v160
    %v209 = vpack.c.b16 %v165, %v161
    %v210 = vpack.c.b16 %v166, %v162
    %v211 = vpack.c.b16 %v167, %v163
    %v212 = vpack.c.b16 %v172, %v168
    %v213 = vpack.c.b16 %v173, %v169
    %v214 = vpack.c.b16 %v174, %v170
    %v215 = vpack.c.b16 %v175, %v171
    %v216 = vpack.c.b16 %v180, %v176
    %v217 = vpack.c.b16 %v181, %v177
    %v218 = vpack.c.b16 %v182, %v178
    %v219 = vpack.c.b16 %v183, %v179
    %v220 = vpack.c.b16 %v188, %v184
    %v221 = vpack.c.b16 %v189, %v185
    %v222 = vpack.c.b16 %v190, %v186
    %v223 = vpack.c.b16 %v191, %v187
    %256 = vmatprep.subr.bf16.mxu0 %v193
    %257 = vmatpush1.bf16.msra.mxu0 %v192
    %258 = vmatprep.subr.bf16.mxu0 %v197
    %259 = vmatpush1.bf16.msra.mxu0 %v196
    %260 = vmatprep.subr.bf16.mxu0 %v201
    %261 = vmatpush1.bf16.msra.mxu0 %v200
    %262 = vmatprep.subr.bf16.mxu0 %v205
    %263 = vmatpush1.bf16.msra.mxu0 %v204
    %264 = vmatprep.subr.bf16.mxu0 %v209
    %265 = vmatpush1.bf16.msra.mxu0 %v208
    %266 = vmatprep.subr.bf16.mxu0 %v213
    %267 = vmatpush1.bf16.msra.mxu0 %v212
    %268 = vmatprep.subr.bf16.mxu0 %v217
    %269 = vmatpush1.bf16.msra.mxu0 %v216
    %270 = vmatprep.subr.bf16.mxu0 %v221
    %271 = vmatpush1.bf16.msra.mxu0 %v220
    %272 = vmatprep.subr.bf16.mxu0 0
    %273 = vmatpush1.bf16.msra.mxu0 0
    %274 = vmatprep.subr.bf16.mxu0 0
    %275 = vmatpush1.bf16.msra.mxu0 0
    %276 = vmatprep.subr.bf16.mxu0 0
    %277 = vmatpush1.bf16.msra.mxu0 0
    %278 = vmatprep.subr.bf16.mxu0 0
    %279 = vmatpush1.bf16.msra.mxu0 0
    %280 = vmatprep.subr.bf16.mxu0 0
    %281 = vmatpush1.bf16.msra.mxu0 0
    %282 = vmatprep.subr.bf16.mxu0 0
    %283 = vmatpush1.bf16.msra.mxu0 0
    %284 = vmatprep.subr.bf16.mxu0 0
    %285 = vmatpush1.bf16.msra.mxu0 0
    %286 = vmatprep.subr.bf16.mxu0 0
    %287 = vmatpush1.bf16.msra.mxu0 0
    %288 = vmatprep.mubr.bf16.mxu0 0
    %289 = vmatmul.mubr.bf16.gmra.mrb[0].mxu0 %v95
    %v290 = vpop.f32.mrb[0].mxu0
    %v291 = vadd.f32 0.0, %v290
    %v292 = vpop.f32.mrb[0].mxu0
    %v293 = vadd.f32 0.0, %v292
    %v294 = vpop.f32.mrb[0].mxu0
    %v295 = vpop.f32.mrb[0].mxu0
    %296 = vdwg.mxu0
    %297 = vmatprep.subr.bf16.mxu0 %v195
    %298 = vmatpush1.bf16.msra.mxu0 %v194
    %299 = vmatprep.subr.bf16.mxu0 %v199
    %300 = vmatpush1.bf16.msra.mxu0 %v198
    %301 = vmatprep.subr.bf16.mxu0 %v203
    %302 = vmatpush1.bf16.msra.mxu0 %v202
    %303 = vmatprep.subr.bf16.mxu0 %v207
    %304 = vmatpush1.bf16.msra.mxu0 %v206
    %305 = vmatprep.subr.bf16.mxu0 %v211
    %306 = vmatpush1.bf16.msra.mxu0 %v210
    %307 = vmatprep.subr.bf16.mxu0 %v215
    %308 = vmatpush1.bf16.msra.mxu0 %v214
    %309 = vmatprep.subr.bf16.mxu0 %v219
    %310 = vmatpush1.bf16.msra.mxu0 %v218
    %311 = vmatprep.subr.bf16.mxu0 %v223
    %312 = vmatpush1.bf16.msra.mxu0 %v222
    %313 = vmatprep.subr.bf16.mxu0 0
    %314 = vmatpush1.bf16.msra.mxu0 0
    %315 = vmatprep.subr.bf16.mxu0 0
    %316 = vmatpush1.bf16.msra.mxu0 0
    %317 = vmatprep.subr.bf16.mxu0 0
    %318 = vmatpush1.bf16.msra.mxu0 0
    %319 = vmatprep.subr.bf16.mxu0 0
    %320 = vmatpush1.bf16.msra.mxu0 0
    %321 = vmatprep.subr.bf16.mxu0 0
    %322 = vmatpush1.bf16.msra.mxu0 0
    %323 = vmatprep.subr.bf16.mxu0 0
    %324 = vmatpush1.bf16.msra.mxu0 0
    %325 = vmatprep.subr.bf16.mxu0 0
    %326 = vmatpush1.bf16.msra.mxu0 0
    %327 = vmatprep.subr.bf16.mxu0 0
    %328 = vmatpush1.bf16.msra.mxu0 0
    %329 = vmatprep.mubr.bf16.mxu0 0
    %330 = vmatmul.mubr.bf16.gmra.mrb[0].mxu0 %v95
    %v331 = vpop.f32.mrb[0].mxu0
    %v332 = vadd.f32 0.0, %v331
    %v333 = vpop.f32.mrb[0].mxu0
    %v334 = vadd.f32 0.0, %v333
    %v335 = vpop.f32.mrb[0].mxu0
    %v336 = vpop.f32.mrb[0].mxu0
    %337 = vdwg.mxu0
    %v342 = vcombine.low %v291, %v293
    %v343 = vcombine.low %v332, %v334
    %v345 = vunpack.c.l.s4 1983009808
    %v346 = vunpack.c.0.s8 %v345
    %v347 = vlaneseq
    %v348 = vshrl.u32 %v347, 7
    %v349 = vsub.s32 %v346, %v348
    %v350 = vrot.slane %v342, %v349
    %v352 = vunpack.c.l.s4 1983009808
    %v353 = vunpack.c.0.s8 %v352
    %v354 = vlaneseq
    %v355 = vshrl.u32 %v354, 7
    %v356 = vsub.s32 %v353, %v355
    %v357 = vrot.slane %v343, %v356
    %v358 = vcombine.low %v350, %v357
    %v360 = vadd.f32 %v94, %v358
    %v361 = vmul.f32 %v360, 0.5
    %v362 = vtanh.pop %v361
    %v363 = vadd.f32 %v362, 1.0
    %v364 = vmul.f32 %v363, 0.5
    %v366 = vrot.slane %v360, 6
    %v368 = vtanh.pop %v366
    %v370 = vrot.slane %v364, 2
    %v372 = vmul.f32 %v370, %v92
    %v373 = vmul.f32 %v364, %v368
    %v374 = vadd.f32 %v372, %v373
    %v375 = vtanh.pop %v374
    %v376 = vrot.slane %v364, 4
    %v378 = vmul.f32 %v376, %v375
    %v379 = vpack.c.bf16 %v378, %v378
    %380 = vst [vmem:[#allocation9] sm:$0x1] %v379
    %s381 = scalar_lea.vmem [#allocation4], 4
    %v382 = vld [vmem:[%s381] sm:$0xf]
    %v383 = vunpack.c.l.bf16 %v382
    %384 = vmatprep.subr.bf16.mxu0 %v193
    %385 = vmatpush1.bf16.msra.mxu0 %v192
    %386 = vmatprep.subr.bf16.mxu0 %v197
    %387 = vmatpush1.bf16.msra.mxu0 %v196
    %388 = vmatprep.subr.bf16.mxu0 %v201
    %389 = vmatpush1.bf16.msra.mxu0 %v200
    %390 = vmatprep.subr.bf16.mxu0 %v205
    %391 = vmatpush1.bf16.msra.mxu0 %v204
    %392 = vmatprep.subr.bf16.mxu0 %v209
    %393 = vmatpush1.bf16.msra.mxu0 %v208
    %394 = vmatprep.subr.bf16.mxu0 %v213
    %395 = vmatpush1.bf16.msra.mxu0 %v212
    %396 = vmatprep.subr.bf16.mxu0 %v217
    %397 = vmatpush1.bf16.msra.mxu0 %v216
    %398 = vmatprep.subr.bf16.mxu0 %v221
    %399 = vmatpush1.bf16.msra.mxu0 %v220
    %400 = vmatprep.subr.bf16.mxu0 0
    %401 = vmatpush1.bf16.msra.mxu0 0
    %402 = vmatprep.subr.bf16.mxu0 0
    %403 = vmatpush1.bf16.msra.mxu0 0
    %404 = vmatprep.subr.bf16.mxu0 0
    %405 = vmatpush1.bf16.msra.mxu0 0
    %406 = vmatprep.subr.bf16.mxu0 0
    %407 = vmatpush1.bf16.msra.mxu0 0
    %408 = vmatprep.subr.bf16.mxu0 0
    %409 = vmatpush1.bf16.msra.mxu0 0
    %410 = vmatprep.subr.bf16.mxu0 0
    %411 = vmatpush1.bf16.msra.mxu0 0
    %412 = vmatprep.subr.bf16.mxu0 0
    %413 = vmatpush1.bf16.msra.mxu0 0
    %414 = vmatprep.subr.bf16.mxu0 0
    %415 = vmatpush1.bf16.msra.mxu0 0
    %416 = vmatprep.mubr.bf16.mxu0 0
    %417 = vmatmul.mubr.bf16.gmra.mrb[0].mxu0 %v379
    %v418 = vpop.f32.mrb[0].mxu0
    %v419 = vadd.f32 0.0, %v418
    %v420 = vpop.f32.mrb[0].mxu0
    %v421 = vadd.f32 0.0, %v420
    %v422 = vpop.f32.mrb[0].mxu0
    %v423 = vpop.f32.mrb[0].mxu0
    %424 = vdwg.mxu0
    %425 = vmatprep.subr.bf16.mxu0 %v195
    %426 = vmatpush1.bf16.msra.mxu0 %v194
    %427 = vmatprep.subr.bf16.mxu0 %v199
    %428 = vmatpush1.bf16.msra.mxu0 %v198
    %429 = vmatprep.subr.bf16.mxu0 %v203
    %430 = vmatpush1.bf16.msra.mxu0 %v202
    %431 = vmatprep.subr.bf16.mxu0 %v207
    %432 = vmatpush1.bf16.msra.mxu0 %v206
    %433 = vmatprep.subr.bf16.mxu0 %v211
    %434 = vmatpush1.bf16.msra.mxu0 %v210
    %435 = vmatprep.subr.bf16.mxu0 %v215
    %436 = vmatpush1.bf16.msra.mxu0 %v214
    %437 = vmatprep.subr.bf16.mxu0 %v219
    %438 = vmatpush1.bf16.msra.mxu0 %v218
    %439 = vmatprep.subr.bf16.mxu0 %v223
    %440 = vmatpush1.bf16.msra.mxu0 %v222
    %441 = vmatprep.subr.bf16.mxu0 0
    %442 = vmatpush1.bf16.msra.mxu0 0
    %443 = vmatprep.subr.bf16.mxu0 0
    %444 = vmatpush1.bf16.msra.mxu0 0
    %445 = vmatprep.subr.bf16.mxu0 0
    %446 = vmatpush1.bf16.msra.mxu0 0
    %447 = vmatprep.subr.bf16.mxu0 0
    %448 = vmatpush1.bf16.msra.mxu0 0
    %449 = vmatprep.subr.bf16.mxu0 0
    %450 = vmatpush1.bf16.msra.mxu0 0
    %451 = vmatprep.subr.bf16.mxu0 0
    %452 = vmatpush1.bf16.msra.mxu0 0
    %453 = vmatprep.subr.bf16.mxu0 0
    %454 = vmatpush1.bf16.msra.mxu0 0
    %455 = vmatprep.subr.bf16.mxu0 0
    %456 = vmatpush1.bf16.msra.mxu0 0
    %457 = vmatprep.mubr.bf16.mxu0 0
    %458 = vmatmul.mubr.bf16.gmra.mrb[0].mxu0 %v379
    %v459 = vpop.f32.mrb[0].mxu0
    %v460 = vadd.f32 0.0, %v459
    %v461 = vpop.f32.mrb[0].mxu0
    %v462 = vadd.f32 0.0, %v461
    %v463 = vpop.f32.mrb[0].mxu0
    %v464 = vpop.f32.mrb[0].mxu0
    %465 = vdwg.mxu0
    %v470 = vcombine.low %v419, %v421
    %v471 = vcombine.low %v460, %v462
    %v473 = vunpack.c.l.s4 1983009808
    %v474 = vunpack.c.0.s8 %v473
    %v475 = vlaneseq
    %v476 = vshrl.u32 %v475, 7
    %v477 = vsub.s32 %v474, %v476
    %v478 = vrot.slane %v470, %v477
    %v480 = vunpack.c.l.s4 1983009808
    %v481 = vunpack.c.0.s8 %v480
    %v482 = vlaneseq
    %v483 = vshrl.u32 %v482, 7
    %v484 = vsub.s32 %v481, %v483
    %v485 = vrot.slane %v471, %v484
    %v486 = vcombine.low %v478, %v485
    %v488 = vadd.f32 %v383, %v486
    %v489 = vmul.f32 %v488, 0.5
    %v490 = vtanh.pop %v489
    %v491 = vadd.f32 %v490, 1.0
    %v492 = vmul.f32 %v491, 0.5
    %v494 = vrot.slane %v488, 6
    %v496 = vtanh.pop %v494
    %v498 = vrot.slane %v492, 2
    %v500 = vmul.f32 %v498, %v374
    %v501 = vmul.f32 %v492, %v496
    %v502 = vadd.f32 %v500, %v501
    %v503 = vtanh.pop %v502
    %v504 = vrot.slane %v492, 4
    %v506 = vmul.f32 %v504, %v503
    %v507 = vpack.c.bf16 %v506, %v506
    %s508 = scalar_lea.vmem [#allocation9], 1
    %509 = vst [vmem:[%s508] sm:$0x1] %v507
    %s510 = scalar_lea.vmem [#allocation4], 8
    %v511 = vld [vmem:[%s510] sm:$0xf]
    %v512 = vunpack.c.l.bf16 %v511
    %513 = vmatprep.subr.bf16.mxu0 %v193
    %514 = vmatpush1.bf16.msra.mxu0 %v192
    %515 = vmatprep.subr.bf16.mxu0 %v197
    %516 = vmatpush1.bf16.msra.mxu0 %v196
    %517 = vmatprep.subr.bf16.mxu0 %v201
    %518 = vmatpush1.bf16.msra.mxu0 %v200
    %519 = vmatprep.subr.bf16.mxu0 %v205
    %520 = vmatpush1.bf16.msra.mxu0 %v204
    %521 = vmatprep.subr.bf16.mxu0 %v209
    %522 = vmatpush1.bf16.msra.mxu0 %v208
    %523 = vmatprep.subr.bf16.mxu0 %v213
    %524 = vmatpush1.bf16.msra.mxu0 %v212
    %525 = vmatprep.subr.bf16.mxu0 %v217
    %526 = vmatpush1.bf16.msra.mxu0 %v216
    %527 = vmatprep.subr.bf16.mxu0 %v221
    %528 = vmatpush1.bf16.msra.mxu0 %v220
    %529 = vmatprep.subr.bf16.mxu0 0
    %530 = vmatpush1.bf16.msra.mxu0 0
    %531 = vmatprep.subr.bf16.mxu0 0
    %532 = vmatpush1.bf16.msra.mxu0 0
    %533 = vmatprep.subr.bf16.mxu0 0
    %534 = vmatpush1.bf16.msra.mxu0 0
    %535 = vmatprep.subr.bf16.mxu0 0
    %536 = vmatpush1.bf16.msra.mxu0 0
    %537 = vmatprep.subr.bf16.mxu0 0
    %538 = vmatpush1.bf16.msra.mxu0 0
    %539 = vmatprep.subr.bf16.mxu0 0
    %540 = vmatpush1.bf16.msra.mxu0 0
    %541 = vmatprep.subr.bf16.mxu0 0
    %542 = vmatpush1.bf16.msra.mxu0 0
    %543 = vmatprep.subr.bf16.mxu0 0
    %544 = vmatpush1.bf16.msra.mxu0 0
    %545 = vmatprep.mubr.bf16.mxu0 0
    %546 = vmatmul.mubr.bf16.gmra.mrb[0].mxu0 %v507
    %v547 = vpop.f32.mrb[0].mxu0
    %v548 = vadd.f32 0.0, %v547
    %v549 = vpop.f32.mrb[0].mxu0
    %v550 = vadd.f32 0.0, %v549
    %v551 = vpop.f32.mrb[0].mxu0
    %v552 = vpop.f32.mrb[0].mxu0
    %553 = vdwg.mxu0
    %554 = vmatprep.subr.bf16.mxu0 %v195
    %555 = vmatpush1.bf16.msra.mxu0 %v194
    %556 = vmatprep.subr.bf16.mxu0 %v199
    %557 = vmatpush1.bf16.msra.mxu0 %v198
    %558 = vmatprep.subr.bf16.mxu0 %v203
    %559 = vmatpush1.bf16.msra.mxu0 %v202
    %560 = vmatprep.subr.bf16.mxu0 %v207
    %561 = vmatpush1.bf16.msra.mxu0 %v206
    %562 = vmatprep.subr.bf16.mxu0 %v211
    %563 = vmatpush1.bf16.msra.mxu0 %v210
    %564 = vmatprep.subr.bf16.mxu0 %v215
    %565 = vmatpush1.bf16.msra.mxu0 %v214
    %566 = vmatprep.subr.bf16.mxu0 %v219
    %567 = vmatpush1.bf16.msra.mxu0 %v218
    %568 = vmatprep.subr.bf16.mxu0 %v223
    %569 = vmatpush1.bf16.msra.mxu0 %v222
    %570 = vmatprep.subr.bf16.mxu0 0
    %571 = vmatpush1.bf16.msra.mxu0 0
    %572 = vmatprep.subr.bf16.mxu0 0
    %573 = vmatpush1.bf16.msra.mxu0 0
    %574 = vmatprep.subr.bf16.mxu0 0
    %575 = vmatpush1.bf16.msra.mxu0 0
    %576 = vmatprep.subr.bf16.mxu0 0
    %577 = vmatpush1.bf16.msra.mxu0 0
    %578 = vmatprep.subr.bf16.mxu0 0
    %579 = vmatpush1.bf16.msra.mxu0 0
    %580 = vmatprep.subr.bf16.mxu0 0
    %581 = vmatpush1.bf16.msra.mxu0 0
    %582 = vmatprep.subr.bf16.mxu0 0
    %583 = vmatpush1.bf16.msra.mxu0 0
    %584 = vmatprep.subr.bf16.mxu0 0
    %585 = vmatpush1.bf16.msra.mxu0 0
    %586 = vmatprep.mubr.bf16.mxu0 0
    %587 = vmatmul.mubr.bf16.gmra.mrb[0].mxu0 %v507
    %v588 = vpop.f32.mrb[0].mxu0
    %v589 = vadd.f32 0.0, %v588
    %v590 = vpop.f32.mrb[0].mxu0
    %v591 = vadd.f32 0.0, %v590
    %v592 = vpop.f32.mrb[0].mxu0
    %v593 = vpop.f32.mrb[0].mxu0
    %594 = vdwg.mxu0
    %v599 = vcombine.low %v548, %v550
    %v600 = vcombine.low %v589, %v591
    %v602 = vunpack.c.l.s4 1983009808
    %v603 = vunpack.c.0.s8 %v602
    %v604 = vlaneseq
    %v605 = vshrl.u32 %v604, 7
    %v606 = vsub.s32 %v603, %v605
    %v607 = vrot.slane %v599, %v606
    %v609 = vunpack.c.l.s4 1983009808
    %v610 = vunpack.c.0.s8 %v609
    %v611 = vlaneseq
    %v612 = vshrl.u32 %v611, 7
    %v613 = vsub.s32 %v610, %v612
    %v614 = vrot.slane %v600, %v613
    %v615 = vcombine.low %v607, %v614
    %v617 = vadd.f32 %v512, %v615
    %v618 = vmul.f32 %v617, 0.5
    %v619 = vtanh.pop %v618
    %v620 = vadd.f32 %v619, 1.0
    %v621 = vmul.f32 %v620, 0.5
    %v623 = vrot.slane %v617, 6
    %v625 = vtanh.pop %v623
    %v627 = vrot.slane %v621, 2
    %v629 = vmul.f32 %v627, %v502
    %v630 = vmul.f32 %v621, %v625
    %v631 = vadd.f32 %v629, %v630
    %v632 = vtanh.pop %v631
    %v633 = vrot.slane %v621, 4
    %v635 = vmul.f32 %v633, %v632
    %v636 = vpack.c.bf16 %v635, %v635
    %s637 = scalar_lea.vmem [#allocation9], 2
    %638 = vst [vmem:[%s637] sm:$0x1] %v636
    %s639 = scalar_lea.vmem [#allocation4], 12
    %v640 = vld [vmem:[%s639] sm:$0xf]
    %v641 = vunpack.c.l.bf16 %v640
    %642 = vmatprep.subr.bf16.mxu0 %v193
    %643 = vmatpush1.bf16.msra.mxu0 %v192
    %644 = vmatprep.subr.bf16.mxu0 %v197
    %645 = vmatpush1.bf16.msra.mxu0 %v196
    %646 = vmatprep.subr.bf16.mxu0 %v201
    %647 = vmatpush1.bf16.msra.mxu0 %v200
    %648 = vmatprep.subr.bf16.mxu0 %v205
    %649 = vmatpush1.bf16.msra.mxu0 %v204
    %650 = vmatprep.subr.bf16.mxu0 %v209
    %651 = vmatpush1.bf16.msra.mxu0 %v208
    %652 = vmatprep.subr.bf16.mxu0 %v213
    %653 = vmatpush1.bf16.msra.mxu0 %v212
    %654 = vmatprep.subr.bf16.mxu0 %v217
    %655 = vmatpush1.bf16.msra.mxu0 %v216
    %656 = vmatprep.subr.bf16.mxu0 %v221
    %657 = vmatpush1.bf16.msra.mxu0 %v220
    %658 = vmatprep.subr.bf16.mxu0 0
    %659 = vmatpush1.bf16.msra.mxu0 0
    %660 = vmatprep.subr.bf16.mxu0 0
    %661 = vmatpush1.bf16.msra.mxu0 0
    %662 = vmatprep.subr.bf16.mxu0 0
    %663 = vmatpush1.bf16.msra.mxu0 0
    %664 = vmatprep.subr.bf16.mxu0 0
    %665 = vmatpush1.bf16.msra.mxu0 0
    %666 = vmatprep.subr.bf16.mxu0 0
    %667 = vmatpush1.bf16.msra.mxu0 0
    %668 = vmatprep.subr.bf16.mxu0 0
    %669 = vmatpush1.bf16.msra.mxu0 0
    %670 = vmatprep.subr.bf16.mxu0 0
    %671 = vmatpush1.bf16.msra.mxu0 0
    %672 = vmatprep.subr.bf16.mxu0 0
    %673 = vmatpush1.bf16.msra.mxu0 0
    %674 = vmatprep.mubr.bf16.mxu0 0
    %675 = vmatmul.mubr.bf16.gmra.mrb[0].mxu0 %v636
    %v676 = vpop.f32.mrb[0].mxu0
    %v677 = vadd.f32 0.0, %v676
    %v678 = vpop.f32.mrb[0].mxu0
    %v679 = vadd.f32 0.0, %v678
    %v680 = vpop.f32.mrb[0].mxu0
    %v681 = vpop.f32.mrb[0].mxu0
    %682 = vdwg.mxu0
    %683 = vmatprep.subr.bf16.mxu0 %v195
    %684 = vmatpush1.bf16.msra.mxu0 %v194
    %685 = vmatprep.subr.bf16.mxu0 %v199
    %686 = vmatpush1.bf16.msra.mxu0 %v198
    %687 = vmatprep.subr.bf16.mxu0 %v203
    %688 = vmatpush1.bf16.msra.mxu0 %v202
    %689 = vmatprep.subr.bf16.mxu0 %v207
    %690 = vmatpush1.bf16.msra.mxu0 %v206
    %691 = vmatprep.subr.bf16.mxu0 %v211
    %692 = vmatpush1.bf16.msra.mxu0 %v210
    %693 = vmatprep.subr.bf16.mxu0 %v215
    %694 = vmatpush1.bf16.msra.mxu0 %v214
    %695 = vmatprep.subr.bf16.mxu0 %v219
    %696 = vmatpush1.bf16.msra.mxu0 %v218
    %697 = vmatprep.subr.bf16.mxu0 %v223
    %698 = vmatpush1.bf16.msra.mxu0 %v222
    %699 = vmatprep.subr.bf16.mxu0 0
    %700 = vmatpush1.bf16.msra.mxu0 0
    %701 = vmatprep.subr.bf16.mxu0 0
    %702 = vmatpush1.bf16.msra.mxu0 0
    %703 = vmatprep.subr.bf16.mxu0 0
    %704 = vmatpush1.bf16.msra.mxu0 0
    %705 = vmatprep.subr.bf16.mxu0 0
    %706 = vmatpush1.bf16.msra.mxu0 0
    %707 = vmatprep.subr.bf16.mxu0 0
    %708 = vmatpush1.bf16.msra.mxu0 0
    %709 = vmatprep.subr.bf16.mxu0 0
    %710 = vmatpush1.bf16.msra.mxu0 0
    %711 = vmatprep.subr.bf16.mxu0 0
    %712 = vmatpush1.bf16.msra.mxu0 0
    %713 = vmatprep.subr.bf16.mxu0 0
    %714 = vmatpush1.bf16.msra.mxu0 0
    %715 = vmatprep.mubr.bf16.mxu0 0
    %716 = vmatmul.mubr.bf16.gmra.mrb[0].mxu0 %v636
    %v717 = vpop.f32.mrb[0].mxu0
    %v718 = vadd.f32 0.0, %v717
    %v719 = vpop.f32.mrb[0].mxu0
    %v720 = vadd.f32 0.0, %v719
    %v721 = vpop.f32.mrb[0].mxu0
    %v722 = vpop.f32.mrb[0].mxu0
    %723 = vdwg.mxu0
    %v728 = vcombine.low %v677, %v679
    %v729 = vcombine.low %v718, %v720
    %v731 = vunpack.c.l.s4 1983009808
    %v732 = vunpack.c.0.s8 %v731
    %v733 = vlaneseq
    %v734 = vshrl.u32 %v733, 7
    %v735 = vsub.s32 %v732, %v734
    %v736 = vrot.slane %v728, %v735
    %v738 = vunpack.c.l.s4 1983009808
    %v739 = vunpack.c.0.s8 %v738
    %v740 = vlaneseq
    %v741 = vshrl.u32 %v740, 7
    %v742 = vsub.s32 %v739, %v741
    %v743 = vrot.slane %v729, %v742
    %v744 = vcombine.low %v736, %v743
    %v746 = vadd.f32 %v641, %v744
    %v747 = vmul.f32 %v746, 0.5
    %v748 = vtanh.pop %v747
    %v749 = vadd.f32 %v748, 1.0
    %v750 = vmul.f32 %v749, 0.5
    %v752 = vrot.slane %v746, 6
    %v754 = vtanh.pop %v752
    %v756 = vrot.slane %v750, 2
    %v758 = vmul.f32 %v756, %v631
    %v759 = vmul.f32 %v750, %v754
    %v760 = vadd.f32 %v758, %v759
    %v761 = vtanh.pop %v760
    %v762 = vrot.slane %v750, 4
    %v764 = vmul.f32 %v762, %v761
    %v765 = vpack.c.bf16 %v764, %v764
    %s766 = scalar_lea.vmem [#allocation9], 3
    %767 = vst [vmem:[%s766] sm:$0x1] %v765
    %s768 = scalar_lea.vmem [#allocation4], 16
    %v769 = vld [vmem:[%s768] sm:$0xf]
    %v770 = vunpack.c.l.bf16 %v769
    %771 = vmatprep.subr.bf16.mxu0 %v193
    %772 = vmatpush1.bf16.msra.mxu0 %v192
    %773 = vmatprep.subr.bf16.mxu0 %v197
    %774 = vmatpush1.bf16.msra.mxu0 %v196
    %775 = vmatprep.subr.bf16.mxu0 %v201
    %776 = vmatpush1.bf16.msra.mxu0 %v200
    %777 = vmatprep.subr.bf16.mxu0 %v205
    %778 = vmatpush1.bf16.msra.mxu0 %v204
    %779 = vmatprep.subr.bf16.mxu0 %v209
    %780 = vmatpush1.bf16.msra.mxu0 %v208
    %781 = vmatprep.subr.bf16.mxu0 %v213
    %782 = vmatpush1.bf16.msra.mxu0 %v212
    %783 = vmatprep.subr.bf16.mxu0 %v217
    %784 = vmatpush1.bf16.msra.mxu0 %v216
    %785 = vmatprep.subr.bf16.mxu0 %v221
    %786 = vmatpush1.bf16.msra.mxu0 %v220
    %787 = vmatprep.subr.bf16.mxu0 0
    %788 = vmatpush1.bf16.msra.mxu0 0
    %789 = vmatprep.subr.bf16.mxu0 0
    %790 = vmatpush1.bf16.msra.mxu0 0
    %791 = vmatprep.subr.bf16.mxu0 0
    %792 = vmatpush1.bf16.msra.mxu0 0
    %793 = vmatprep.subr.bf16.mxu0 0
    %794 = vmatpush1.bf16.msra.mxu0 0
    %795 = vmatprep.subr.bf16.mxu0 0
    %796 = vmatpush1.bf16.msra.mxu0 0
    %797 = vmatprep.subr.bf16.mxu0 0
    %798 = vmatpush1.bf16.msra.mxu0 0
    %799 = vmatprep.subr.bf16.mxu0 0
    %800 = vmatpush1.bf16.msra.mxu0 0
    %801 = vmatprep.subr.bf16.mxu0 0
    %802 = vmatpush1.bf16.msra.mxu0 0
    %803 = vmatprep.mubr.bf16.mxu0 0
    %804 = vmatmul.mubr.bf16.gmra.mrb[0].mxu0 %v765
    %v805 = vpop.f32.mrb[0].mxu0
    %v806 = vadd.f32 0.0, %v805
    %v807 = vpop.f32.mrb[0].mxu0
    %v808 = vadd.f32 0.0, %v807
    %v809 = vpop.f32.mrb[0].mxu0
    %v810 = vpop.f32.mrb[0].mxu0
    %811 = vdwg.mxu0
    %812 = vmatprep.subr.bf16.mxu0 %v195
    %813 = vmatpush1.bf16.msra.mxu0 %v194
    %814 = vmatprep.subr.bf16.mxu0 %v199
    %815 = vmatpush1.bf16.msra.mxu0 %v198
    %816 = vmatprep.subr.bf16.mxu0 %v203
    %817 = vmatpush1.bf16.msra.mxu0 %v202
    %818 = vmatprep.subr.bf16.mxu0 %v207
    %819 = vmatpush1.bf16.msra.mxu0 %v206
    %820 = vmatprep.subr.bf16.mxu0 %v211
    %821 = vmatpush1.bf16.msra.mxu0 %v210
    %822 = vmatprep.subr.bf16.mxu0 %v215
    %823 = vmatpush1.bf16.msra.mxu0 %v214
    %824 = vmatprep.subr.bf16.mxu0 %v219
    %825 = vmatpush1.bf16.msra.mxu0 %v218
    %826 = vmatprep.subr.bf16.mxu0 %v223
    %827 = vmatpush1.bf16.msra.mxu0 %v222
    %828 = vmatprep.subr.bf16.mxu0 0
    %829 = vmatpush1.bf16.msra.mxu0 0
    %830 = vmatprep.subr.bf16.mxu0 0
    %831 = vmatpush1.bf16.msra.mxu0 0
    %832 = vmatprep.subr.bf16.mxu0 0
    %833 = vmatpush1.bf16.msra.mxu0 0
    %834 = vmatprep.subr.bf16.mxu0 0
    %835 = vmatpush1.bf16.msra.mxu0 0
    %836 = vmatprep.subr.bf16.mxu0 0
    %837 = vmatpush1.bf16.msra.mxu0 0
    %838 = vmatprep.subr.bf16.mxu0 0
    %839 = vmatpush1.bf16.msra.mxu0 0
    %840 = vmatprep.subr.bf16.mxu0 0
    %841 = vmatpush1.bf16.msra.mxu0 0
    %842 = vmatprep.subr.bf16.mxu0 0
    %843 = vmatpush1.bf16.msra.mxu0 0
    %844 = vmatprep.mubr.bf16.mxu0 0
    %845 = vmatmul.mubr.bf16.gmra.mrb[0].mxu0 %v765
    %v846 = vpop.f32.mrb[0].mxu0
    %v847 = vadd.f32 0.0, %v846
    %v848 = vpop.f32.mrb[0].mxu0
    %v849 = vadd.f32 0.0, %v848
    %v850 = vpop.f32.mrb[0].mxu0
    %v851 = vpop.f32.mrb[0].mxu0
    %852 = vdwg.mxu0
    %v857 = vcombine.low %v806, %v808
    %v858 = vcombine.low %v847, %v849
    %v860 = vunpack.c.l.s4 1983009808
    %v861 = vunpack.c.0.s8 %v860
    %v862 = vlaneseq
    %v863 = vshrl.u32 %v862, 7
    %v864 = vsub.s32 %v861, %v863
    %v865 = vrot.slane %v857, %v864
    %v867 = vunpack.c.l.s4 1983009808
    %v868 = vunpack.c.0.s8 %v867
    %v869 = vlaneseq
    %v870 = vshrl.u32 %v869, 7
    %v871 = vsub.s32 %v868, %v870
    %v872 = vrot.slane %v858, %v871
    %v873 = vcombine.low %v865, %v872
    %v875 = vadd.f32 %v770, %v873
    %v876 = vmul.f32 %v875, 0.5
    %v877 = vtanh.pop %v876
    %v878 = vadd.f32 %v877, 1.0
    %v879 = vmul.f32 %v878, 0.5
    %v881 = vrot.slane %v875, 6
    %v883 = vtanh.pop %v881
    %v885 = vrot.slane %v879, 2
    %v887 = vmul.f32 %v885, %v760
    %v888 = vmul.f32 %v879, %v883
    %v889 = vadd.f32 %v887, %v888
    %v890 = vtanh.pop %v889
    %v891 = vrot.slane %v879, 4
    %v893 = vmul.f32 %v891, %v890
    %v894 = vpack.c.bf16 %v893, %v893
    %s895 = scalar_lea.vmem [#allocation9], 4
    %896 = vst [vmem:[%s895] sm:$0x1] %v894
    %s897 = scalar_lea.vmem [#allocation4], 20
    %v898 = vld [vmem:[%s897] sm:$0xf]
    %v899 = vunpack.c.l.bf16 %v898
    %900 = vmatprep.subr.bf16.mxu0 %v193
    %901 = vmatpush1.bf16.msra.mxu0 %v192
    %902 = vmatprep.subr.bf16.mxu0 %v197
    %903 = vmatpush1.bf16.msra.mxu0 %v196
    %904 = vmatprep.subr.bf16.mxu0 %v201
    %905 = vmatpush1.bf16.msra.mxu0 %v200
    %906 = vmatprep.subr.bf16.mxu0 %v205
    %907 = vmatpush1.bf16.msra.mxu0 %v204
    %908 = vmatprep.subr.bf16.mxu0 %v209
    %909 = vmatpush1.bf16.msra.mxu0 %v208
    %910 = vmatprep.subr.bf16.mxu0 %v213
    %911 = vmatpush1.bf16.msra.mxu0 %v212
    %912 = vmatprep.subr.bf16.mxu0 %v217
    %913 = vmatpush1.bf16.msra.mxu0 %v216
    %914 = vmatprep.subr.bf16.mxu0 %v221
    %915 = vmatpush1.bf16.msra.mxu0 %v220
    %916 = vmatprep.subr.bf16.mxu0 0
    %917 = vmatpush1.bf16.msra.mxu0 0
    %918 = vmatprep.subr.bf16.mxu0 0
    %919 = vmatpush1.bf16.msra.mxu0 0
    %920 = vmatprep.subr.bf16.mxu0 0
    %921 = vmatpush1.bf16.msra.mxu0 0
    %922 = vmatprep.subr.bf16.mxu0 0
    %923 = vmatpush1.bf16.msra.mxu0 0
    %924 = vmatprep.subr.bf16.mxu0 0
    %925 = vmatpush1.bf16.msra.mxu0 0
    %926 = vmatprep.subr.bf16.mxu0 0
    %927 = vmatpush1.bf16.msra.mxu0 0
    %928 = vmatprep.subr.bf16.mxu0 0
    %929 = vmatpush1.bf16.msra.mxu0 0
    %930 = vmatprep.subr.bf16.mxu0 0
    %931 = vmatpush1.bf16.msra.mxu0 0
    %932 = vmatprep.mubr.bf16.mxu0 0
    %933 = vmatmul.mubr.bf16.gmra.mrb[0].mxu0 %v894
    %v934 = vpop.f32.mrb[0].mxu0
    %v935 = vadd.f32 0.0, %v934
    %v936 = vpop.f32.mrb[0].mxu0
    %v937 = vadd.f32 0.0, %v936
    %v938 = vpop.f32.mrb[0].mxu0
    %v939 = vpop.f32.mrb[0].mxu0
    %940 = vdwg.mxu0
    %941 = vmatprep.subr.bf16.mxu0 %v195
    %942 = vmatpush1.bf16.msra.mxu0 %v194
    %943 = vmatprep.subr.bf16.mxu0 %v199
    %944 = vmatpush1.bf16.msra.mxu0 %v198
    %945 = vmatprep.subr.bf16.mxu0 %v203
    %946 = vmatpush1.bf16.msra.mxu0 %v202
    %947 = vmatprep.subr.bf16.mxu0 %v207
    %948 = vmatpush1.bf16.msra.mxu0 %v206
    %949 = vmatprep.subr.bf16.mxu0 %v211
    %950 = vmatpush1.bf16.msra.mxu0 %v210
    %951 = vmatprep.subr.bf16.mxu0 %v215
    %952 = vmatpush1.bf16.msra.mxu0 %v214
    %953 = vmatprep.subr.bf16.mxu0 %v219
    %954 = vmatpush1.bf16.msra.mxu0 %v218
    %955 = vmatprep.subr.bf16.mxu0 %v223
    %956 = vmatpush1.bf16.msra.mxu0 %v222
    %957 = vmatprep.subr.bf16.mxu0 0
    %958 = vmatpush1.bf16.msra.mxu0 0
    %959 = vmatprep.subr.bf16.mxu0 0
    %960 = vmatpush1.bf16.msra.mxu0 0
    %961 = vmatprep.subr.bf16.mxu0 0
    %962 = vmatpush1.bf16.msra.mxu0 0
    %963 = vmatprep.subr.bf16.mxu0 0
    %964 = vmatpush1.bf16.msra.mxu0 0
    %965 = vmatprep.subr.bf16.mxu0 0
    %966 = vmatpush1.bf16.msra.mxu0 0
    %967 = vmatprep.subr.bf16.mxu0 0
    %968 = vmatpush1.bf16.msra.mxu0 0
    %969 = vmatprep.subr.bf16.mxu0 0
    %970 = vmatpush1.bf16.msra.mxu0 0
    %971 = vmatprep.subr.bf16.mxu0 0
    %972 = vmatpush1.bf16.msra.mxu0 0
    %973 = vmatprep.mubr.bf16.mxu0 0
    %974 = vmatmul.mubr.bf16.gmra.mrb[0].mxu0 %v894
    %v975 = vpop.f32.mrb[0].mxu0
    %v976 = vadd.f32 0.0, %v975
    %v977 = vpop.f32.mrb[0].mxu0
    %v978 = vadd.f32 0.0, %v977
    %v979 = vpop.f32.mrb[0].mxu0
    %v980 = vpop.f32.mrb[0].mxu0
    %981 = vdwg.mxu0
    %v986 = vcombine.low %v935, %v937
    %v987 = vcombine.low %v976, %v978
    %v989 = vunpack.c.l.s4 1983009808
    %v990 = vunpack.c.0.s8 %v989
    %v991 = vlaneseq
    %v992 = vshrl.u32 %v991, 7
    %v993 = vsub.s32 %v990, %v992
    %v994 = vrot.slane %v986, %v993
    %v996 = vunpack.c.l.s4 1983009808
    %v997 = vunpack.c.0.s8 %v996
    %v998 = vlaneseq
    %v999 = vshrl.u32 %v998, 7
    %v1000 = vsub.s32 %v997, %v999
    %v1001 = vrot.slane %v987, %v1000
    %v1002 = vcombine.low %v994, %v1001
    %v1004 = vadd.f32 %v899, %v1002
    %v1005 = vmul.f32 %v1004, 0.5
    %v1006 = vtanh.pop %v1005
    %v1007 = vadd.f32 %v1006, 1.0
    %v1008 = vmul.f32 %v1007, 0.5
    %v1010 = vrot.slane %v1004, 6
    %v1012 = vtanh.pop %v1010
    %v1014 = vrot.slane %v1008, 2
    %v1016 = vmul.f32 %v1014, %v889
    %v1017 = vmul.f32 %v1008, %v1012
    %v1018 = vadd.f32 %v1016, %v1017
    %v1019 = vtanh.pop %v1018
    %v1020 = vrot.slane %v1008, 4
    %v1022 = vmul.f32 %v1020, %v1019
    %v1023 = vpack.c.bf16 %v1022, %v1022
    %s1024 = scalar_lea.vmem [#allocation9], 5
    %1025 = vst [vmem:[%s1024] sm:$0x1] %v1023
    %s1026 = scalar_lea.vmem [#allocation4], 24
    %v1027 = vld [vmem:[%s1026] sm:$0xf]
    %v1028 = vunpack.c.l.bf16 %v1027
    %1029 = vmatprep.subr.bf16.mxu0 %v193
    %1030 = vmatpush1.bf16.msra.mxu0 %v192
    %1031 = vmatprep.subr.bf16.mxu0 %v197
    %1032 = vmatpush1.bf16.msra.mxu0 %v196
    %1033 = vmatprep.subr.bf16.mxu0 %v201
    %1034 = vmatpush1.bf16.msra.mxu0 %v200
    %1035 = vmatprep.subr.bf16.mxu0 %v205
    %1036 = vmatpush1.bf16.msra.mxu0 %v204
    %1037 = vmatprep.subr.bf16.mxu0 %v209
    %1038 = vmatpush1.bf16.msra.mxu0 %v208
    %1039 = vmatprep.subr.bf16.mxu0 %v213
    %1040 = vmatpush1.bf16.msra.mxu0 %v212
    %1041 = vmatprep.subr.bf16.mxu0 %v217
    %1042 = vmatpush1.bf16.msra.mxu0 %v216
    %1043 = vmatprep.subr.bf16.mxu0 %v221
    %1044 = vmatpush1.bf16.msra.mxu0 %v220
    %1045 = vmatprep.subr.bf16.mxu0 0
    %1046 = vmatpush1.bf16.msra.mxu0 0
    %1047 = vmatprep.subr.bf16.mxu0 0
    %1048 = vmatpush1.bf16.msra.mxu0 0
    %1049 = vmatprep.subr.bf16.mxu0 0
    %1050 = vmatpush1.bf16.msra.mxu0 0
    %1051 = vmatprep.subr.bf16.mxu0 0
    %1052 = vmatpush1.bf16.msra.mxu0 0
    %1053 = vmatprep.subr.bf16.mxu0 0
    %1054 = vmatpush1.bf16.msra.mxu0 0
    %1055 = vmatprep.subr.bf16.mxu0 0
    %1056 = vmatpush1.bf16.msra.mxu0 0
    %1057 = vmatprep.subr.bf16.mxu0 0
    %1058 = vmatpush1.bf16.msra.mxu0 0
    %1059 = vmatprep.subr.bf16.mxu0 0
    %1060 = vmatpush1.bf16.msra.mxu0 0
    %1061 = vmatprep.mubr.bf16.mxu0 0
    %1062 = vmatmul.mubr.bf16.gmra.mrb[0].mxu0 %v1023
    %v1063 = vpop.f32.mrb[0].mxu0
    %v1064 = vadd.f32 0.0, %v1063
    %v1065 = vpop.f32.mrb[0].mxu0
    %v1066 = vadd.f32 0.0, %v1065
    %v1067 = vpop.f32.mrb[0].mxu0
    %v1068 = vpop.f32.mrb[0].mxu0
    %1069 = vdwg.mxu0
    %1070 = vmatprep.subr.bf16.mxu0 %v195
    %1071 = vmatpush1.bf16.msra.mxu0 %v194
    %1072 = vmatprep.subr.bf16.mxu0 %v199
    %1073 = vmatpush1.bf16.msra.mxu0 %v198
    %1074 = vmatprep.subr.bf16.mxu0 %v203
    %1075 = vmatpush1.bf16.msra.mxu0 %v202
    %1076 = vmatprep.subr.bf16.mxu0 %v207
    %1077 = vmatpush1.bf16.msra.mxu0 %v206
    %1078 = vmatprep.subr.bf16.mxu0 %v211
    %1079 = vmatpush1.bf16.msra.mxu0 %v210
    %1080 = vmatprep.subr.bf16.mxu0 %v215
    %1081 = vmatpush1.bf16.msra.mxu0 %v214
    %1082 = vmatprep.subr.bf16.mxu0 %v219
    %1083 = vmatpush1.bf16.msra.mxu0 %v218
    %1084 = vmatprep.subr.bf16.mxu0 %v223
    %1085 = vmatpush1.bf16.msra.mxu0 %v222
    %1086 = vmatprep.subr.bf16.mxu0 0
    %1087 = vmatpush1.bf16.msra.mxu0 0
    %1088 = vmatprep.subr.bf16.mxu0 0
    %1089 = vmatpush1.bf16.msra.mxu0 0
    %1090 = vmatprep.subr.bf16.mxu0 0
    %1091 = vmatpush1.bf16.msra.mxu0 0
    %1092 = vmatprep.subr.bf16.mxu0 0
    %1093 = vmatpush1.bf16.msra.mxu0 0
    %1094 = vmatprep.subr.bf16.mxu0 0
    %1095 = vmatpush1.bf16.msra.mxu0 0
    %1096 = vmatprep.subr.bf16.mxu0 0
    %1097 = vmatpush1.bf16.msra.mxu0 0
    %1098 = vmatprep.subr.bf16.mxu0 0
    %1099 = vmatpush1.bf16.msra.mxu0 0
    %1100 = vmatprep.subr.bf16.mxu0 0
    %1101 = vmatpush1.bf16.msra.mxu0 0
    %1102 = vmatprep.mubr.bf16.mxu0 0
    %1103 = vmatmul.mubr.bf16.gmra.mrb[0].mxu0 %v1023
    %v1104 = vpop.f32.mrb[0].mxu0
    %v1105 = vadd.f32 0.0, %v1104
    %v1106 = vpop.f32.mrb[0].mxu0
    %v1107 = vadd.f32 0.0, %v1106
    %v1108 = vpop.f32.mrb[0].mxu0
    %v1109 = vpop.f32.mrb[0].mxu0
    %1110 = vdwg.mxu0
    %v1115 = vcombine.low %v1064, %v1066
    %v1116 = vcombine.low %v1105, %v1107
    %v1118 = vunpack.c.l.s4 1983009808
    %v1119 = vunpack.c.0.s8 %v1118
    %v1120 = vlaneseq
    %v1121 = vshrl.u32 %v1120, 7
    %v1122 = vsub.s32 %v1119, %v1121
    %v1123 = vrot.slane %v1115, %v1122
    %v1125 = vunpack.c.l.s4 1983009808
    %v1126 = vunpack.c.0.s8 %v1125
    %v1127 = vlaneseq
    %v1128 = vshrl.u32 %v1127, 7
    %v1129 = vsub.s32 %v1126, %v1128
    %v1130 = vrot.slane %v1116, %v1129
    %v1131 = vcombine.low %v1123, %v1130
    %v1133 = vadd.f32 %v1028, %v1131
    %v1134 = vmul.f32 %v1133, 0.5
    %v1135 = vtanh.pop %v1134
    %v1136 = vadd.f32 %v1135, 1.0
    %v1137 = vmul.f32 %v1136, 0.5
    %v1139 = vrot.slane %v1133, 6
    %v1141 = vtanh.pop %v1139
    %v1143 = vrot.slane %v1137, 2
    %v1145 = vmul.f32 %v1143, %v1018
    %v1146 = vmul.f32 %v1137, %v1141
    %v1147 = vadd.f32 %v1145, %v1146
    %v1148 = vtanh.pop %v1147
    %v1149 = vrot.slane %v1137, 4
    %v1151 = vmul.f32 %v1149, %v1148
    %v1152 = vpack.c.bf16 %v1151, %v1151
    %s1153 = scalar_lea.vmem [#allocation9], 6
    %1154 = vst [vmem:[%s1153] sm:$0x1] %v1152
    %s1155 = scalar_lea.vmem [#allocation4], 28
    %v1156 = vld [vmem:[%s1155] sm:$0xf]
    %v1157 = vunpack.c.l.bf16 %v1156
    %1158 = vmatprep.subr.bf16.mxu0 %v193
    %1159 = vmatpush1.bf16.msra.mxu0 %v192
    %1160 = vmatprep.subr.bf16.mxu0 %v197
    %1161 = vmatpush1.bf16.msra.mxu0 %v196
    %1162 = vmatprep.subr.bf16.mxu0 %v201
    %1163 = vmatpush1.bf16.msra.mxu0 %v200
    %1164 = vmatprep.subr.bf16.mxu0 %v205
    %1165 = vmatpush1.bf16.msra.mxu0 %v204
    %1166 = vmatprep.subr.bf16.mxu0 %v209
    %1167 = vmatpush1.bf16.msra.mxu0 %v208
    %1168 = vmatprep.subr.bf16.mxu0 %v213
    %1169 = vmatpush1.bf16.msra.mxu0 %v212
    %1170 = vmatprep.subr.bf16.mxu0 %v217
    %1171 = vmatpush1.bf16.msra.mxu0 %v216
    %1172 = vmatprep.subr.bf16.mxu0 %v221
    %1173 = vmatpush1.bf16.msra.mxu0 %v220
    %1174 = vmatprep.subr.bf16.mxu0 0
    %1175 = vmatpush1.bf16.msra.mxu0 0
    %1176 = vmatprep.subr.bf16.mxu0 0
    %1177 = vmatpush1.bf16.msra.mxu0 0
    %1178 = vmatprep.subr.bf16.mxu0 0
    %1179 = vmatpush1.bf16.msra.mxu0 0
    %1180 = vmatprep.subr.bf16.mxu0 0
    %1181 = vmatpush1.bf16.msra.mxu0 0
    %1182 = vmatprep.subr.bf16.mxu0 0
    %1183 = vmatpush1.bf16.msra.mxu0 0
    %1184 = vmatprep.subr.bf16.mxu0 0
    %1185 = vmatpush1.bf16.msra.mxu0 0
    %1186 = vmatprep.subr.bf16.mxu0 0
    %1187 = vmatpush1.bf16.msra.mxu0 0
    %1188 = vmatprep.subr.bf16.mxu0 0
    %1189 = vmatpush1.bf16.msra.mxu0 0
    %1190 = vmatprep.mubr.bf16.mxu0 0
    %1191 = vmatmul.mubr.bf16.gmra.mrb[0].mxu0 %v1152
    %v1192 = vpop.f32.mrb[0].mxu0
    %v1193 = vadd.f32 0.0, %v1192
    %v1194 = vpop.f32.mrb[0].mxu0
    %v1195 = vadd.f32 0.0, %v1194
    %v1196 = vpop.f32.mrb[0].mxu0
    %v1197 = vpop.f32.mrb[0].mxu0
    %1198 = vdwg.mxu0
    %1199 = vmatprep.subr.bf16.mxu0 %v195
    %1200 = vmatpush1.bf16.msra.mxu0 %v194
    %1201 = vmatprep.subr.bf16.mxu0 %v199
    %1202 = vmatpush1.bf16.msra.mxu0 %v198
    %1203 = vmatprep.subr.bf16.mxu0 %v203
    %1204 = vmatpush1.bf16.msra.mxu0 %v202
    %1205 = vmatprep.subr.bf16.mxu0 %v207
    %1206 = vmatpush1.bf16.msra.mxu0 %v206
    %1207 = vmatprep.subr.bf16.mxu0 %v211
    %1208 = vmatpush1.bf16.msra.mxu0 %v210
    %1209 = vmatprep.subr.bf16.mxu0 %v215
    %1210 = vmatpush1.bf16.msra.mxu0 %v214
    %1211 = vmatprep.subr.bf16.mxu0 %v219
    %1212 = vmatpush1.bf16.msra.mxu0 %v218
    %1213 = vmatprep.subr.bf16.mxu0 %v223
    %1214 = vmatpush1.bf16.msra.mxu0 %v222
    %1215 = vmatprep.subr.bf16.mxu0 0
    %1216 = vmatpush1.bf16.msra.mxu0 0
    %1217 = vmatprep.subr.bf16.mxu0 0
    %1218 = vmatpush1.bf16.msra.mxu0 0
    %1219 = vmatprep.subr.bf16.mxu0 0
    %1220 = vmatpush1.bf16.msra.mxu0 0
    %1221 = vmatprep.subr.bf16.mxu0 0
    %1222 = vmatpush1.bf16.msra.mxu0 0
    %1223 = vmatprep.subr.bf16.mxu0 0
    %1224 = vmatpush1.bf16.msra.mxu0 0
    %1225 = vmatprep.subr.bf16.mxu0 0
    %1226 = vmatpush1.bf16.msra.mxu0 0
    %1227 = vmatprep.subr.bf16.mxu0 0
    %1228 = vmatpush1.bf16.msra.mxu0 0
    %1229 = vmatprep.subr.bf16.mxu0 0
    %1230 = vmatpush1.bf16.msra.mxu0 0
    %1231 = vmatprep.mubr.bf16.mxu0 0
    %1232 = vmatmul.mubr.bf16.gmra.mrb[0].mxu0 %v1152
    %v1233 = vpop.f32.mrb[0].mxu0
    %v1234 = vadd.f32 0.0, %v1233
    %v1235 = vpop.f32.mrb[0].mxu0
    %v1236 = vadd.f32 0.0, %v1235
    %v1237 = vpop.f32.mrb[0].mxu0
    %v1238 = vpop.f32.mrb[0].mxu0
    %1239 = vdwg.mxu0
    %v1244 = vcombine.low %v1193, %v1195
    %v1245 = vcombine.low %v1234, %v1236
    %v1247 = vunpack.c.l.s4 1983009808
    %v1248 = vunpack.c.0.s8 %v1247
    %v1249 = vlaneseq
    %v1250 = vshrl.u32 %v1249, 7
    %v1251 = vsub.s32 %v1248, %v1250
    %v1252 = vrot.slane %v1244, %v1251
    %v1254 = vunpack.c.l.s4 1983009808
    %v1255 = vunpack.c.0.s8 %v1254
    %v1256 = vlaneseq
    %v1257 = vshrl.u32 %v1256, 7
    %v1258 = vsub.s32 %v1255, %v1257
    %v1259 = vrot.slane %v1245, %v1258
    %v1260 = vcombine.low %v1252, %v1259
    %v1262 = vadd.f32 %v1157, %v1260
    %v1263 = vmul.f32 %v1262, 0.5
    %v1264 = vtanh.pop %v1263
    %v1265 = vadd.f32 %v1264, 1.0
    %v1266 = vmul.f32 %v1265, 0.5
    %v1268 = vrot.slane %v1262, 6
    %v1270 = vtanh.pop %v1268
    %v1272 = vrot.slane %v1266, 2
    %v1274 = vmul.f32 %v1272, %v1147
    %v1275 = vmul.f32 %v1266, %v1270
    %v1276 = vadd.f32 %v1274, %v1275
    %v1277 = vtanh.pop %v1276
    %v1278 = vrot.slane %v1266, 4
    %v1280 = vmul.f32 %v1278, %v1277
    %v1281 = vpack.c.bf16 %v1280, %v1280
    %s1282 = scalar_lea.vmem [#allocation9], 7
    %1283 = vst [vmem:[%s1282] sm:$0x1] %v1281
    %1284 = vst [vmem:[#allocation2] sm:$0x3] %v1280
    %1285 = vst [vmem:[#allocation3] sm:$0x3] %v1276
    %1286 = vst [vmem:[#allocation10] sm:$0x3] %v1280
    %1287 = vst [vmem:[#allocation12] sm:$0x3] %v1276
    // Predicated region
    $region30: #{tpu_custom_call.1} parent=1 // pred_check
      _
    $region31: #{tpu_custom_call.1} parent=1 // pred_check_branch
      %1289 = sbr.rel (0) target = $region33
    $region32: #{tpu_custom_call.1} parent=1 // pred_region
      %s1291 = ssub.s32 128, 128
      %1292 = vsyncadd [#allocation6], %s1291
      %s1293 = sshll.u32 [#allocation9], 4
      %s1294 = int_to_ptr.vmem [resolvable:$true] %s1293
      %1299 = dma.vmem_to_hbm [thread:$0]  %s1294, 128, %s4, [#allocation6], 16, 16, 1
    $region33: #{tpu_custom_call.1} parent=1 // pred_fallthru
      _
    // Predicated region
    $region34: #{tpu_custom_call.1} parent=1 // pred_check
      _
    $region35: #{tpu_custom_call.1} parent=1 // pred_check_branch
      %1301 = sbr.rel (0) target = $region37
    $region36: #{tpu_custom_call.1} parent=1 // pred_region
      %s1303 = ssub.s32 32, 32
      %1304 = vsyncadd [#allocation11], %s1303
      %s1306 = sshll.u32 [#allocation10], 4
      %s1307 = int_to_ptr.vmem [resolvable:$true] %s1306
      %1309 = dma.vmem_to_hbm [thread:$0]  %s1307, 32, %s5, [#allocation11]
    $region37: #{tpu_custom_call.1} parent=1 // pred_fallthru
      _
    // Predicated region
    $region38: #{tpu_custom_call.1} parent=1 // pred_check
      _
    $region39: #{tpu_custom_call.1} parent=1 // pred_check_branch
      %1311 = sbr.rel (0) target = $region41
    $region40: #{tpu_custom_call.1} parent=1 // pred_region
      %s1313 = ssub.s32 32, 32
      %1314 = vsyncadd [#allocation11], %s1313
      %s1316 = sshll.u32 [#allocation12], 4
      %s1317 = int_to_ptr.vmem [resolvable:$true] %s1316
      %1319 = dma.vmem_to_hbm [thread:$0]  %s1317, 32, %s6, [#allocation11]
    $region41: #{tpu_custom_call.1} parent=1 // pred_fallthru
      _
    // Predicated region
    $region42: #{tpu_custom_call.1} parent=1 // pred_check
      _
    $region43: #{tpu_custom_call.1} parent=1 // pred_check_branch
      %1321 = sbr.rel (0) target = $region45
    $region44: #{tpu_custom_call.1} parent=1 // pred_region
      %1322 = dma.done [#allocation6], 128
    $region45: #{tpu_custom_call.1} parent=1 // pred_fallthru
      _
    // Predicated region
    $region46: #{tpu_custom_call.1} parent=1 // pred_check
      _
    $region47: #{tpu_custom_call.1} parent=1 // pred_check_branch
      %1324 = sbr.rel (0) target = $region49
    $region48: #{tpu_custom_call.1} parent=1 // pred_region
      %1325 = dma.done [#allocation11], 32
    $region49: #{tpu_custom_call.1} parent=1 // pred_fallthru
      _
    // Predicated region
    $region50: #{tpu_custom_call.1} parent=1 // pred_check
      _
    $region51: #{tpu_custom_call.1} parent=1 // pred_check_branch
      %1327 = sbr.rel (0) target = $region53
    $region52: #{tpu_custom_call.1} parent=1 // pred_region
      %1328 = dma.done [#allocation11], 32
    $region53: #{tpu_custom_call.1} parent=1 // pred_fallthru
      _
    %1329 = vsyncpa [#allocation5], 1
    %1330 = vsyncpa [#allocation8], 1
    %1331 = vsyncpa [#allocation6], 1
    %1332 = vsyncpa [#allocation11], 1

</llo_original>
